<compile_context>
chip_gen: v5e
topology: v5e:2x2
jax: 0.10.0
libtpu: 0.0.40
codegen_flags: <defaults>
</compile_context>

<pallas_src>
import functools

import numpy as np
import jax
import jax.numpy as jnp
from jax.experimental import pallas as pl
from jax.experimental.pallas import tpu as pltpu

_NI = 8          # images per grid step (multiple of 8 keeps all slices aligned)
_H = 32          # input spatial size
_C0, _C1, _C2 = 3, 16, 32
_NC_PAD = 128    # FC output lanes (num_classes padded to a full lane tile)


# ----------------------------------------------------------------------------
# Fused forward kernel: one grid step == NI images; everything stays on-chip.
# ----------------------------------------------------------------------------
def _fused_cnn_kernel(x_ref, w1_ref, b1_ref, w2_ref, b2_ref, wf_ref, bf_ref,
                      out_ref, *, ni):
    half = 16 * ni

    # conv1: one lane-dense MXU matmul over the row-band im2col (bias deferred).
    a1 = jnp.dot(x_ref[...], w1_ref[...],
                 preferred_element_type=jnp.float32)            # (32*ni, 512)

    # maxpool1: input rows are ordered (row-parity, i2, n) so the 2-row pool is
    # a max of the two aligned row-halves; conv1 weight columns are ordered
    # (j%2, j//2, cout) so the 2-col pool is a max of the two 256-lane halves.
    a1 = jnp.maximum(a1[:half], a1[half:])                      # (16*ni, 512)
    p1 = jnp.maximum(a1[:, :256], a1[:, 256:])                  # (16*ni, 256)
    p1 = jnp.maximum(p1 + b1_ref[...], 0.0)                     # bias + ReLU

    # conv2 LHS: for output row i2 concatenate pool1 rows (i2-1, i2, i2+1) along
    # lanes; the zero blocks are the vertical padding (built in f32 so every
    # slice/concat stays (8,128)-tile aligned, cast to bf16 only for the MXU).
    z = jnp.zeros((ni, 256), jnp.float32)
    top = jnp.concatenate([z, p1[:15 * ni]], axis=0)
    bot = jnp.concatenate([p1[ni:], z], axis=0)
    lhs2 = jnp.concatenate([top, p1, bot], axis=1)              # (16*ni, 768)

    a2 = jnp.dot(lhs2.astype(jnp.bfloat16), w2_ref[...],
                 preferred_element_type=jnp.float32)            # (16*ni, 512)

    # maxpool2 (bias/ReLU deferred): row pairs (2*h2, 2*h2+1) via aligned 8-row
    # slices, column pairs via the two 256-lane halves (weight column order).
    ea = jnp.concatenate(
        [a2[(2 * h) * ni:(2 * h + 1) * ni] for h in range(8)], axis=0)
    eb = jnp.concatenate(
        [a2[(2 * h + 1) * ni:(2 * h + 2) * ni] for h in range(8)], axis=0)
    m2 = jnp.maximum(ea, eb)                                    # (8*ni, 512)
    p2 = jnp.maximum(m2[:, :256], m2[:, 256:])                  # (8*ni, 256)
    p2 = jnp.maximum(p2 + b2_ref[...], 0.0)

    # FC: flatten (h2, w2, c2) along lanes -> (ni, 2048); ONE bf16 MXU matmul.
    fc_in = jnp.concatenate(
        [p2[h * ni:(h + 1) * ni] for h in range(8)], axis=1)    # (ni, 2048)
    logits = jnp.dot(fc_in.astype(jnp.bfloat16), wf_ref[...],
                     preferred_element_type=jnp.float32)        # (ni, 128)
    out_ref[...] = logits + bf_ref[...]


# ----------------------------------------------------------------------------
# Host-side (numpy) weight re-layout into the banded, lane-dense kernel forms.
# ----------------------------------------------------------------------------
def _prepare_params(params):
    cw1 = np.asarray(params["conv1_w"], np.float32)   # (16, 3, 3, 3) [o,i,kh,kw]
    cb1 = np.asarray(params["conv1_b"], np.float32)
    cw2 = np.asarray(params["conv2_w"], np.float32)   # (32, 16, 3, 3)
    cb2 = np.asarray(params["conv2_b"], np.float32)
    fcw = np.asarray(params["fc_w"], np.float32)      # (nc, 2048)
    fcb = np.asarray(params["fc_b"], np.float32)
    nc = fcb.shape[0]
    assert nc <= _NC_PAD, "num_classes must fit in one 128-lane output tile"

    # conv1 banded weight: row = kh*128 + jj*3 + cin, col = (j%2)*256 + (j//2)*16 + cout
    w1 = np.zeros((3, 128, 2, 16, _C1), np.float32)
    for kh in range(3):
        for kw in range(3):
            for j in range(_H):
                jj = j + kw
                w1[kh, jj * 3:jj * 3 + 3, j % 2, j // 2, :] = cw1[:, :, kh, kw].T
    w1 = w1.reshape(384, 512)

    # conv2 banded weight: row = kh*256 + w*16 + cin, col = (j2%2)*256 + (j2//2)*32 + cout
    w2 = np.zeros((3, 16, _C1, 2, 8, _C2), np.float32)
    for kh in range(3):
        for kw in range(3):
            for j2 in range(16):
                wi = j2 + kw - 1
                if 0 <= wi < 16:
                    w2[kh, wi, :, j2 % 2, j2 // 2, :] = cw2[:, :, kh, kw].T
    w2 = w2.reshape(768, 512)

    # FC weight: row = h2*256 + w2*32 + c2 (kernel's pooled lane order), torch
    # flatten order (C,H,W) folded in; columns zero-padded to 128 lanes.
    wf = np.zeros((8, 8, _C2, _NC_PAD), np.float32)
    wf[:, :, :, :nc] = fcw.reshape(nc, _C2, 8, 8).transpose(2, 3, 1, 0)
    wf = wf.reshape(2048, _NC_PAD)

    b1e = np.tile(cb1, 16).reshape(1, 256)
    b2e = np.tile(cb2, 8).reshape(1, 256)
    bfe = np.zeros((1, _NC_PAD), np.float32)
    bfe[0, :nc] = fcb

    return (jnp.asarray(w1, jnp.bfloat16), jnp.asarray(b1e, jnp.float32),
            jnp.asarray(w2, jnp.bfloat16), jnp.asarray(b2e, jnp.float32),
            jnp.asarray(wf, jnp.bfloat16), jnp.asarray(bfe, jnp.float32), nc)


# ----------------------------------------------------------------------------
# Jitted glue: row-band layout for conv1 + the single pallas_call.
# ----------------------------------------------------------------------------
@functools.partial(jax.jit, static_argnames=("ni",))
def _forward_padded(x_nchw, w1, b1e, w2, b2e, wf, bfe, *, ni):
    b = x_nchw.shape[0]
    x = jnp.transpose(x_nchw, (0, 2, 3, 1))                      # (B, 32, 32, 3)
    xp = jnp.pad(x, ((0, 0), (1, 1), (1, 1), (0, 0)))            # (B, 34, 34, 3)
    rows = xp.reshape(b, 34, 34 * _C0)                           # (B, 34, 102)
    rows = jnp.pad(rows, ((0, 0), (0, 0), (0, 128 - 34 * _C0)))  # (B, 34, 128)
    band = jnp.stack([rows[:, 0:32], rows[:, 1:33], rows[:, 2:34]],
                     axis=2)                                     # (B, 32, 3, 128)
    band = band.reshape(b, _H, 384)

    bp = ((b + ni - 1) // ni) * ni
    band = jnp.pad(band, ((0, bp - b), (0, 0), (0, 0)))
    g = bp // ni
    # Order the matmul rows as (row-parity, i2, image) so pool1 is a half-max.
    band = band.reshape(g, ni, 16, 2, 384)
    band = jnp.transpose(band, (0, 3, 2, 1, 4)).reshape(g, 32 * ni, 384)
    band = band.astype(jnp.bfloat16)

    out = pl.pallas_call(
        functools.partial(_fused_cnn_kernel, ni=ni),
        out_shape=jax.ShapeDtypeStruct((g, ni, _NC_PAD), jnp.float32),
        grid_spec=pltpu.PrefetchScalarGridSpec(
            num_scalar_prefetch=0,
            grid=(g,),
            in_specs=[
                pl.BlockSpec((None, 32 * ni, 384), lambda i: (i, 0, 0)),
                pl.BlockSpec((384, 512), lambda i: (0, 0)),
                pl.BlockSpec((1, 256), lambda i: (0, 0)),
                pl.BlockSpec((768, 512), lambda i: (0, 0)),
                pl.BlockSpec((1, 256), lambda i: (0, 0)),
                pl.BlockSpec((2048, _NC_PAD), lambda i: (0, 0)),
                pl.BlockSpec((1, _NC_PAD), lambda i: (0, 0)),
            ],
            out_specs=pl.BlockSpec((None, ni, _NC_PAD), lambda i: (i, 0, 0)),
        ),
        compiler_params=pltpu.CompilerParams(
            dimension_semantics=("parallel",)),
    )(band, w1, b1e, w2, b2e, wf, bfe)
    return out.reshape(bp, _NC_PAD)[:b]


def simple_cnn_forward(x_nchw, params, ni=_NI):
    """x_nchw: (B, 3, 32, 32) float32 -> logits (B, num_classes)."""
    assert x_nchw.shape[1:] == (_C0, _H, _H), "SimpleCNN expects (B,3,32,32)"
    w1, b1e, w2, b2e, wf, bfe, nc = _prepare_params(params)
    out = _forward_padded(x_nchw, w1, b1e, w2, b2e, wf, bfe, ni=ni)
    return out[:, :nc]


# ----------------------------------------------------------------------------
# Parameters (native PyTorch layouts) and a pure-JAX reference for validation.
# ----------------------------------------------------------------------------
def init_params(key, num_classes=10):
    k1, k2, k3, k4, k5, k6 = jax.random.split(key, 6)
    return {
        "conv1_w": jax.random.normal(k1, (_C1, _C0, 3, 3), jnp.float32) * 0.1,
        "conv1_b": jax.random.normal(k2, (_C1,), jnp.float32) * 0.01,
        "conv2_w": jax.random.normal(k3, (_C2, _C1, 3, 3), jnp.float32) * 0.05,
        "conv2_b": jax.random.normal(k4, (_C2,), jnp.float32) * 0.01,
        "fc_w": jax.random.normal(k5, (num_classes, _C2 * 8 * 8),
                                  jnp.float32) * 0.02,
        "fc_b": jax.random.normal(k6, (num_classes,), jnp.float32) * 0.01,
    }


def reference_forward(x_nchw, params):
    """Plain JAX/XLA reference with identical semantics to the torch module."""
    x = jnp.transpose(x_nchw, (0, 2, 3, 1))

    def conv3x3_relu(x, w_oihw, b):
        bn, hh, ww, ci = x.shape
        xp = jnp.pad(x, ((0, 0), (1, 1), (1, 1), (0, 0)))
        cols = jnp.concatenate(
            [xp[:, i:i + hh, j:j + ww, :] for i in range(3) for j in range(3)],
            axis=-1)
        wmat = jnp.transpose(w_oihw, (2, 3, 1, 0)).reshape(9 * ci, -1)
        y = cols.reshape(bn * hh * ww, 9 * ci) @ wmat + b
        return jax.nn.relu(y).reshape(bn, hh, ww, -1)

    def pool2x2(x):
        bn, hh, ww, cc = x.shape
        return jnp.max(x.reshape(bn, hh // 2, 2, ww // 2, 2, cc), axis=(2, 4))

    x = pool2x2(conv3x3_relu(x, params["conv1_w"], params["conv1_b"]))
    x = pool2x2(conv3x3_relu(x, params["conv2_w"], params["conv2_b"]))
    xf = jnp.transpose(x, (0, 3, 1, 2)).reshape(x.shape[0], -1)  # (C,H,W) flatten
    return xf @ params["fc_w"].T + params["fc_b"]


if __name__ == "__main__":
    key = jax.random.PRNGKey(0)
    xkey, pkey = jax.random.split(key)
    x = jax.random.normal(xkey, (16, 3, 32, 32), jnp.float32)   # NCHW, like torch
    params = init_params(pkey, num_classes=10)

    logits = simple_cnn_forward(x, params)
    jax.block_until_ready(logits)
    assert logits.shape == (16, 10), logits.shape
    assert bool(jnp.all(jnp.isfinite(logits)))

    ref = reference_forward(x, params)
    max_err = float(jnp.max(jnp.abs(logits - ref)))
    assert max_err < 5e-2, f"kernel/reference mismatch: max abs err = {max_err}"
    print("KERNEL_OK")
</pallas_src>

<mosaic_0001>
module attributes {stable_mosaic.version = 11 : i64} {
  func.func @_fused_cnn_kernel(%arg0: i32, %arg1: memref<1x256x384xbf16, #tpu.memory_space<vmem>>, %arg2: memref<384x512xbf16, #tpu.memory_space<vmem>>, %arg3: memref<1x256xf32, #tpu.memory_space<vmem>>, %arg4: memref<768x512xbf16, #tpu.memory_space<vmem>>, %arg5: memref<1x256xf32, #tpu.memory_space<vmem>>, %arg6: memref<2048x128xbf16, #tpu.memory_space<vmem>>, %arg7: memref<1x128xf32, #tpu.memory_space<vmem>>, %arg8: memref<1x8x128xf32, #tpu.memory_space<vmem>>) attributes {dimension_semantics = [#tpu.dimension_semantics<parallel>], iteration_bounds = array<i64: 2>, scalar_prefetch = 0 : i64, scratch_operands = 0 : i64, tpu.core_type = #tpu.core_type<tc>, window_params = [{transform_indices = @transform_0, window_bounds = array<i64: 1, 256, 384>}, {pipeline_mode = #tpu.pipeline_mode<synchronous>, transform_indices = @transform_1, window_bounds = array<i64: 384, 512>}, {pipeline_mode = #tpu.pipeline_mode<synchronous>, transform_indices = @transform_2, window_bounds = array<i64: 1, 256>}, {pipeline_mode = #tpu.pipeline_mode<synchronous>, transform_indices = @transform_3, window_bounds = array<i64: 768, 512>}, {pipeline_mode = #tpu.pipeline_mode<synchronous>, transform_indices = @transform_4, window_bounds = array<i64: 1, 256>}, {pipeline_mode = #tpu.pipeline_mode<synchronous>, transform_indices = @transform_5, window_bounds = array<i64: 2048, 128>}, {pipeline_mode = #tpu.pipeline_mode<synchronous>, transform_indices = @transform_6, window_bounds = array<i64: 1, 128>}, {transform_indices = @transform_7, window_bounds = array<i64: 1, 8, 128>}]} {
    %c0 = arith.constant 0 : index
    %c0_0 = arith.constant 0 : index
    %c0_1 = arith.constant 0 : index
    %0 = vector.load %arg1[%c0, %c0_0, %c0_1] : memref<1x256x384xbf16, #tpu.memory_space<vmem>>, vector<1x256x384xbf16>
    %1 = vector.shape_cast %0 : vector<1x256x384xbf16> to vector<256x384xbf16>
    %c0_2 = arith.constant 0 : index
    %c0_3 = arith.constant 0 : index
    %2 = vector.load %arg2[%c0_2, %c0_3] : memref<384x512xbf16, #tpu.memory_space<vmem>>, vector<384x512xbf16>
    %cst = arith.constant dense<0.000000e+00> : vector<256x512xf32>
    %3 = tpu.matmul %1, %2, %cst {dimension_numbers = #tpu.dot_dimension_numbers<[1], [0], [0], [1], [0, 0, 1, 1], [], []>} : vector<256x384xbf16>, vector<384x512xbf16>, vector<256x512xf32> -> vector<256x512xf32>
    %4 = vector.extract_strided_slice %3 {offsets = [0, 0], sizes = [128, 512], strides = [1, 1]} : vector<256x512xf32> to vector<128x512xf32>
    %5 = vector.extract_strided_slice %3 {offsets = [128, 0], sizes = [128, 512], strides = [1, 1]} : vector<256x512xf32> to vector<128x512xf32>
    %6 = arith.maximumf %4, %5 : vector<128x512xf32>
    %7 = vector.extract_strided_slice %6 {offsets = [0, 0], sizes = [128, 256], strides = [1, 1]} : vector<128x512xf32> to vector<128x256xf32>
    %8 = vector.extract_strided_slice %6 {offsets = [0, 256], sizes = [128, 256], strides = [1, 1]} : vector<128x512xf32> to vector<128x256xf32>
    %9 = arith.maximumf %7, %8 : vector<128x256xf32>
    %c0_4 = arith.constant 0 : index
    %c0_5 = arith.constant 0 : index
    %10 = vector.load %arg3[%c0_4, %c0_5] : memref<1x256xf32, #tpu.memory_space<vmem>>, vector<1x256xf32>
    %11 = vector.broadcast %10 : vector<1x256xf32> to vector<128x256xf32>
    %12 = arith.addf %9, %11 : vector<128x256xf32>
    %cst_6 = arith.constant 0.000000e+00 : f32
    %13 = vector.broadcast %cst_6 : f32 to vector<128x256xf32>
    %14 = arith.maximumf %12, %13 : vector<128x256xf32>
    %cst_7 = arith.constant 0.000000e+00 : f32
    %15 = vector.broadcast %cst_7 : f32 to vector<8x256xf32>
    %16 = vector.extract_strided_slice %14 {offsets = [0, 0], sizes = [120, 256], strides = [1, 1]} : vector<128x256xf32> to vector<120x256xf32>
    %17 = tpu.concatenate %15, %16 in 0 : vector<8x256xf32>, vector<120x256xf32> -> vector<128x256xf32>
    %18 = vector.extract_strided_slice %14 {offsets = [8, 0], sizes = [120, 256], strides = [1, 1]} : vector<128x256xf32> to vector<120x256xf32>
    %19 = tpu.concatenate %18, %15 in 0 : vector<120x256xf32>, vector<8x256xf32> -> vector<128x256xf32>
    %20 = tpu.concatenate %17, %14, %19 in 1 : vector<128x256xf32>, vector<128x256xf32>, vector<128x256xf32> -> vector<128x768xf32>
    %21 = arith.truncf %20 : vector<128x768xf32> to vector<128x768xbf16>
    %c0_8 = arith.constant 0 : index
    %c0_9 = arith.constant 0 : index
    %22 = vector.load %arg4[%c0_8, %c0_9] : memref<768x512xbf16, #tpu.memory_space<vmem>>, vector<768x512xbf16>
    %cst_10 = arith.constant dense<0.000000e+00> : vector<128x512xf32>
    %23 = tpu.matmul %21, %22, %cst_10 {dimension_numbers = #tpu.dot_dimension_numbers<[1], [0], [0], [1], [0, 0, 1, 1], [], []>} : vector<128x768xbf16>, vector<768x512xbf16>, vector<128x512xf32> -> vector<128x512xf32>
    %24 = vector.extract_strided_slice %23 {offsets = [0, 0], sizes = [8, 512], strides = [1, 1]} : vector<128x512xf32> to vector<8x512xf32>
    %25 = vector.extract_strided_slice %23 {offsets = [16, 0], sizes = [8, 512], strides = [1, 1]} : vector<128x512xf32> to vector<8x512xf32>
    %26 = vector.extract_strided_slice %23 {offsets = [32, 0], sizes = [8, 512], strides = [1, 1]} : vector<128x512xf32> to vector<8x512xf32>
    %27 = vector.extract_strided_slice %23 {offsets = [48, 0], sizes = [8, 512], strides = [1, 1]} : vector<128x512xf32> to vector<8x512xf32>
    %28 = vector.extract_strided_slice %23 {offsets = [64, 0], sizes = [8, 512], strides = [1, 1]} : vector<128x512xf32> to vector<8x512xf32>
    %29 = vector.extract_strided_slice %23 {offsets = [80, 0], sizes = [8, 512], strides = [1, 1]} : vector<128x512xf32> to vector<8x512xf32>
    %30 = vector.extract_strided_slice %23 {offsets = [96, 0], sizes = [8, 512], strides = [1, 1]} : vector<128x512xf32> to vector<8x512xf32>
    %31 = vector.extract_strided_slice %23 {offsets = [112, 0], sizes = [8, 512], strides = [1, 1]} : vector<128x512xf32> to vector<8x512xf32>
    %32 = tpu.concatenate %24, %25, %26, %27, %28, %29, %30, %31 in 0 : vector<8x512xf32>, vector<8x512xf32>, vector<8x512xf32>, vector<8x512xf32>, vector<8x512xf32>, vector<8x512xf32>, vector<8x512xf32>, vector<8x512xf32> -> vector<64x512xf32>
    %33 = vector.extract_strided_slice %23 {offsets = [8, 0], sizes = [8, 512], strides = [1, 1]} : vector<128x512xf32> to vector<8x512xf32>
    %34 = vector.extract_strided_slice %23 {offsets = [24, 0], sizes = [8, 512], strides = [1, 1]} : vector<128x512xf32> to vector<8x512xf32>
    %35 = vector.extract_strided_slice %23 {offsets = [40, 0], sizes = [8, 512], strides = [1, 1]} : vector<128x512xf32> to vector<8x512xf32>
    %36 = vector.extract_strided_slice %23 {offsets = [56, 0], sizes = [8, 512], strides = [1, 1]} : vector<128x512xf32> to vector<8x512xf32>
    %37 = vector.extract_strided_slice %23 {offsets = [72, 0], sizes = [8, 512], strides = [1, 1]} : vector<128x512xf32> to vector<8x512xf32>
    %38 = vector.extract_strided_slice %23 {offsets = [88, 0], sizes = [8, 512], strides = [1, 1]} : vector<128x512xf32> to vector<8x512xf32>
    %39 = vector.extract_strided_slice %23 {offsets = [104, 0], sizes = [8, 512], strides = [1, 1]} : vector<128x512xf32> to vector<8x512xf32>
    %40 = vector.extract_strided_slice %23 {offsets = [120, 0], sizes = [8, 512], strides = [1, 1]} : vector<128x512xf32> to vector<8x512xf32>
    %41 = tpu.concatenate %33, %34, %35, %36, %37, %38, %39, %40 in 0 : vector<8x512xf32>, vector<8x512xf32>, vector<8x512xf32>, vector<8x512xf32>, vector<8x512xf32>, vector<8x512xf32>, vector<8x512xf32>, vector<8x512xf32> -> vector<64x512xf32>
    %42 = arith.maximumf %32, %41 : vector<64x512xf32>
    %43 = vector.extract_strided_slice %42 {offsets = [0, 0], sizes = [64, 256], strides = [1, 1]} : vector<64x512xf32> to vector<64x256xf32>
    %44 = vector.extract_strided_slice %42 {offsets = [0, 256], sizes = [64, 256], strides = [1, 1]} : vector<64x512xf32> to vector<64x256xf32>
    %45 = arith.maximumf %43, %44 : vector<64x256xf32>
    %c0_11 = arith.constant 0 : index
    %c0_12 = arith.constant 0 : index
    %46 = vector.load %arg5[%c0_11, %c0_12] : memref<1x256xf32, #tpu.memory_space<vmem>>, vector<1x256xf32>
    %47 = vector.broadcast %46 : vector<1x256xf32> to vector<64x256xf32>
    %48 = arith.addf %45, %47 : vector<64x256xf32>
    %cst_13 = arith.constant 0.000000e+00 : f32
    %49 = vector.broadcast %cst_13 : f32 to vector<64x256xf32>
    %50 = arith.maximumf %48, %49 : vector<64x256xf32>
    %51 = vector.extract_strided_slice %50 {offsets = [0, 0], sizes = [8, 256], strides = [1, 1]} : vector<64x256xf32> to vector<8x256xf32>
    %52 = vector.extract_strided_slice %50 {offsets = [8, 0], sizes = [8, 256], strides = [1, 1]} : vector<64x256xf32> to vector<8x256xf32>
    %53 = vector.extract_strided_slice %50 {offsets = [16, 0], sizes = [8, 256], strides = [1, 1]} : vector<64x256xf32> to vector<8x256xf32>
    %54 = vector.extract_strided_slice %50 {offsets = [24, 0], sizes = [8, 256], strides = [1, 1]} : vector<64x256xf32> to vector<8x256xf32>
    %55 = vector.extract_strided_slice %50 {offsets = [32, 0], sizes = [8, 256], strides = [1, 1]} : vector<64x256xf32> to vector<8x256xf32>
    %56 = vector.extract_strided_slice %50 {offsets = [40, 0], sizes = [8, 256], strides = [1, 1]} : vector<64x256xf32> to vector<8x256xf32>
    %57 = vector.extract_strided_slice %50 {offsets = [48, 0], sizes = [8, 256], strides = [1, 1]} : vector<64x256xf32> to vector<8x256xf32>
    %58 = vector.extract_strided_slice %50 {offsets = [56, 0], sizes = [8, 256], strides = [1, 1]} : vector<64x256xf32> to vector<8x256xf32>
    %59 = tpu.concatenate %51, %52, %53, %54, %55, %56, %57, %58 in 1 : vector<8x256xf32>, vector<8x256xf32>, vector<8x256xf32>, vector<8x256xf32>, vector<8x256xf32>, vector<8x256xf32>, vector<8x256xf32>, vector<8x256xf32> -> vector<8x2048xf32>
    %60 = arith.truncf %59 : vector<8x2048xf32> to vector<8x2048xbf16>
    %c0_14 = arith.constant 0 : index
    %c0_15 = arith.constant 0 : index
    %61 = vector.load %arg6[%c0_14, %c0_15] : memref<2048x128xbf16, #tpu.memory_space<vmem>>, vector<2048x128xbf16>
    %cst_16 = arith.constant dense<0.000000e+00> : vector<8x128xf32>
    %62 = tpu.matmul %60, %61, %cst_16 {dimension_numbers = #tpu.dot_dimension_numbers<[1], [0], [0], [1], [0, 0, 1, 1], [], []>} : vector<8x2048xbf16>, vector<2048x128xbf16>, vector<8x128xf32> -> vector<8x128xf32>
    %c0_17 = arith.constant 0 : index
    %c0_18 = arith.constant 0 : index
    %63 = vector.load %arg7[%c0_17, %c0_18] : memref<1x128xf32, #tpu.memory_space<vmem>>, vector<1x128xf32>
    %64 = vector.broadcast %63 : vector<1x128xf32> to vector<8x128xf32>
    %65 = arith.addf %62, %64 : vector<8x128xf32>
    %c0_19 = arith.constant 0 : index
    %c0_20 = arith.constant 0 : index
    %c0_21 = arith.constant 0 : index
    %66 = vector.load %arg8[%c0_19, %c0_20, %c0_21] : memref<1x8x128xf32, #tpu.memory_space<vmem>>, vector<1x8x128xf32>
    %67 = vector.shape_cast %66 : vector<1x8x128xf32> to vector<8x128xf32>
    %68 = vector.shape_cast %65 : vector<8x128xf32> to vector<1x8x128xf32>
    tpu.vector_store %arg8[%c0_19, %c0_20, %c0_21], %68 {strides = array<i32>} : memref<1x8x128xf32, #tpu.memory_space<vmem>>, vector<1x8x128xf32>,
    return
  }
  func.func @transform_0(%arg0: i32) -> (i32, i32, i32) {
    %c0_i32 = arith.constant 0 : i32
    %c0_i32_0 = arith.constant 0 : i32
    %c0_i32_1 = arith.constant 0 : i32
    return %arg0, %c0_i32, %c0_i32_0 : i32, i32, i32
  }
  func.func @transform_1(%arg0: i32) -> (i32, i32) {
    %c0_i32 = arith.constant 0 : i32
    %c0_i32_0 = arith.constant 0 : i32
    %c0_i32_1 = arith.constant 0 : i32
    return %c0_i32, %c0_i32_0 : i32, i32
  }
  func.func @transform_2(%arg0: i32) -> (i32, i32) {
    %c0_i32 = arith.constant 0 : i32
    %c0_i32_0 = arith.constant 0 : i32
    %c0_i32_1 = arith.constant 0 : i32
    return %c0_i32, %c0_i32_0 : i32, i32
  }
  func.func @transform_3(%arg0: i32) -> (i32, i32) {
    %c0_i32 = arith.constant 0 : i32
    %c0_i32_0 = arith.constant 0 : i32
    %c0_i32_1 = arith.constant 0 : i32
    return %c0_i32, %c0_i32_0 : i32, i32
  }
  func.func @transform_4(%arg0: i32) -> (i32, i32) {
    %c0_i32 = arith.constant 0 : i32
    %c0_i32_0 = arith.constant 0 : i32
    %c0_i32_1 = arith.constant 0 : i32
    return %c0_i32, %c0_i32_0 : i32, i32
  }
  func.func @transform_5(%arg0: i32) -> (i32, i32) {
    %c0_i32 = arith.constant 0 : i32
    %c0_i32_0 = arith.constant 0 : i32
    %c0_i32_1 = arith.constant 0 : i32
    return %c0_i32, %c0_i32_0 : i32, i32
  }
  func.func @transform_6(%arg0: i32) -> (i32, i32) {
    %c0_i32 = arith.constant 0 : i32
    %c0_i32_0 = arith.constant 0 : i32
    %c0_i32_1 = arith.constant 0 : i32
    return %c0_i32, %c0_i32_0 : i32, i32
  }
  func.func @transform_7(%arg0: i32) -> (i32, i32, i32) {
    %c0_i32 = arith.constant 0 : i32
    %c0_i32_0 = arith.constant 0 : i32
    %c0_i32_1 = arith.constant 0 : i32
    return %arg0, %c0_i32, %c0_i32_0 : i32, i32, i32
  }
}

</mosaic_0001>

<llo_original>
// kernel: _forward_padded.1
$region0: #{_forward_padded.1}
  #allocation0 [shape = 'u32[]', space=smem, size = 0x4, offset = 0x4, fixed_abs, tag = 'smem constant byte address 0x4 - core index']
  #allocation1 [shape = 'u32[72,128]{1,0:T(1,128)}', space=vmem, size = 0x9000, scoped, tag = 'internal scratch']
  %s0 = inlined_call_operand.vmem [shape: bf16[2,256,384], index: 0, kind: input, shape index: {}]
  %s1 = inlined_call_operand.vmem [shape: bf16[384,512], index: 1, kind: input, shape index: {}]
  %s2 = inlined_call_operand.vmem [shape: f32[1,256], index: 2, kind: input, shape index: {}]
  %s3 = inlined_call_operand.vmem [shape: bf16[768,512], index: 3, kind: input, shape index: {}]
  %s4 = inlined_call_operand.vmem [shape: f32[1,256], index: 4, kind: input, shape index: {}]
  %s5 = inlined_call_operand.vmem [shape: bf16[2048,128], index: 5, kind: input, shape index: {}]
  %s6 = inlined_call_operand.vmem [shape: f32[1,128], index: 6, kind: input, shape index: {}]
  %s7 = inlined_call_operand.hbm [shape: f32[2,8,128], index: 7, kind: output, shape index: {}]
  %s8 = sld [smem:[#allocation0]]
  $region61: #{_forward_padded.1} parent=0
    _
  %s10 = ssub.s32 1, %s8
  %s11 = scalar_select 0, %s10, %s8
  $region1: #{_forward_padded.1} parent=0
    #allocation2 [shape = 'u8[8192]{0}', space=vmem, size = 0x2000, scoped, tag = 'output window, operand 0']
    #allocation3 [shape = 's32[2]{0}', space=sflag, size = 0x8, scoped, tag = 'scoped memory for _forward_padded.1']
    %12 = vsyncpa [#allocation3], 0
    %s13 = scalar_lea.sflag [#allocation3], 1
    %14 = vsyncpa %s13, 0
    loop: start=0, step=1, limit=4
    $region2: #{_forward_padded.1} parent=1 // loop_pre_header
      _
    $region3: #{_forward_padded.1} parent=1 // loop_header
      %s16 = sphi 0, %s20
      %p17 = scmp.ge.s32.totalorder %s16, 4
      %s26 = sphi 0, %s28
      %s29 = sphi 0, %s26
      %s30 = sphi 0, %s29
      %s46 = sphi 0, %s30
      %s50 = sphi 0, %s50
      %s52 = sphi 0, %s50
      %s53 = sphi 0, %s52
      %s67 = sphi 0, %s53
      %s71 = sphi 0, %s71
      %s73 = sphi 0, %s71
      %s74 = sphi 0, %s73
      %s88 = sphi 0, %s74
      %s92 = sphi 0, %s92
      %s94 = sphi 0, %s92
      %s95 = sphi 0, %s94
      %s109 = sphi 0, %s95
      %s113 = sphi 0, %s113
      %s115 = sphi 0, %s113
      %s116 = sphi 0, %s115
      %s130 = sphi 0, %s116
      %s134 = sphi 0, %s134
      %s136 = sphi 0, %s134
      %s137 = sphi 0, %s136
      %s151 = sphi 0, %s137
      %s155 = sphi 0, %s155
      %s157 = sphi 0, %s155
      %s158 = sphi 0, %s157
      %s172 = sphi 0, %s158
      %s178 = sphi 0, %s180
      %s181 = sphi 0, %s178
      %s182 = sphi 0, %s181
      %s198 = sphi 0, %s182
    $region4: #{_forward_padded.1} parent=1 // loop_header_branch
      %19 = sbr.rel (%p17) target = $region8
    $region5: #{_forward_padded.1} parent=1 // loop_body
      %s21 = ssub.s32 %s16, 1
      %s22 = ssub.s32 %s16, 2
      %s23 = sadd.s32 %s16, 1
      %s24 = ssub.s32 %s16, %s23
      %p25 = scmp.eq.s32.totalorder %s24, 0
      %s27 = sadd.s32 %s26, 1
      %s28 = scalar_select %p25, %s26, %s27
      %p31 = pneg %p25
      %p32 = scmp.eq.s32.totalorder %s16, 1
      %p33 = por %p31, %p32
      %p34 = scmp.ne.s32.totalorder %s26, %s29
      %p35 = scmp.eq.s32.totalorder %s16, 0
      %p36 = por %p34, %p35
      %p37 = scmp.ne.s32.totalorder %s26, %s29
      %p38 = scmp.eq.s32.totalorder %s21, 1
      %p39 = por %p37, %p38
      %p40 = scmp.ne.s32.totalorder %s29, %s30
      %p41 = scmp.eq.s32.totalorder %s21, 0
      %p42 = por %p40, %p41
      %p43 = scmp.ne.s32.totalorder %s29, %s30
      %p44 = scmp.eq.s32.totalorder %s22, 1
      %p45 = por %p43, %p44
      %p47 = scmp.ne.s32.totalorder %s30, %s46
      %p48 = scmp.eq.s32.totalorder %s22, 0
      %p49 = por %p47, %p48
      %s51 = sadd.s32 %s50, 1
      %p54 = scmp.eq.s32.totalorder %s16, 1
      %p55 = scmp.ne.s32.totalorder %s50, %s52
      %p56 = scmp.eq.s32.totalorder %s16, 0
      %p57 = por %p55, %p56
      %p58 = scmp.ne.s32.totalorder %s50, %s52
      %p59 = scmp.eq.s32.totalorder %s21, 1
      %p60 = por %p58, %p59
      %p61 = scmp.ne.s32.totalorder %s52, %s53
      %p62 = scmp.eq.s32.totalorder %s21, 0
      %p63 = por %p61, %p62
      %p64 = scmp.ne.s32.totalorder %s52, %s53
      %p65 = scmp.eq.s32.totalorder %s22, 1
      %p66 = por %p64, %p65
      %p68 = scmp.ne.s32.totalorder %s53, %s67
      %p69 = scmp.eq.s32.totalorder %s22, 0
      %p70 = por %p68, %p69
      %s72 = sadd.s32 %s71, 1
      %p75 = scmp.eq.s32.totalorder %s16, 1
      %p76 = scmp.ne.s32.totalorder %s71, %s73
      %p77 = scmp.eq.s32.totalorder %s16, 0
      %p78 = por %p76, %p77
      %p79 = scmp.ne.s32.totalorder %s71, %s73
      %p80 = scmp.eq.s32.totalorder %s21, 1
      %p81 = por %p79, %p80
      %p82 = scmp.ne.s32.totalorder %s73, %s74
      %p83 = scmp.eq.s32.totalorder %s21, 0
      %p84 = por %p82, %p83
      %p85 = scmp.ne.s32.totalorder %s73, %s74
      %p86 = scmp.eq.s32.totalorder %s22, 1
      %p87 = por %p85, %p86
      %p89 = scmp.ne.s32.totalorder %s74, %s88
      %p90 = scmp.eq.s32.totalorder %s22, 0
      %p91 = por %p89, %p90
      %s93 = sadd.s32 %s92, 1
      %p96 = scmp.eq.s32.totalorder %s16, 1
      %p97 = scmp.ne.s32.totalorder %s92, %s94
      %p98 = scmp.eq.s32.totalorder %s16, 0
      %p99 = por %p97, %p98
      %p100 = scmp.ne.s32.totalorder %s92, %s94
      %p101 = scmp.eq.s32.totalorder %s21, 1
      %p102 = por %p100, %p101
      %p103 = scmp.ne.s32.totalorder %s94, %s95
      %p104 = scmp.eq.s32.totalorder %s21, 0
      %p105 = por %p103, %p104
      %p106 = scmp.ne.s32.totalorder %s94, %s95
      %p107 = scmp.eq.s32.totalorder %s22, 1
      %p108 = por %p106, %p107
      %p110 = scmp.ne.s32.totalorder %s95, %s109
      %p111 = scmp.eq.s32.totalorder %s22, 0
      %p112 = por %p110, %p111
      %s114 = sadd.s32 %s113, 1
      %p117 = scmp.eq.s32.totalorder %s16, 1
      %p118 = scmp.ne.s32.totalorder %s113, %s115
      %p119 = scmp.eq.s32.totalorder %s16, 0
      %p120 = por %p118, %p119
      %p121 = scmp.ne.s32.totalorder %s113, %s115
      %p122 = scmp.eq.s32.totalorder %s21, 1
      %p123 = por %p121, %p122
      %p124 = scmp.ne.s32.totalorder %s115, %s116
      %p125 = scmp.eq.s32.totalorder %s21, 0
      %p126 = por %p124, %p125
      %p127 = scmp.ne.s32.totalorder %s115, %s116
      %p128 = scmp.eq.s32.totalorder %s22, 1
      %p129 = por %p127, %p128
      %p131 = scmp.ne.s32.totalorder %s116, %s130
      %p132 = scmp.eq.s32.totalorder %s22, 0
      %p133 = por %p131, %p132
      %s135 = sadd.s32 %s134, 1
      %p138 = scmp.eq.s32.totalorder %s16, 1
      %p139 = scmp.ne.s32.totalorder %s134, %s136
      %p140 = scmp.eq.s32.totalorder %s16, 0
      %p141 = por %p139, %p140
      %p142 = scmp.ne.s32.totalorder %s134, %s136
      %p143 = scmp.eq.s32.totalorder %s21, 1
      %p144 = por %p142, %p143
      %p145 = scmp.ne.s32.totalorder %s136, %s137
      %p146 = scmp.eq.s32.totalorder %s21, 0
      %p147 = por %p145, %p146
      %p148 = scmp.ne.s32.totalorder %s136, %s137
      %p149 = scmp.eq.s32.totalorder %s22, 1
      %p150 = por %p148, %p149
      %p152 = scmp.ne.s32.totalorder %s137, %s151
      %p153 = scmp.eq.s32.totalorder %s22, 0
      %p154 = por %p152, %p153
      %s156 = sadd.s32 %s155, 1
      %p159 = scmp.eq.s32.totalorder %s16, 1
      %p160 = scmp.ne.s32.totalorder %s155, %s157
      %p161 = scmp.eq.s32.totalorder %s16, 0
      %p162 = por %p160, %p161
      %p163 = scmp.ne.s32.totalorder %s155, %s157
      %p164 = scmp.eq.s32.totalorder %s21, 1
      %p165 = por %p163, %p164
      %p166 = scmp.ne.s32.totalorder %s157, %s158
      %p167 = scmp.eq.s32.totalorder %s21, 0
      %p168 = por %p166, %p167
      %p169 = scmp.ne.s32.totalorder %s157, %s158
      %p170 = scmp.eq.s32.totalorder %s22, 1
      %p171 = por %p169, %p170
      %p173 = scmp.ne.s32.totalorder %s158, %s172
      %p174 = scmp.eq.s32.totalorder %s22, 0
      %p175 = por %p173, %p174
      %s176 = ssub.s32 %s16, %s23
      %p177 = scmp.eq.s32.totalorder %s176, 0
      %s179 = sadd.s32 %s178, 1
      %s180 = scalar_select %p177, %s178, %s179
      %p183 = pneg %p177
      %p184 = scmp.eq.s32.totalorder %s16, 1
      %p185 = por %p183, %p184
      %p186 = scmp.ne.s32.totalorder %s178, %s181
      %p187 = scmp.eq.s32.totalorder %s16, 0
      %p188 = por %p186, %p187
      %p189 = scmp.ne.s32.totalorder %s178, %s181
      %p190 = scmp.eq.s32.totalorder %s21, 1
      %p191 = por %p189, %p190
      %p192 = scmp.ne.s32.totalorder %s181, %s182
      %p193 = scmp.eq.s32.totalorder %s21, 0
      %p194 = por %p192, %p193
      %p195 = scmp.ne.s32.totalorder %s181, %s182
      %p196 = scmp.eq.s32.totalorder %s22, 1
      %p197 = por %p195, %p196
      %p199 = scmp.ne.s32.totalorder %s182, %s198
      %p200 = scmp.eq.s32.totalorder %s22, 0
      %p201 = por %p199, %p200
      %p202 = scmp.le.s32.totalorder 1, %s16
      %p203 = scmp.lt.s32.totalorder %s16, 3
      %p204 = pnand %p202, %p203
      %p205 = pneg %p204
      // Predicated region
      $region9: #{_forward_padded.1} parent=5 // pred_check
        _
      $region10: #{_forward_padded.1} parent=5 // pred_check_branch
        %207 = sbr.rel (%p204) target = $region12
      $region11: #{_forward_padded.1} parent=5 // pred_region
        %s208 = ssub.s32 %s16, 1
        // Predicated region
        $region13: #{_forward_padded.1} parent=11 // pred_check
          %p209 = pneg %p63
        $region14: #{_forward_padded.1} parent=11 // pred_check_branch
          %211 = sbr.rel (%p209) target = $region16
        $region15: #{_forward_padded.1} parent=11 // pred_region
          _
        $region16: #{_forward_padded.1} parent=11 // pred_fallthru
          _
        // Predicated region
        $region17: #{_forward_padded.1} parent=11 // pred_check
          %p212 = pneg %p84
        $region18: #{_forward_padded.1} parent=11 // pred_check_branch
          %214 = sbr.rel (%p212) target = $region20
        $region19: #{_forward_padded.1} parent=11 // pred_region
          _
        $region20: #{_forward_padded.1} parent=11 // pred_fallthru
          _
        // Predicated region
        $region21: #{_forward_padded.1} parent=11 // pred_check
          %p215 = pneg %p105
        $region22: #{_forward_padded.1} parent=11 // pred_check_branch
          %217 = sbr.rel (%p215) target = $region24
        $region23: #{_forward_padded.1} parent=11 // pred_region
          _
        $region24: #{_forward_padded.1} parent=11 // pred_fallthru
          _
        // Predicated region
        $region25: #{_forward_padded.1} parent=11 // pred_check
          %p218 = pneg %p126
        $region26: #{_forward_padded.1} parent=11 // pred_check_branch
          %220 = sbr.rel (%p218) target = $region28
        $region27: #{_forward_padded.1} parent=11 // pred_region
          _
        $region28: #{_forward_padded.1} parent=11 // pred_fallthru
          _
        // Predicated region
        $region29: #{_forward_padded.1} parent=11 // pred_check
          %p221 = pneg %p147
        $region30: #{_forward_padded.1} parent=11 // pred_check_branch
          %223 = sbr.rel (%p221) target = $region32
        $region31: #{_forward_padded.1} parent=11 // pred_region
          _
        $region32: #{_forward_padded.1} parent=11 // pred_fallthru
          _
        // Predicated region
        $region33: #{_forward_padded.1} parent=11 // pred_check
          %p224 = pneg %p168
        $region34: #{_forward_padded.1} parent=11 // pred_check_branch
          %226 = sbr.rel (%p224) target = $region36
        $region35: #{_forward_padded.1} parent=11 // pred_region
          _
        $region36: #{_forward_padded.1} parent=11 // pred_fallthru
          _
      $region12: #{_forward_padded.1} parent=5 // pred_fallthru
        _
      %p227 = scmp.lt.s32.totalorder %s16, 2
      // Predicated region
      $region37: #{_forward_padded.1} parent=5 // pred_check
        %p228 = pneg %p227
      $region38: #{_forward_padded.1} parent=5 // pred_check_branch
        %230 = sbr.rel (%p228) target = $region40
      $region39: #{_forward_padded.1} parent=5 // pred_region
        // Predicated region
        $region41: #{_forward_padded.1} parent=39 // pred_check
          %p231 = pneg %p36
        $region42: #{_forward_padded.1} parent=39 // pred_check_branch
          %233 = sbr.rel (%p231) target = $region44
        $region43: #{_forward_padded.1} parent=39 // pred_region
          %p234 = scmp.lt.s32.totalorder %s16, 1
          %s235 = scalar_select %p234, %s16, 1
          %s236 = smul.addr %s235, 96
          %s237 = smul.addr %s236, 4
          %s238 = scalar_lea.vmem %s0, %s237
        $region44: #{_forward_padded.1} parent=39 // pred_fallthru
          _
      $region40: #{_forward_padded.1} parent=5 // pred_fallthru
        _
      %p239 = scmp.le.s32.totalorder 1, %s16
      %p240 = scmp.lt.s32.totalorder %s16, 3
      %p241 = pnand %p239, %p240
      %p242 = pneg %p241
      // Predicated region
      $region45: #{_forward_padded.1} parent=5 // pred_check
        _
      $region46: #{_forward_padded.1} parent=5 // pred_check_branch
        %244 = sbr.rel (%p241) target = $region48
      $region47: #{_forward_padded.1} parent=5 // pred_region
        %s245 = ssub.s32 %s16, 1
        %p246 = scmp.lt.s32.totalorder %s21, 1
        %s247 = scalar_select %p246, %s21, 1
        %s248 = smul.addr %s247, 96
        %s249 = smul.addr %s248, 4
        %s250 = scalar_lea.vmem %s0, %s249
        %p251 = pneg %p42
        %p252 = pneg %p39
        %p253 = pneg %p63
        %p254 = pneg %p60
        %p255 = pneg %p84
        %p256 = pneg %p81
        %p257 = pneg %p105
        %p258 = pneg %p102
        %p259 = pneg %p126
        %p260 = pneg %p123
        %p261 = pneg %p147
        %p262 = pneg %p144
        %p263 = pneg %p168
        %p264 = pneg %p165
        %p265 = pneg %p194
        %p266 = pneg %p191
        %s267 = sand.u32 %s181, 1
        %s268 = scalar_lea.sflag [#allocation3], %s267
        %s269 = sand.u32 %s181, 1
        %s270 = smul.addr %s269, 8
        %s271 = scalar_lea.vmem [#allocation2], %s270
        %p272 = scmp.lt.s32.totalorder %s21, 1
        %s273 = scalar_select %p272, %s21, 1
        %s274 = smul.addr %s273, 96
        %s275 = smul.addr %s274, 4
        %s276 = scalar_lea.vmem %s0, %s275
        %v277 = vld [vmem:[%s276] sm:$0xff]
        %v278 = vld [vmem:[%s276 + $0x8] sm:$0xf]
        %v279 = vld [vmem:[%s276 + $0xc] sm:$0xff]
        %v280 = vld [vmem:[%s276 + $0x14] sm:$0xf]
        %v281 = vld [vmem:[%s276 + $0x18] sm:$0xff]
        %v282 = vld [vmem:[%s276 + $0x20] sm:$0xf]
        %v283 = vld [vmem:[%s276 + $0x24] sm:$0xff]
        %v284 = vld [vmem:[%s276 + $0x2c] sm:$0xf]
        %v285 = vld [vmem:[%s276 + $0x30] sm:$0xff]
        %v286 = vld [vmem:[%s276 + $0x38] sm:$0xf]
        %v287 = vld [vmem:[%s276 + $0x3c] sm:$0xff]
        %v288 = vld [vmem:[%s276 + $0x44] sm:$0xf]
        %v289 = vld [vmem:[%s276 + $0x48] sm:$0xff]
        %v290 = vld [vmem:[%s276 + $0x50] sm:$0xf]
        %v291 = vld [vmem:[%s276 + $0x54] sm:$0xff]
        %v292 = vld [vmem:[%s276 + $0x5c] sm:$0xf]
        %v293 = vld [vmem:[%s276 + $0x60] sm:$0xff]
        %v294 = vld [vmem:[%s276 + $0x68] sm:$0xf]
        %v295 = vld [vmem:[%s276 + $0x6c] sm:$0xff]
        %v296 = vld [vmem:[%s276 + $0x74] sm:$0xf]
        %v297 = vld [vmem:[%s276 + $0x78] sm:$0xff]
        %v298 = vld [vmem:[%s276 + $0x80] sm:$0xf]
        %v299 = vld [vmem:[%s276 + $0x84] sm:$0xff]
        %v300 = vld [vmem:[%s276 + $0x8c] sm:$0xf]
        %v301 = vld [vmem:[%s276 + $0x90] sm:$0xff]
        %v302 = vld [vmem:[%s276 + $0x98] sm:$0xf]
        %v303 = vld [vmem:[%s276 + $0x9c] sm:$0xff]
        %v304 = vld [vmem:[%s276 + $0xa4] sm:$0xf]
        %v305 = vld [vmem:[%s276 + $0xa8] sm:$0xff]
        %v306 = vld [vmem:[%s276 + $0xb0] sm:$0xf]
        %v307 = vld [vmem:[%s276 + $0xb4] sm:$0xff]
        %v308 = vld [vmem:[%s276 + $0xbc] sm:$0xf]
        %v309 = vld [vmem:[%s276 + $0xc0] sm:$0xff]
        %v310 = vld [vmem:[%s276 + $0xc8] sm:$0xf]
        %v311 = vld [vmem:[%s276 + $0xcc] sm:$0xff]
        %v312 = vld [vmem:[%s276 + $0xd4] sm:$0xf]
        %v313 = vld [vmem:[%s276 + $0xd8] sm:$0xff]
        %v314 = vld [vmem:[%s276 + $0xe0] sm:$0xf]
        %v315 = vld [vmem:[%s276 + $0xe4] sm:$0xff]
        %v316 = vld [vmem:[%s276 + $0xec] sm:$0xf]
        %v317 = vld [vmem:[%s276 + $0xf0] sm:$0xff]
        %v318 = vld [vmem:[%s276 + $0xf8] sm:$0xf]
        %v319 = vld [vmem:[%s276 + $0xfc] sm:$0xff]
        %v320 = vld [vmem:[%s276 + $0x104] sm:$0xf]
        %v321 = vld [vmem:[%s276 + $0x108] sm:$0xff]
        %v322 = vld [vmem:[%s276 + $0x110] sm:$0xf]
        %v323 = vld [vmem:[%s276 + $0x114] sm:$0xff]
        %v324 = vld [vmem:[%s276 + $0x11c] sm:$0xf]
        %v325 = vld [vmem:[%s276 + $0x120] sm:$0xff]
        %v326 = vld [vmem:[%s276 + $0x128] sm:$0xf]
        %v327 = vld [vmem:[%s276 + $0x12c] sm:$0xff]
        %v328 = vld [vmem:[%s276 + $0x134] sm:$0xf]
        %v329 = vld [vmem:[%s276 + $0x138] sm:$0xff]
        %v330 = vld [vmem:[%s276 + $0x140] sm:$0xf]
        %v331 = vld [vmem:[%s276 + $0x144] sm:$0xff]
        %v332 = vld [vmem:[%s276 + $0x14c] sm:$0xf]
        %v333 = vld [vmem:[%s276 + $0x150] sm:$0xff]
        %v334 = vld [vmem:[%s276 + $0x158] sm:$0xf]
        %v335 = vld [vmem:[%s276 + $0x15c] sm:$0xff]
        %v336 = vld [vmem:[%s276 + $0x164] sm:$0xf]
        %v337 = vld [vmem:[%s276 + $0x168] sm:$0xff]
        %v338 = vld [vmem:[%s276 + $0x170] sm:$0xf]
        %v339 = vld [vmem:[%s276 + $0x174] sm:$0xff]
        %v340 = vld [vmem:[%s276 + $0x17c] sm:$0xf]
        %v341 = vld [vmem:[%s1] sm:$0xff]
        %v342 = vld [vmem:[%s1 + $0x8] sm:$0xff]
        %v343 = vld [vmem:[%s1 + $0x10] sm:$0xff]
        %v344 = vld [vmem:[%s1 + $0x18] sm:$0xff]
        %v345 = vld [vmem:[%s1 + $0x20] sm:$0xff]
        %v346 = vld [vmem:[%s1 + $0x28] sm:$0xff]
        %v347 = vld [vmem:[%s1 + $0x30] sm:$0xff]
        %v348 = vld [vmem:[%s1 + $0x38] sm:$0xff]
        %v349 = vld [vmem:[%s1 + $0x40] sm:$0xff]
        %v350 = vld [vmem:[%s1 + $0x48] sm:$0xff]
        %v351 = vld [vmem:[%s1 + $0x50] sm:$0xff]
        %v352 = vld [vmem:[%s1 + $0x58] sm:$0xff]
        %v353 = vld [vmem:[%s1 + $0x60] sm:$0xff]
        %v354 = vld [vmem:[%s1 + $0x68] sm:$0xff]
        %v355 = vld [vmem:[%s1 + $0x70] sm:$0xff]
        %v356 = vld [vmem:[%s1 + $0x78] sm:$0xff]
        %v357 = vld [vmem:[%s1 + $0x80] sm:$0xff]
        %v358 = vld [vmem:[%s1 + $0x88] sm:$0xff]
        %v359 = vld [vmem:[%s1 + $0x90] sm:$0xff]
        %v360 = vld [vmem:[%s1 + $0x98] sm:$0xff]
        %v361 = vld [vmem:[%s1 + $0xa0] sm:$0xff]
        %v362 = vld [vmem:[%s1 + $0xa8] sm:$0xff]
        %v363 = vld [vmem:[%s1 + $0xb0] sm:$0xff]
        %v364 = vld [vmem:[%s1 + $0xb8] sm:$0xff]
        %v365 = vld [vmem:[%s1 + $0xc0] sm:$0xff]
        %v366 = vld [vmem:[%s1 + $0xc8] sm:$0xff]
        %v367 = vld [vmem:[%s1 + $0xd0] sm:$0xff]
        %v368 = vld [vmem:[%s1 + $0xd8] sm:$0xff]
        %v369 = vld [vmem:[%s1 + $0xe0] sm:$0xff]
        %v370 = vld [vmem:[%s1 + $0xe8] sm:$0xff]
        %v371 = vld [vmem:[%s1 + $0xf0] sm:$0xff]
        %v372 = vld [vmem:[%s1 + $0xf8] sm:$0xff]
        %v373 = vld [vmem:[%s1 + $0x100] sm:$0xff]
        %v374 = vld [vmem:[%s1 + $0x108] sm:$0xff]
        %v375 = vld [vmem:[%s1 + $0x110] sm:$0xff]
        %v376 = vld [vmem:[%s1 + $0x118] sm:$0xff]
        %v377 = vld [vmem:[%s1 + $0x120] sm:$0xff]
        %v378 = vld [vmem:[%s1 + $0x128] sm:$0xff]
        %v379 = vld [vmem:[%s1 + $0x130] sm:$0xff]
        %v380 = vld [vmem:[%s1 + $0x138] sm:$0xff]
        %v381 = vld [vmem:[%s1 + $0x140] sm:$0xff]
        %v382 = vld [vmem:[%s1 + $0x148] sm:$0xff]
        %v383 = vld [vmem:[%s1 + $0x150] sm:$0xff]
        %v384 = vld [vmem:[%s1 + $0x158] sm:$0xff]
        %v385 = vld [vmem:[%s1 + $0x160] sm:$0xff]
        %v386 = vld [vmem:[%s1 + $0x168] sm:$0xff]
        %v387 = vld [vmem:[%s1 + $0x170] sm:$0xff]
        %v388 = vld [vmem:[%s1 + $0x178] sm:$0xff]
        %v389 = vld [vmem:[%s1 + $0x180] sm:$0xff]
        %v390 = vld [vmem:[%s1 + $0x188] sm:$0xff]
        %v391 = vld [vmem:[%s1 + $0x190] sm:$0xff]
        %v392 = vld [vmem:[%s1 + $0x198] sm:$0xff]
        %v393 = vld [vmem:[%s1 + $0x1a0] sm:$0xff]
        %v394 = vld [vmem:[%s1 + $0x1a8] sm:$0xff]
        %v395 = vld [vmem:[%s1 + $0x1b0] sm:$0xff]
        %v396 = vld [vmem:[%s1 + $0x1b8] sm:$0xff]
        %v397 = vld [vmem:[%s1 + $0x1c0] sm:$0xff]
        %v398 = vld [vmem:[%s1 + $0x1c8] sm:$0xff]
        %v399 = vld [vmem:[%s1 + $0x1d0] sm:$0xff]
        %v400 = vld [vmem:[%s1 + $0x1d8] sm:$0xff]
        %v401 = vld [vmem:[%s1 + $0x1e0] sm:$0xff]
        %v402 = vld [vmem:[%s1 + $0x1e8] sm:$0xff]
        %v403 = vld [vmem:[%s1 + $0x1f0] sm:$0xff]
        %v404 = vld [vmem:[%s1 + $0x1f8] sm:$0xff]
        %v405 = vld [vmem:[%s1 + $0x200] sm:$0xff]
        %v406 = vld [vmem:[%s1 + $0x208] sm:$0xff]
        %v407 = vld [vmem:[%s1 + $0x210] sm:$0xff]
        %v408 = vld [vmem:[%s1 + $0x218] sm:$0xff]
        %v409 = vld [vmem:[%s1 + $0x220] sm:$0xff]
        %v410 = vld [vmem:[%s1 + $0x228] sm:$0xff]
        %v411 = vld [vmem:[%s1 + $0x230] sm:$0xff]
        %v412 = vld [vmem:[%s1 + $0x238] sm:$0xff]
        %v413 = vld [vmem:[%s1 + $0x240] sm:$0xff]
        %v414 = vld [vmem:[%s1 + $0x248] sm:$0xff]
        %v415 = vld [vmem:[%s1 + $0x250] sm:$0xff]
        %v416 = vld [vmem:[%s1 + $0x258] sm:$0xff]
        %v417 = vld [vmem:[%s1 + $0x260] sm:$0xff]
        %v418 = vld [vmem:[%s1 + $0x268] sm:$0xff]
        %v419 = vld [vmem:[%s1 + $0x270] sm:$0xff]
        %v420 = vld [vmem:[%s1 + $0x278] sm:$0xff]
        %v421 = vld [vmem:[%s1 + $0x280] sm:$0xff]
        %v422 = vld [vmem:[%s1 + $0x288] sm:$0xff]
        %v423 = vld [vmem:[%s1 + $0x290] sm:$0xff]
        %v424 = vld [vmem:[%s1 + $0x298] sm:$0xff]
        %v425 = vld [vmem:[%s1 + $0x2a0] sm:$0xff]
        %v426 = vld [vmem:[%s1 + $0x2a8] sm:$0xff]
        %v427 = vld [vmem:[%s1 + $0x2b0] sm:$0xff]
        %v428 = vld [vmem:[%s1 + $0x2b8] sm:$0xff]
        %v429 = vld [vmem:[%s1 + $0x2c0] sm:$0xff]
        %v430 = vld [vmem:[%s1 + $0x2c8] sm:$0xff]
        %v431 = vld [vmem:[%s1 + $0x2d0] sm:$0xff]
        %v432 = vld [vmem:[%s1 + $0x2d8] sm:$0xff]
        %v433 = vld [vmem:[%s1 + $0x2e0] sm:$0xff]
        %v434 = vld [vmem:[%s1 + $0x2e8] sm:$0xff]
        %v435 = vld [vmem:[%s1 + $0x2f0] sm:$0xff]
        %v436 = vld [vmem:[%s1 + $0x2f8] sm:$0xff]
        %v501 = vunpack.c.l.b16 %v277
        %v502 = vunpack.c.h.b16 %v277
        %v503 = vunpack.c.l.b16 %v278
        %v504 = vunpack.c.l.b16 %v279
        %v505 = vunpack.c.h.b16 %v279
        %v506 = vunpack.c.l.b16 %v280
        %v507 = vunpack.c.l.b16 %v281
        %v508 = vunpack.c.h.b16 %v281
        %v509 = vunpack.c.l.b16 %v282
        %v510 = vunpack.c.l.b16 %v283
        %v511 = vunpack.c.h.b16 %v283
        %v512 = vunpack.c.l.b16 %v284
        %v513 = vunpack.c.l.b16 %v285
        %v514 = vunpack.c.h.b16 %v285
        %v515 = vunpack.c.l.b16 %v286
        %v516 = vunpack.c.l.b16 %v287
        %v517 = vunpack.c.h.b16 %v287
        %v518 = vunpack.c.l.b16 %v288
        %v519 = vunpack.c.l.b16 %v289
        %v520 = vunpack.c.h.b16 %v289
        %v521 = vunpack.c.l.b16 %v290
        %v522 = vunpack.c.l.b16 %v291
        %v523 = vunpack.c.h.b16 %v291
        %v524 = vunpack.c.l.b16 %v292
        %v525 = vunpack.c.l.b16 %v293
        %v526 = vunpack.c.h.b16 %v293
        %v527 = vunpack.c.l.b16 %v294
        %v528 = vunpack.c.l.b16 %v295
        %v529 = vunpack.c.h.b16 %v295
        %v530 = vunpack.c.l.b16 %v296
        %v531 = vunpack.c.l.b16 %v297
        %v532 = vunpack.c.h.b16 %v297
        %v533 = vunpack.c.l.b16 %v298
        %v534 = vunpack.c.l.b16 %v299
        %v535 = vunpack.c.h.b16 %v299
        %v536 = vunpack.c.l.b16 %v300
        %v537 = vunpack.c.l.b16 %v301
        %v538 = vunpack.c.h.b16 %v301
        %v539 = vunpack.c.l.b16 %v302
        %v540 = vunpack.c.l.b16 %v303
        %v541 = vunpack.c.h.b16 %v303
        %v542 = vunpack.c.l.b16 %v304
        %v543 = vunpack.c.l.b16 %v305
        %v544 = vunpack.c.h.b16 %v305
        %v545 = vunpack.c.l.b16 %v306
        %v546 = vunpack.c.l.b16 %v307
        %v547 = vunpack.c.h.b16 %v307
        %v548 = vunpack.c.l.b16 %v308
        %v549 = vunpack.c.l.b16 %v309
        %v550 = vunpack.c.h.b16 %v309
        %v551 = vunpack.c.l.b16 %v310
        %v552 = vunpack.c.l.b16 %v311
        %v553 = vunpack.c.h.b16 %v311
        %v554 = vunpack.c.l.b16 %v312
        %v555 = vunpack.c.l.b16 %v313
        %v556 = vunpack.c.h.b16 %v313
        %v557 = vunpack.c.l.b16 %v314
        %v558 = vunpack.c.l.b16 %v315
        %v559 = vunpack.c.h.b16 %v315
        %v560 = vunpack.c.l.b16 %v316
        %v561 = vunpack.c.l.b16 %v317
        %v562 = vunpack.c.h.b16 %v317
        %v563 = vunpack.c.l.b16 %v318
        %v564 = vunpack.c.l.b16 %v319
        %v565 = vunpack.c.h.b16 %v319
        %v566 = vunpack.c.l.b16 %v320
        %v567 = vunpack.c.l.b16 %v321
        %v568 = vunpack.c.h.b16 %v321
        %v569 = vunpack.c.l.b16 %v322
        %v570 = vunpack.c.l.b16 %v323
        %v571 = vunpack.c.h.b16 %v323
        %v572 = vunpack.c.l.b16 %v324
        %v573 = vunpack.c.l.b16 %v325
        %v574 = vunpack.c.h.b16 %v325
        %v575 = vunpack.c.l.b16 %v326
        %v576 = vunpack.c.l.b16 %v327
        %v577 = vunpack.c.h.b16 %v327
        %v578 = vunpack.c.l.b16 %v328
        %v579 = vunpack.c.l.b16 %v329
        %v580 = vunpack.c.h.b16 %v329
        %v581 = vunpack.c.l.b16 %v330
        %v582 = vunpack.c.l.b16 %v331
        %v583 = vunpack.c.h.b16 %v331
        %v584 = vunpack.c.l.b16 %v332
        %v585 = vunpack.c.l.b16 %v333
        %v586 = vunpack.c.h.b16 %v333
        %v587 = vunpack.c.l.b16 %v334
        %v588 = vunpack.c.l.b16 %v335
        %v589 = vunpack.c.h.b16 %v335
        %v590 = vunpack.c.l.b16 %v336
        %v591 = vunpack.c.l.b16 %v337
        %v592 = vunpack.c.h.b16 %v337
        %v593 = vunpack.c.l.b16 %v338
        %v594 = vunpack.c.l.b16 %v339
        %v595 = vunpack.c.h.b16 %v339
        %v596 = vunpack.c.l.b16 %v340
        %v597 = vpack.c.b16 %v504, %v501
        %v598 = vpack.c.b16 %v505, %v502
        %v599 = vpack.c.b16 %v506, %v503
        %v600 = vpack.c.b16 %v510, %v507
        %v601 = vpack.c.b16 %v511, %v508
        %v602 = vpack.c.b16 %v512, %v509
        %v603 = vpack.c.b16 %v516, %v513
        %v604 = vpack.c.b16 %v517, %v514
        %v605 = vpack.c.b16 %v518, %v515
        %v606 = vpack.c.b16 %v522, %v519
        %v607 = vpack.c.b16 %v523, %v520
        %v608 = vpack.c.b16 %v524, %v521
        %v609 = vpack.c.b16 %v528, %v525
        %v610 = vpack.c.b16 %v529, %v526
        %v611 = vpack.c.b16 %v530, %v527
        %v612 = vpack.c.b16 %v534, %v531
        %v613 = vpack.c.b16 %v535, %v532
        %v614 = vpack.c.b16 %v536, %v533
        %v615 = vpack.c.b16 %v540, %v537
        %v616 = vpack.c.b16 %v541, %v538
        %v617 = vpack.c.b16 %v542, %v539
        %v618 = vpack.c.b16 %v546, %v543
        %v619 = vpack.c.b16 %v547, %v544
        %v620 = vpack.c.b16 %v548, %v545
        %v621 = vpack.c.b16 %v552, %v549
        %v622 = vpack.c.b16 %v553, %v550
        %v623 = vpack.c.b16 %v554, %v551
        %v624 = vpack.c.b16 %v558, %v555
        %v625 = vpack.c.b16 %v559, %v556
        %v626 = vpack.c.b16 %v560, %v557
        %v627 = vpack.c.b16 %v564, %v561
        %v628 = vpack.c.b16 %v565, %v562
        %v629 = vpack.c.b16 %v566, %v563
        %v630 = vpack.c.b16 %v570, %v567
        %v631 = vpack.c.b16 %v571, %v568
        %v632 = vpack.c.b16 %v572, %v569
        %v633 = vpack.c.b16 %v576, %v573
        %v634 = vpack.c.b16 %v577, %v574
        %v635 = vpack.c.b16 %v578, %v575
        %v636 = vpack.c.b16 %v582, %v579
        %v637 = vpack.c.b16 %v583, %v580
        %v638 = vpack.c.b16 %v584, %v581
        %v639 = vpack.c.b16 %v588, %v585
        %v640 = vpack.c.b16 %v589, %v586
        %v641 = vpack.c.b16 %v590, %v587
        %v642 = vpack.c.b16 %v594, %v591
        %v643 = vpack.c.b16 %v595, %v592
        %v644 = vpack.c.b16 %v596, %v593
        %v789 = vunpack.c.l.b16 %v341
        %v790 = vunpack.c.h.b16 %v341
        %v791 = vunpack.c.l.b16 %v342
        %v792 = vunpack.c.h.b16 %v342
        %v793 = vunpack.c.l.b16 %v343
        %v794 = vunpack.c.h.b16 %v343
        %v795 = vunpack.c.l.b16 %v344
        %v796 = vunpack.c.h.b16 %v344
        %v797 = vunpack.c.l.b16 %v345
        %v798 = vunpack.c.h.b16 %v345
        %v799 = vunpack.c.l.b16 %v346
        %v800 = vunpack.c.h.b16 %v346
        %v801 = vunpack.c.l.b16 %v347
        %v802 = vunpack.c.h.b16 %v347
        %v803 = vunpack.c.l.b16 %v348
        %v804 = vunpack.c.h.b16 %v348
        %v805 = vunpack.c.l.b16 %v349
        %v806 = vunpack.c.h.b16 %v349
        %v807 = vunpack.c.l.b16 %v350
        %v808 = vunpack.c.h.b16 %v350
        %v809 = vunpack.c.l.b16 %v351
        %v810 = vunpack.c.h.b16 %v351
        %v811 = vunpack.c.l.b16 %v352
        %v812 = vunpack.c.h.b16 %v352
        %v813 = vunpack.c.l.b16 %v353
        %v814 = vunpack.c.h.b16 %v353
        %v815 = vunpack.c.l.b16 %v354
        %v816 = vunpack.c.h.b16 %v354
        %v817 = vunpack.c.l.b16 %v355
        %v818 = vunpack.c.h.b16 %v355
        %v819 = vunpack.c.l.b16 %v356
        %v820 = vunpack.c.h.b16 %v356
        %v821 = vunpack.c.l.b16 %v357
        %v822 = vunpack.c.h.b16 %v357
        %v823 = vunpack.c.l.b16 %v358
        %v824 = vunpack.c.h.b16 %v358
        %v825 = vunpack.c.l.b16 %v359
        %v826 = vunpack.c.h.b16 %v359
        %v827 = vunpack.c.l.b16 %v360
        %v828 = vunpack.c.h.b16 %v360
        %v829 = vunpack.c.l.b16 %v361
        %v830 = vunpack.c.h.b16 %v361
        %v831 = vunpack.c.l.b16 %v362
        %v832 = vunpack.c.h.b16 %v362
        %v833 = vunpack.c.l.b16 %v363
        %v834 = vunpack.c.h.b16 %v363
        %v835 = vunpack.c.l.b16 %v364
        %v836 = vunpack.c.h.b16 %v364
        %v837 = vunpack.c.l.b16 %v365
        %v838 = vunpack.c.h.b16 %v365
        %v839 = vunpack.c.l.b16 %v366
        %v840 = vunpack.c.h.b16 %v366
        %v841 = vunpack.c.l.b16 %v367
        %v842 = vunpack.c.h.b16 %v367
        %v843 = vunpack.c.l.b16 %v368
        %v844 = vunpack.c.h.b16 %v368
        %v845 = vunpack.c.l.b16 %v369
        %v846 = vunpack.c.h.b16 %v369
        %v847 = vunpack.c.l.b16 %v370
        %v848 = vunpack.c.h.b16 %v370
        %v849 = vunpack.c.l.b16 %v371
        %v850 = vunpack.c.h.b16 %v371
        %v851 = vunpack.c.l.b16 %v372
        %v852 = vunpack.c.h.b16 %v372
        %v853 = vunpack.c.l.b16 %v373
        %v854 = vunpack.c.h.b16 %v373
        %v855 = vunpack.c.l.b16 %v374
        %v856 = vunpack.c.h.b16 %v374
        %v857 = vunpack.c.l.b16 %v375
        %v858 = vunpack.c.h.b16 %v375
        %v859 = vunpack.c.l.b16 %v376
        %v860 = vunpack.c.h.b16 %v376
        %v861 = vunpack.c.l.b16 %v377
        %v862 = vunpack.c.h.b16 %v377
        %v863 = vunpack.c.l.b16 %v378
        %v864 = vunpack.c.h.b16 %v378
        %v865 = vunpack.c.l.b16 %v379
        %v866 = vunpack.c.h.b16 %v379
        %v867 = vunpack.c.l.b16 %v380
        %v868 = vunpack.c.h.b16 %v380
        %v869 = vunpack.c.l.b16 %v381
        %v870 = vunpack.c.h.b16 %v381
        %v871 = vunpack.c.l.b16 %v382
        %v872 = vunpack.c.h.b16 %v382
        %v873 = vunpack.c.l.b16 %v383
        %v874 = vunpack.c.h.b16 %v383
        %v875 = vunpack.c.l.b16 %v384
        %v876 = vunpack.c.h.b16 %v384
        %v877 = vunpack.c.l.b16 %v385
        %v878 = vunpack.c.h.b16 %v385
        %v879 = vunpack.c.l.b16 %v386
        %v880 = vunpack.c.h.b16 %v386
        %v881 = vunpack.c.l.b16 %v387
        %v882 = vunpack.c.h.b16 %v387
        %v883 = vunpack.c.l.b16 %v388
        %v884 = vunpack.c.h.b16 %v388
        %v885 = vunpack.c.l.b16 %v389
        %v886 = vunpack.c.h.b16 %v389
        %v887 = vunpack.c.l.b16 %v390
        %v888 = vunpack.c.h.b16 %v390
        %v889 = vunpack.c.l.b16 %v391
        %v890 = vunpack.c.h.b16 %v391
        %v891 = vunpack.c.l.b16 %v392
        %v892 = vunpack.c.h.b16 %v392
        %v893 = vunpack.c.l.b16 %v393
        %v894 = vunpack.c.h.b16 %v393
        %v895 = vunpack.c.l.b16 %v394
        %v896 = vunpack.c.h.b16 %v394
        %v897 = vunpack.c.l.b16 %v395
        %v898 = vunpack.c.h.b16 %v395
        %v899 = vunpack.c.l.b16 %v396
        %v900 = vunpack.c.h.b16 %v396
        %v901 = vunpack.c.l.b16 %v397
        %v902 = vunpack.c.h.b16 %v397
        %v903 = vunpack.c.l.b16 %v398
        %v904 = vunpack.c.h.b16 %v398
        %v905 = vunpack.c.l.b16 %v399
        %v906 = vunpack.c.h.b16 %v399
        %v907 = vunpack.c.l.b16 %v400
        %v908 = vunpack.c.h.b16 %v400
        %v909 = vunpack.c.l.b16 %v401
        %v910 = vunpack.c.h.b16 %v401
        %v911 = vunpack.c.l.b16 %v402
        %v912 = vunpack.c.h.b16 %v402
        %v913 = vunpack.c.l.b16 %v403
        %v914 = vunpack.c.h.b16 %v403
        %v915 = vunpack.c.l.b16 %v404
        %v916 = vunpack.c.h.b16 %v404
        %v917 = vunpack.c.l.b16 %v405
        %v918 = vunpack.c.h.b16 %v405
        %v919 = vunpack.c.l.b16 %v406
        %v920 = vunpack.c.h.b16 %v406
        %v921 = vunpack.c.l.b16 %v407
        %v922 = vunpack.c.h.b16 %v407
        %v923 = vunpack.c.l.b16 %v408
        %v924 = vunpack.c.h.b16 %v408
        %v925 = vunpack.c.l.b16 %v409
        %v926 = vunpack.c.h.b16 %v409
        %v927 = vunpack.c.l.b16 %v410
        %v928 = vunpack.c.h.b16 %v410
        %v929 = vunpack.c.l.b16 %v411
        %v930 = vunpack.c.h.b16 %v411
        %v931 = vunpack.c.l.b16 %v412
        %v932 = vunpack.c.h.b16 %v412
        %v933 = vunpack.c.l.b16 %v413
        %v934 = vunpack.c.h.b16 %v413
        %v935 = vunpack.c.l.b16 %v414
        %v936 = vunpack.c.h.b16 %v414
        %v937 = vunpack.c.l.b16 %v415
        %v938 = vunpack.c.h.b16 %v415
        %v939 = vunpack.c.l.b16 %v416
        %v940 = vunpack.c.h.b16 %v416
        %v941 = vunpack.c.l.b16 %v417
        %v942 = vunpack.c.h.b16 %v417
        %v943 = vunpack.c.l.b16 %v418
        %v944 = vunpack.c.h.b16 %v418
        %v945 = vunpack.c.l.b16 %v419
        %v946 = vunpack.c.h.b16 %v419
        %v947 = vunpack.c.l.b16 %v420
        %v948 = vunpack.c.h.b16 %v420
        %v949 = vunpack.c.l.b16 %v421
        %v950 = vunpack.c.h.b16 %v421
        %v951 = vunpack.c.l.b16 %v422
        %v952 = vunpack.c.h.b16 %v422
        %v953 = vunpack.c.l.b16 %v423
        %v954 = vunpack.c.h.b16 %v423
        %v955 = vunpack.c.l.b16 %v424
        %v956 = vunpack.c.h.b16 %v424
        %v957 = vunpack.c.l.b16 %v425
        %v958 = vunpack.c.h.b16 %v425
        %v959 = vunpack.c.l.b16 %v426
        %v960 = vunpack.c.h.b16 %v426
        %v961 = vunpack.c.l.b16 %v427
        %v962 = vunpack.c.h.b16 %v427
        %v963 = vunpack.c.l.b16 %v428
        %v964 = vunpack.c.h.b16 %v428
        %v965 = vunpack.c.l.b16 %v429
        %v966 = vunpack.c.h.b16 %v429
        %v967 = vunpack.c.l.b16 %v430
        %v968 = vunpack.c.h.b16 %v430
        %v969 = vunpack.c.l.b16 %v431
        %v970 = vunpack.c.h.b16 %v431
        %v971 = vunpack.c.l.b16 %v432
        %v972 = vunpack.c.h.b16 %v432
        %v973 = vunpack.c.l.b16 %v433
        %v974 = vunpack.c.h.b16 %v433
        %v975 = vunpack.c.l.b16 %v434
        %v976 = vunpack.c.h.b16 %v434
        %v977 = vunpack.c.l.b16 %v435
        %v978 = vunpack.c.h.b16 %v435
        %v979 = vunpack.c.l.b16 %v436
        %v980 = vunpack.c.h.b16 %v436
        %v981 = vpack.c.b16 %v793, %v789
        %v982 = vpack.c.b16 %v794, %v790
        %v983 = vpack.c.b16 %v795, %v791
        %v984 = vpack.c.b16 %v796, %v792
        %v985 = vpack.c.b16 %v801, %v797
        %v986 = vpack.c.b16 %v802, %v798
        %v987 = vpack.c.b16 %v803, %v799
        %v988 = vpack.c.b16 %v804, %v800
        %v989 = vpack.c.b16 %v809, %v805
        %v990 = vpack.c.b16 %v810, %v806
        %v991 = vpack.c.b16 %v811, %v807
        %v992 = vpack.c.b16 %v812, %v808
        %v993 = vpack.c.b16 %v817, %v813
        %v994 = vpack.c.b16 %v818, %v814
        %v995 = vpack.c.b16 %v819, %v815
        %v996 = vpack.c.b16 %v820, %v816
        %v997 = vpack.c.b16 %v825, %v821
        %v998 = vpack.c.b16 %v826, %v822
        %v999 = vpack.c.b16 %v827, %v823
        %v1000 = vpack.c.b16 %v828, %v824
        %v1001 = vpack.c.b16 %v833, %v829
        %v1002 = vpack.c.b16 %v834, %v830
        %v1003 = vpack.c.b16 %v835, %v831
        %v1004 = vpack.c.b16 %v836, %v832
        %v1005 = vpack.c.b16 %v841, %v837
        %v1006 = vpack.c.b16 %v842, %v838
        %v1007 = vpack.c.b16 %v843, %v839
        %v1008 = vpack.c.b16 %v844, %v840
        %v1009 = vpack.c.b16 %v849, %v845
        %v1010 = vpack.c.b16 %v850, %v846
        %v1011 = vpack.c.b16 %v851, %v847
        %v1012 = vpack.c.b16 %v852, %v848
        %v1013 = vpack.c.b16 %v857, %v853
        %v1014 = vpack.c.b16 %v858, %v854
        %v1015 = vpack.c.b16 %v859, %v855
        %v1016 = vpack.c.b16 %v860, %v856
        %v1017 = vpack.c.b16 %v865, %v861
        %v1018 = vpack.c.b16 %v866, %v862
        %v1019 = vpack.c.b16 %v867, %v863
        %v1020 = vpack.c.b16 %v868, %v864
        %v1021 = vpack.c.b16 %v873, %v869
        %v1022 = vpack.c.b16 %v874, %v870
        %v1023 = vpack.c.b16 %v875, %v871
        %v1024 = vpack.c.b16 %v876, %v872
        %v1025 = vpack.c.b16 %v881, %v877
        %v1026 = vpack.c.b16 %v882, %v878
        %v1027 = vpack.c.b16 %v883, %v879
        %v1028 = vpack.c.b16 %v884, %v880
        %v1029 = vpack.c.b16 %v889, %v885
        %v1030 = vpack.c.b16 %v890, %v886
        %v1031 = vpack.c.b16 %v891, %v887
        %v1032 = vpack.c.b16 %v892, %v888
        %v1033 = vpack.c.b16 %v897, %v893
        %v1034 = vpack.c.b16 %v898, %v894
        %v1035 = vpack.c.b16 %v899, %v895
        %v1036 = vpack.c.b16 %v900, %v896
        %v1037 = vpack.c.b16 %v905, %v901
        %v1038 = vpack.c.b16 %v906, %v902
        %v1039 = vpack.c.b16 %v907, %v903
        %v1040 = vpack.c.b16 %v908, %v904
        %v1041 = vpack.c.b16 %v913, %v909
        %v1042 = vpack.c.b16 %v914, %v910
        %v1043 = vpack.c.b16 %v915, %v911
        %v1044 = vpack.c.b16 %v916, %v912
        %v1045 = vpack.c.b16 %v921, %v917
        %v1046 = vpack.c.b16 %v922, %v918
        %v1047 = vpack.c.b16 %v923, %v919
        %v1048 = vpack.c.b16 %v924, %v920
        %v1049 = vpack.c.b16 %v929, %v925
        %v1050 = vpack.c.b16 %v930, %v926
        %v1051 = vpack.c.b16 %v931, %v927
        %v1052 = vpack.c.b16 %v932, %v928
        %v1053 = vpack.c.b16 %v937, %v933
        %v1054 = vpack.c.b16 %v938, %v934
        %v1055 = vpack.c.b16 %v939, %v935
        %v1056 = vpack.c.b16 %v940, %v936
        %v1057 = vpack.c.b16 %v945, %v941
        %v1058 = vpack.c.b16 %v946, %v942
        %v1059 = vpack.c.b16 %v947, %v943
        %v1060 = vpack.c.b16 %v948, %v944
        %v1061 = vpack.c.b16 %v953, %v949
        %v1062 = vpack.c.b16 %v954, %v950
        %v1063 = vpack.c.b16 %v955, %v951
        %v1064 = vpack.c.b16 %v956, %v952
        %v1065 = vpack.c.b16 %v961, %v957
        %v1066 = vpack.c.b16 %v962, %v958
        %v1067 = vpack.c.b16 %v963, %v959
        %v1068 = vpack.c.b16 %v964, %v960
        %v1069 = vpack.c.b16 %v969, %v965
        %v1070 = vpack.c.b16 %v970, %v966
        %v1071 = vpack.c.b16 %v971, %v967
        %v1072 = vpack.c.b16 %v972, %v968
        %v1073 = vpack.c.b16 %v977, %v973
        %v1074 = vpack.c.b16 %v978, %v974
        %v1075 = vpack.c.b16 %v979, %v975
        %v1076 = vpack.c.b16 %v980, %v976
        %1173 = vmatpush.bf16.msra.mxu0 %v1009
        %1174 = vmatpush.bf16.msra.mxu0 %v1005
        %1175 = vmatpush.bf16.msra.mxu0 %v1001
        %1176 = vmatpush.bf16.msra.mxu0 %v997
        %1177 = vmatpush.bf16.msra.mxu0 %v993
        %1178 = vmatpush.bf16.msra.mxu0 %v989
        %1179 = vmatpush.bf16.msra.mxu0 %v985
        %1180 = vmatpush.bf16.msra.mxu0 %v981
        %1181 = vmatmul.bf16.gmra.mxu0 %v597
        %v1182 = vpop.f32.mrf.mxu0
        %v1183 = vadd.f32 0.0, %v1182
        %v1184 = vpop.f32.mrf.mxu0
        %v1185 = vadd.f32 0.0, %v1184
        %1186 = vmatmul.bf16.gmra.mxu0 %v600
        %v1187 = vpop.f32.mrf.mxu0
        %v1188 = vadd.f32 0.0, %v1187
        %v1189 = vpop.f32.mrf.mxu0
        %v1190 = vadd.f32 0.0, %v1189
        %1191 = vmatmul.bf16.gmra.mxu0 %v603
        %v1192 = vpop.f32.mrf.mxu0
        %v1193 = vadd.f32 0.0, %v1192
        %v1194 = vpop.f32.mrf.mxu0
        %v1195 = vadd.f32 0.0, %v1194
        %1196 = vmatmul.bf16.gmra.mxu0 %v606
        %v1197 = vpop.f32.mrf.mxu0
        %v1198 = vadd.f32 0.0, %v1197
        %v1199 = vpop.f32.mrf.mxu0
        %v1200 = vadd.f32 0.0, %v1199
        %1201 = vmatmul.bf16.gmra.mxu0 %v609
        %v1202 = vpop.f32.mrf.mxu0
        %v1203 = vadd.f32 0.0, %v1202
        %v1204 = vpop.f32.mrf.mxu0
        %v1205 = vadd.f32 0.0, %v1204
        %1206 = vmatmul.bf16.gmra.mxu0 %v612
        %v1207 = vpop.f32.mrf.mxu0
        %v1208 = vadd.f32 0.0, %v1207
        %v1209 = vpop.f32.mrf.mxu0
        %v1210 = vadd.f32 0.0, %v1209
        %1211 = vmatmul.bf16.gmra.mxu0 %v615
        %v1212 = vpop.f32.mrf.mxu0
        %v1213 = vadd.f32 0.0, %v1212
        %v1214 = vpop.f32.mrf.mxu0
        %v1215 = vadd.f32 0.0, %v1214
        %1216 = vmatmul.bf16.gmra.mxu0 %v618
        %v1217 = vpop.f32.mrf.mxu0
        %v1218 = vadd.f32 0.0, %v1217
        %v1219 = vpop.f32.mrf.mxu0
        %v1220 = vadd.f32 0.0, %v1219
        %1221 = vmatmul.bf16.gmra.mxu0 %v621
        %v1222 = vpop.f32.mrf.mxu0
        %v1223 = vadd.f32 0.0, %v1222
        %v1224 = vpop.f32.mrf.mxu0
        %v1225 = vadd.f32 0.0, %v1224
        %1226 = vmatmul.bf16.gmra.mxu0 %v624
        %v1227 = vpop.f32.mrf.mxu0
        %v1228 = vadd.f32 0.0, %v1227
        %v1229 = vpop.f32.mrf.mxu0
        %v1230 = vadd.f32 0.0, %v1229
        %1231 = vmatmul.bf16.gmra.mxu0 %v627
        %v1232 = vpop.f32.mrf.mxu0
        %v1233 = vadd.f32 0.0, %v1232
        %v1234 = vpop.f32.mrf.mxu0
        %v1235 = vadd.f32 0.0, %v1234
        %1236 = vmatmul.bf16.gmra.mxu0 %v630
        %v1237 = vpop.f32.mrf.mxu0
        %v1238 = vadd.f32 0.0, %v1237
        %v1239 = vpop.f32.mrf.mxu0
        %v1240 = vadd.f32 0.0, %v1239
        %1241 = vmatmul.bf16.gmra.mxu0 %v633
        %v1242 = vpop.f32.mrf.mxu0
        %v1243 = vadd.f32 0.0, %v1242
        %v1244 = vpop.f32.mrf.mxu0
        %v1245 = vadd.f32 0.0, %v1244
        %1246 = vmatmul.bf16.gmra.mxu0 %v636
        %v1247 = vpop.f32.mrf.mxu0
        %v1248 = vadd.f32 0.0, %v1247
        %v1249 = vpop.f32.mrf.mxu0
        %v1250 = vadd.f32 0.0, %v1249
        %1251 = vmatmul.bf16.gmra.mxu0 %v639
        %v1252 = vpop.f32.mrf.mxu0
        %v1253 = vadd.f32 0.0, %v1252
        %v1254 = vpop.f32.mrf.mxu0
        %v1255 = vadd.f32 0.0, %v1254
        %1256 = vmatmul.bf16.gmra.mxu0 %v642
        %v1257 = vpop.f32.mrf.mxu0
        %v1258 = vadd.f32 0.0, %v1257
        %v1259 = vpop.f32.mrf.mxu0
        %v1260 = vadd.f32 0.0, %v1259
        %1261 = vdwg.mxu0
        %1262 = vmatpush.bf16.msra.mxu0 %v1041
        %1263 = vmatpush.bf16.msra.mxu0 %v1037
        %1264 = vmatpush.bf16.msra.mxu0 %v1033
        %1265 = vmatpush.bf16.msra.mxu0 %v1029
        %1266 = vmatpush.bf16.msra.mxu0 %v1025
        %1267 = vmatpush.bf16.msra.mxu0 %v1021
        %1268 = vmatpush.bf16.msra.mxu0 %v1017
        %1269 = vmatpush.bf16.msra.mxu0 %v1013
        %1270 = vmatmul.bf16.gmra.mxu0 %v598
        %v1271 = vpop.f32.mrf.mxu0
        %v1272 = vadd.f32 %v1183, %v1271
        %v1273 = vpop.f32.mrf.mxu0
        %v1274 = vadd.f32 %v1185, %v1273
        %1275 = vmatmul.bf16.gmra.mxu0 %v601
        %v1276 = vpop.f32.mrf.mxu0
        %v1277 = vadd.f32 %v1188, %v1276
        %v1278 = vpop.f32.mrf.mxu0
        %v1279 = vadd.f32 %v1190, %v1278
        %1280 = vmatmul.bf16.gmra.mxu0 %v604
        %v1281 = vpop.f32.mrf.mxu0
        %v1282 = vadd.f32 %v1193, %v1281
        %v1283 = vpop.f32.mrf.mxu0
        %v1284 = vadd.f32 %v1195, %v1283
        %1285 = vmatmul.bf16.gmra.mxu0 %v607
        %v1286 = vpop.f32.mrf.mxu0
        %v1287 = vadd.f32 %v1198, %v1286
        %v1288 = vpop.f32.mrf.mxu0
        %v1289 = vadd.f32 %v1200, %v1288
        %1290 = vmatmul.bf16.gmra.mxu0 %v610
        %v1291 = vpop.f32.mrf.mxu0
        %v1292 = vadd.f32 %v1203, %v1291
        %v1293 = vpop.f32.mrf.mxu0
        %v1294 = vadd.f32 %v1205, %v1293
        %1295 = vmatmul.bf16.gmra.mxu0 %v613
        %v1296 = vpop.f32.mrf.mxu0
        %v1297 = vadd.f32 %v1208, %v1296
        %v1298 = vpop.f32.mrf.mxu0
        %v1299 = vadd.f32 %v1210, %v1298
        %1300 = vmatmul.bf16.gmra.mxu0 %v616
        %v1301 = vpop.f32.mrf.mxu0
        %v1302 = vadd.f32 %v1213, %v1301
        %v1303 = vpop.f32.mrf.mxu0
        %v1304 = vadd.f32 %v1215, %v1303
        %1305 = vmatmul.bf16.gmra.mxu0 %v619
        %v1306 = vpop.f32.mrf.mxu0
        %v1307 = vadd.f32 %v1218, %v1306
        %v1308 = vpop.f32.mrf.mxu0
        %v1309 = vadd.f32 %v1220, %v1308
        %1310 = vmatmul.bf16.gmra.mxu0 %v622
        %v1311 = vpop.f32.mrf.mxu0
        %v1312 = vadd.f32 %v1223, %v1311
        %v1313 = vpop.f32.mrf.mxu0
        %v1314 = vadd.f32 %v1225, %v1313
        %1315 = vmatmul.bf16.gmra.mxu0 %v625
        %v1316 = vpop.f32.mrf.mxu0
        %v1317 = vadd.f32 %v1228, %v1316
        %v1318 = vpop.f32.mrf.mxu0
        %v1319 = vadd.f32 %v1230, %v1318
        %1320 = vmatmul.bf16.gmra.mxu0 %v628
        %v1321 = vpop.f32.mrf.mxu0
        %v1322 = vadd.f32 %v1233, %v1321
        %v1323 = vpop.f32.mrf.mxu0
        %v1324 = vadd.f32 %v1235, %v1323
        %1325 = vmatmul.bf16.gmra.mxu0 %v631
        %v1326 = vpop.f32.mrf.mxu0
        %v1327 = vadd.f32 %v1238, %v1326
        %v1328 = vpop.f32.mrf.mxu0
        %v1329 = vadd.f32 %v1240, %v1328
        %1330 = vmatmul.bf16.gmra.mxu0 %v634
        %v1331 = vpop.f32.mrf.mxu0
        %v1332 = vadd.f32 %v1243, %v1331
        %v1333 = vpop.f32.mrf.mxu0
        %v1334 = vadd.f32 %v1245, %v1333
        %1335 = vmatmul.bf16.gmra.mxu0 %v637
        %v1336 = vpop.f32.mrf.mxu0
        %v1337 = vadd.f32 %v1248, %v1336
        %v1338 = vpop.f32.mrf.mxu0
        %v1339 = vadd.f32 %v1250, %v1338
        %1340 = vmatmul.bf16.gmra.mxu0 %v640
        %v1341 = vpop.f32.mrf.mxu0
        %v1342 = vadd.f32 %v1253, %v1341
        %v1343 = vpop.f32.mrf.mxu0
        %v1344 = vadd.f32 %v1255, %v1343
        %1345 = vmatmul.bf16.gmra.mxu0 %v643
        %v1346 = vpop.f32.mrf.mxu0
        %v1347 = vadd.f32 %v1258, %v1346
        %v1348 = vpop.f32.mrf.mxu0
        %v1349 = vadd.f32 %v1260, %v1348
        %1350 = vdwg.mxu0
        %1351 = vmatpush.bf16.msra.mxu0 %v1073
        %1352 = vmatpush.bf16.msra.mxu0 %v1069
        %1353 = vmatpush.bf16.msra.mxu0 %v1065
        %1354 = vmatpush.bf16.msra.mxu0 %v1061
        %1355 = vmatpush.bf16.msra.mxu0 %v1057
        %1356 = vmatpush.bf16.msra.mxu0 %v1053
        %1357 = vmatpush.bf16.msra.mxu0 %v1049
        %1358 = vmatpush.bf16.msra.mxu0 %v1045
        %1359 = vmatmul.bf16.gmra.mxu0 %v599
        %v1360 = vpop.f32.mrf.mxu0
        %v1361 = vadd.f32 %v1272, %v1360
        %v1362 = vpop.f32.mrf.mxu0
        %v1363 = vadd.f32 %v1274, %v1362
        %1364 = vmatmul.bf16.gmra.mxu0 %v602
        %v1365 = vpop.f32.mrf.mxu0
        %v1366 = vadd.f32 %v1277, %v1365
        %v1367 = vpop.f32.mrf.mxu0
        %v1368 = vadd.f32 %v1279, %v1367
        %1369 = vmatmul.bf16.gmra.mxu0 %v605
        %v1370 = vpop.f32.mrf.mxu0
        %v1371 = vadd.f32 %v1282, %v1370
        %v1372 = vpop.f32.mrf.mxu0
        %v1373 = vadd.f32 %v1284, %v1372
        %1374 = vmatmul.bf16.gmra.mxu0 %v608
        %v1375 = vpop.f32.mrf.mxu0
        %v1376 = vadd.f32 %v1287, %v1375
        %v1377 = vpop.f32.mrf.mxu0
        %v1378 = vadd.f32 %v1289, %v1377
        %1379 = vmatmul.bf16.gmra.mxu0 %v611
        %v1380 = vpop.f32.mrf.mxu0
        %v1381 = vadd.f32 %v1292, %v1380
        %v1382 = vpop.f32.mrf.mxu0
        %v1383 = vadd.f32 %v1294, %v1382
        %1384 = vmatmul.bf16.gmra.mxu0 %v614
        %v1385 = vpop.f32.mrf.mxu0
        %v1386 = vadd.f32 %v1297, %v1385
        %v1387 = vpop.f32.mrf.mxu0
        %v1388 = vadd.f32 %v1299, %v1387
        %1389 = vmatmul.bf16.gmra.mxu0 %v617
        %v1390 = vpop.f32.mrf.mxu0
        %v1391 = vadd.f32 %v1302, %v1390
        %v1392 = vpop.f32.mrf.mxu0
        %v1393 = vadd.f32 %v1304, %v1392
        %1394 = vmatmul.bf16.gmra.mxu0 %v620
        %v1395 = vpop.f32.mrf.mxu0
        %v1396 = vadd.f32 %v1307, %v1395
        %v1397 = vpop.f32.mrf.mxu0
        %v1398 = vadd.f32 %v1309, %v1397
        %1399 = vmatmul.bf16.gmra.mxu0 %v623
        %v1400 = vpop.f32.mrf.mxu0
        %v1401 = vadd.f32 %v1312, %v1400
        %v1402 = vpop.f32.mrf.mxu0
        %v1403 = vadd.f32 %v1314, %v1402
        %1404 = vmatmul.bf16.gmra.mxu0 %v626
        %v1405 = vpop.f32.mrf.mxu0
        %v1406 = vadd.f32 %v1317, %v1405
        %v1407 = vpop.f32.mrf.mxu0
        %v1408 = vadd.f32 %v1319, %v1407
        %1409 = vmatmul.bf16.gmra.mxu0 %v629
        %v1410 = vpop.f32.mrf.mxu0
        %v1411 = vadd.f32 %v1322, %v1410
        %v1412 = vpop.f32.mrf.mxu0
        %v1413 = vadd.f32 %v1324, %v1412
        %1414 = vmatmul.bf16.gmra.mxu0 %v632
        %v1415 = vpop.f32.mrf.mxu0
        %v1416 = vadd.f32 %v1327, %v1415
        %v1417 = vpop.f32.mrf.mxu0
        %v1418 = vadd.f32 %v1329, %v1417
        %1419 = vmatmul.bf16.gmra.mxu0 %v635
        %v1420 = vpop.f32.mrf.mxu0
        %v1421 = vadd.f32 %v1332, %v1420
        %v1422 = vpop.f32.mrf.mxu0
        %v1423 = vadd.f32 %v1334, %v1422
        %1424 = vmatmul.bf16.gmra.mxu0 %v638
        %v1425 = vpop.f32.mrf.mxu0
        %v1426 = vadd.f32 %v1337, %v1425
        %v1427 = vpop.f32.mrf.mxu0
        %v1428 = vadd.f32 %v1339, %v1427
        %1429 = vmatmul.bf16.gmra.mxu0 %v641
        %v1430 = vpop.f32.mrf.mxu0
        %v1431 = vadd.f32 %v1342, %v1430
        %v1432 = vpop.f32.mrf.mxu0
        %v1433 = vadd.f32 %v1344, %v1432
        %1434 = vmatmul.bf16.gmra.mxu0 %v644
        %v1435 = vpop.f32.mrf.mxu0
        %v1436 = vadd.f32 %v1347, %v1435
        %v1437 = vpop.f32.mrf.mxu0
        %v1438 = vadd.f32 %v1349, %v1437
        %1439 = vdwg.mxu0
        %1440 = vmatpush.bf16.msra.mxu0 %v1010
        %1441 = vmatpush.bf16.msra.mxu0 %v1006
        %1442 = vmatpush.bf16.msra.mxu0 %v1002
        %1443 = vmatpush.bf16.msra.mxu0 %v998
        %1444 = vmatpush.bf16.msra.mxu0 %v994
        %1445 = vmatpush.bf16.msra.mxu0 %v990
        %1446 = vmatpush.bf16.msra.mxu0 %v986
        %1447 = vmatpush.bf16.msra.mxu0 %v982
        %1448 = vmatmul.bf16.gmra.mxu0 %v597
        %v1449 = vpop.f32.mrf.mxu0
        %v1450 = vadd.f32 0.0, %v1449
        %v1451 = vpop.f32.mrf.mxu0
        %v1452 = vadd.f32 0.0, %v1451
        %1453 = vmatmul.bf16.gmra.mxu0 %v600
        %v1454 = vpop.f32.mrf.mxu0
        %v1455 = vadd.f32 0.0, %v1454
        %v1456 = vpop.f32.mrf.mxu0
        %v1457 = vadd.f32 0.0, %v1456
        %1458 = vmatmul.bf16.gmra.mxu0 %v603
        %v1459 = vpop.f32.mrf.mxu0
        %v1460 = vadd.f32 0.0, %v1459
        %v1461 = vpop.f32.mrf.mxu0
        %v1462 = vadd.f32 0.0, %v1461
        %1463 = vmatmul.bf16.gmra.mxu0 %v606
        %v1464 = vpop.f32.mrf.mxu0
        %v1465 = vadd.f32 0.0, %v1464
        %v1466 = vpop.f32.mrf.mxu0
        %v1467 = vadd.f32 0.0, %v1466
        %1468 = vmatmul.bf16.gmra.mxu0 %v609
        %v1469 = vpop.f32.mrf.mxu0
        %v1470 = vadd.f32 0.0, %v1469
        %v1471 = vpop.f32.mrf.mxu0
        %v1472 = vadd.f32 0.0, %v1471
        %1473 = vmatmul.bf16.gmra.mxu0 %v612
        %v1474 = vpop.f32.mrf.mxu0
        %v1475 = vadd.f32 0.0, %v1474
        %v1476 = vpop.f32.mrf.mxu0
        %v1477 = vadd.f32 0.0, %v1476
        %1478 = vmatmul.bf16.gmra.mxu0 %v615
        %v1479 = vpop.f32.mrf.mxu0
        %v1480 = vadd.f32 0.0, %v1479
        %v1481 = vpop.f32.mrf.mxu0
        %v1482 = vadd.f32 0.0, %v1481
        %1483 = vmatmul.bf16.gmra.mxu0 %v618
        %v1484 = vpop.f32.mrf.mxu0
        %v1485 = vadd.f32 0.0, %v1484
        %v1486 = vpop.f32.mrf.mxu0
        %v1487 = vadd.f32 0.0, %v1486
        %1488 = vmatmul.bf16.gmra.mxu0 %v621
        %v1489 = vpop.f32.mrf.mxu0
        %v1490 = vadd.f32 0.0, %v1489
        %v1491 = vpop.f32.mrf.mxu0
        %v1492 = vadd.f32 0.0, %v1491
        %1493 = vmatmul.bf16.gmra.mxu0 %v624
        %v1494 = vpop.f32.mrf.mxu0
        %v1495 = vadd.f32 0.0, %v1494
        %v1496 = vpop.f32.mrf.mxu0
        %v1497 = vadd.f32 0.0, %v1496
        %1498 = vmatmul.bf16.gmra.mxu0 %v627
        %v1499 = vpop.f32.mrf.mxu0
        %v1500 = vadd.f32 0.0, %v1499
        %v1501 = vpop.f32.mrf.mxu0
        %v1502 = vadd.f32 0.0, %v1501
        %1503 = vmatmul.bf16.gmra.mxu0 %v630
        %v1504 = vpop.f32.mrf.mxu0
        %v1505 = vadd.f32 0.0, %v1504
        %v1506 = vpop.f32.mrf.mxu0
        %v1507 = vadd.f32 0.0, %v1506
        %1508 = vmatmul.bf16.gmra.mxu0 %v633
        %v1509 = vpop.f32.mrf.mxu0
        %v1510 = vadd.f32 0.0, %v1509
        %v1511 = vpop.f32.mrf.mxu0
        %v1512 = vadd.f32 0.0, %v1511
        %1513 = vmatmul.bf16.gmra.mxu0 %v636
        %v1514 = vpop.f32.mrf.mxu0
        %v1515 = vadd.f32 0.0, %v1514
        %v1516 = vpop.f32.mrf.mxu0
        %v1517 = vadd.f32 0.0, %v1516
        %1518 = vmatmul.bf16.gmra.mxu0 %v639
        %v1519 = vpop.f32.mrf.mxu0
        %v1520 = vadd.f32 0.0, %v1519
        %v1521 = vpop.f32.mrf.mxu0
        %v1522 = vadd.f32 0.0, %v1521
        %1523 = vmatmul.bf16.gmra.mxu0 %v642
        %v1524 = vpop.f32.mrf.mxu0
        %v1525 = vadd.f32 0.0, %v1524
        %v1526 = vpop.f32.mrf.mxu0
        %v1527 = vadd.f32 0.0, %v1526
        %1528 = vdwg.mxu0
        %1529 = vmatpush.bf16.msra.mxu0 %v1042
        %1530 = vmatpush.bf16.msra.mxu0 %v1038
        %1531 = vmatpush.bf16.msra.mxu0 %v1034
        %1532 = vmatpush.bf16.msra.mxu0 %v1030
        %1533 = vmatpush.bf16.msra.mxu0 %v1026
        %1534 = vmatpush.bf16.msra.mxu0 %v1022
        %1535 = vmatpush.bf16.msra.mxu0 %v1018
        %1536 = vmatpush.bf16.msra.mxu0 %v1014
        %1537 = vmatmul.bf16.gmra.mxu0 %v598
        %v1538 = vpop.f32.mrf.mxu0
        %v1539 = vadd.f32 %v1450, %v1538
        %v1540 = vpop.f32.mrf.mxu0
        %v1541 = vadd.f32 %v1452, %v1540
        %1542 = vmatmul.bf16.gmra.mxu0 %v601
        %v1543 = vpop.f32.mrf.mxu0
        %v1544 = vadd.f32 %v1455, %v1543
        %v1545 = vpop.f32.mrf.mxu0
        %v1546 = vadd.f32 %v1457, %v1545
        %1547 = vmatmul.bf16.gmra.mxu0 %v604
        %v1548 = vpop.f32.mrf.mxu0
        %v1549 = vadd.f32 %v1460, %v1548
        %v1550 = vpop.f32.mrf.mxu0
        %v1551 = vadd.f32 %v1462, %v1550
        %1552 = vmatmul.bf16.gmra.mxu0 %v607
        %v1553 = vpop.f32.mrf.mxu0
        %v1554 = vadd.f32 %v1465, %v1553
        %v1555 = vpop.f32.mrf.mxu0
        %v1556 = vadd.f32 %v1467, %v1555
        %1557 = vmatmul.bf16.gmra.mxu0 %v610
        %v1558 = vpop.f32.mrf.mxu0
        %v1559 = vadd.f32 %v1470, %v1558
        %v1560 = vpop.f32.mrf.mxu0
        %v1561 = vadd.f32 %v1472, %v1560
        %1562 = vmatmul.bf16.gmra.mxu0 %v613
        %v1563 = vpop.f32.mrf.mxu0
        %v1564 = vadd.f32 %v1475, %v1563
        %v1565 = vpop.f32.mrf.mxu0
        %v1566 = vadd.f32 %v1477, %v1565
        %1567 = vmatmul.bf16.gmra.mxu0 %v616
        %v1568 = vpop.f32.mrf.mxu0
        %v1569 = vadd.f32 %v1480, %v1568
        %v1570 = vpop.f32.mrf.mxu0
        %v1571 = vadd.f32 %v1482, %v1570
        %1572 = vmatmul.bf16.gmra.mxu0 %v619
        %v1573 = vpop.f32.mrf.mxu0
        %v1574 = vadd.f32 %v1485, %v1573
        %v1575 = vpop.f32.mrf.mxu0
        %v1576 = vadd.f32 %v1487, %v1575
        %1577 = vmatmul.bf16.gmra.mxu0 %v622
        %v1578 = vpop.f32.mrf.mxu0
        %v1579 = vadd.f32 %v1490, %v1578
        %v1580 = vpop.f32.mrf.mxu0
        %v1581 = vadd.f32 %v1492, %v1580
        %1582 = vmatmul.bf16.gmra.mxu0 %v625
        %v1583 = vpop.f32.mrf.mxu0
        %v1584 = vadd.f32 %v1495, %v1583
        %v1585 = vpop.f32.mrf.mxu0
        %v1586 = vadd.f32 %v1497, %v1585
        %1587 = vmatmul.bf16.gmra.mxu0 %v628
        %v1588 = vpop.f32.mrf.mxu0
        %v1589 = vadd.f32 %v1500, %v1588
        %v1590 = vpop.f32.mrf.mxu0
        %v1591 = vadd.f32 %v1502, %v1590
        %1592 = vmatmul.bf16.gmra.mxu0 %v631
        %v1593 = vpop.f32.mrf.mxu0
        %v1594 = vadd.f32 %v1505, %v1593
        %v1595 = vpop.f32.mrf.mxu0
        %v1596 = vadd.f32 %v1507, %v1595
        %1597 = vmatmul.bf16.gmra.mxu0 %v634
        %v1598 = vpop.f32.mrf.mxu0
        %v1599 = vadd.f32 %v1510, %v1598
        %v1600 = vpop.f32.mrf.mxu0
        %v1601 = vadd.f32 %v1512, %v1600
        %1602 = vmatmul.bf16.gmra.mxu0 %v637
        %v1603 = vpop.f32.mrf.mxu0
        %v1604 = vadd.f32 %v1515, %v1603
        %v1605 = vpop.f32.mrf.mxu0
        %v1606 = vadd.f32 %v1517, %v1605
        %1607 = vmatmul.bf16.gmra.mxu0 %v640
        %v1608 = vpop.f32.mrf.mxu0
        %v1609 = vadd.f32 %v1520, %v1608
        %v1610 = vpop.f32.mrf.mxu0
        %v1611 = vadd.f32 %v1522, %v1610
        %1612 = vmatmul.bf16.gmra.mxu0 %v643
        %v1613 = vpop.f32.mrf.mxu0
        %v1614 = vadd.f32 %v1525, %v1613
        %v1615 = vpop.f32.mrf.mxu0
        %v1616 = vadd.f32 %v1527, %v1615
        %1617 = vdwg.mxu0
        %1618 = vmatpush.bf16.msra.mxu0 %v1074
        %1619 = vmatpush.bf16.msra.mxu0 %v1070
        %1620 = vmatpush.bf16.msra.mxu0 %v1066
        %1621 = vmatpush.bf16.msra.mxu0 %v1062
        %1622 = vmatpush.bf16.msra.mxu0 %v1058
        %1623 = vmatpush.bf16.msra.mxu0 %v1054
        %1624 = vmatpush.bf16.msra.mxu0 %v1050
        %1625 = vmatpush.bf16.msra.mxu0 %v1046
        %1626 = vmatmul.bf16.gmra.mxu0 %v599
        %v1627 = vpop.f32.mrf.mxu0
        %v1628 = vadd.f32 %v1539, %v1627
        %v1629 = vpop.f32.mrf.mxu0
        %v1630 = vadd.f32 %v1541, %v1629
        %1631 = vmatmul.bf16.gmra.mxu0 %v602
        %v1632 = vpop.f32.mrf.mxu0
        %v1633 = vadd.f32 %v1544, %v1632
        %v1634 = vpop.f32.mrf.mxu0
        %v1635 = vadd.f32 %v1546, %v1634
        %1636 = vmatmul.bf16.gmra.mxu0 %v605
        %v1637 = vpop.f32.mrf.mxu0
        %v1638 = vadd.f32 %v1549, %v1637
        %v1639 = vpop.f32.mrf.mxu0
        %v1640 = vadd.f32 %v1551, %v1639
        %1641 = vmatmul.bf16.gmra.mxu0 %v608
        %v1642 = vpop.f32.mrf.mxu0
        %v1643 = vadd.f32 %v1554, %v1642
        %v1644 = vpop.f32.mrf.mxu0
        %v1645 = vadd.f32 %v1556, %v1644
        %1646 = vmatmul.bf16.gmra.mxu0 %v611
        %v1647 = vpop.f32.mrf.mxu0
        %v1648 = vadd.f32 %v1559, %v1647
        %v1649 = vpop.f32.mrf.mxu0
        %v1650 = vadd.f32 %v1561, %v1649
        %1651 = vmatmul.bf16.gmra.mxu0 %v614
        %v1652 = vpop.f32.mrf.mxu0
        %v1653 = vadd.f32 %v1564, %v1652
        %v1654 = vpop.f32.mrf.mxu0
        %v1655 = vadd.f32 %v1566, %v1654
        %1656 = vmatmul.bf16.gmra.mxu0 %v617
        %v1657 = vpop.f32.mrf.mxu0
        %v1658 = vadd.f32 %v1569, %v1657
        %v1659 = vpop.f32.mrf.mxu0
        %v1660 = vadd.f32 %v1571, %v1659
        %1661 = vmatmul.bf16.gmra.mxu0 %v620
        %v1662 = vpop.f32.mrf.mxu0
        %v1663 = vadd.f32 %v1574, %v1662
        %v1664 = vpop.f32.mrf.mxu0
        %v1665 = vadd.f32 %v1576, %v1664
        %1666 = vmatmul.bf16.gmra.mxu0 %v623
        %v1667 = vpop.f32.mrf.mxu0
        %v1668 = vadd.f32 %v1579, %v1667
        %v1669 = vpop.f32.mrf.mxu0
        %v1670 = vadd.f32 %v1581, %v1669
        %1671 = vmatmul.bf16.gmra.mxu0 %v626
        %v1672 = vpop.f32.mrf.mxu0
        %v1673 = vadd.f32 %v1584, %v1672
        %v1674 = vpop.f32.mrf.mxu0
        %v1675 = vadd.f32 %v1586, %v1674
        %1676 = vmatmul.bf16.gmra.mxu0 %v629
        %v1677 = vpop.f32.mrf.mxu0
        %v1678 = vadd.f32 %v1589, %v1677
        %v1679 = vpop.f32.mrf.mxu0
        %v1680 = vadd.f32 %v1591, %v1679
        %1681 = vmatmul.bf16.gmra.mxu0 %v632
        %v1682 = vpop.f32.mrf.mxu0
        %v1683 = vadd.f32 %v1594, %v1682
        %v1684 = vpop.f32.mrf.mxu0
        %v1685 = vadd.f32 %v1596, %v1684
        %1686 = vmatmul.bf16.gmra.mxu0 %v635
        %v1687 = vpop.f32.mrf.mxu0
        %v1688 = vadd.f32 %v1599, %v1687
        %v1689 = vpop.f32.mrf.mxu0
        %v1690 = vadd.f32 %v1601, %v1689
        %1691 = vmatmul.bf16.gmra.mxu0 %v638
        %v1692 = vpop.f32.mrf.mxu0
        %v1693 = vadd.f32 %v1604, %v1692
        %v1694 = vpop.f32.mrf.mxu0
        %v1695 = vadd.f32 %v1606, %v1694
        %1696 = vmatmul.bf16.gmra.mxu0 %v641
        %v1697 = vpop.f32.mrf.mxu0
        %v1698 = vadd.f32 %v1609, %v1697
        %v1699 = vpop.f32.mrf.mxu0
        %v1700 = vadd.f32 %v1611, %v1699
        %1701 = vmatmul.bf16.gmra.mxu0 %v644
        %v1702 = vpop.f32.mrf.mxu0
        %v1703 = vadd.f32 %v1614, %v1702
        %v1704 = vpop.f32.mrf.mxu0
        %v1705 = vadd.f32 %v1616, %v1704
        %1706 = vdwg.mxu0
        %1707 = vmatpush.bf16.msra.mxu0 %v1011
        %1708 = vmatpush.bf16.msra.mxu0 %v1007
        %1709 = vmatpush.bf16.msra.mxu0 %v1003
        %1710 = vmatpush.bf16.msra.mxu0 %v999
        %1711 = vmatpush.bf16.msra.mxu0 %v995
        %1712 = vmatpush.bf16.msra.mxu0 %v991
        %1713 = vmatpush.bf16.msra.mxu0 %v987
        %1714 = vmatpush.bf16.msra.mxu0 %v983
        %1715 = vmatmul.bf16.gmra.mxu0 %v597
        %v1716 = vpop.f32.mrf.mxu0
        %v1717 = vadd.f32 0.0, %v1716
        %v1718 = vpop.f32.mrf.mxu0
        %v1719 = vadd.f32 0.0, %v1718
        %1720 = vmatmul.bf16.gmra.mxu0 %v600
        %v1721 = vpop.f32.mrf.mxu0
        %v1722 = vadd.f32 0.0, %v1721
        %v1723 = vpop.f32.mrf.mxu0
        %v1724 = vadd.f32 0.0, %v1723
        %1725 = vmatmul.bf16.gmra.mxu0 %v603
        %v1726 = vpop.f32.mrf.mxu0
        %v1727 = vadd.f32 0.0, %v1726
        %v1728 = vpop.f32.mrf.mxu0
        %v1729 = vadd.f32 0.0, %v1728
        %1730 = vmatmul.bf16.gmra.mxu0 %v606
        %v1731 = vpop.f32.mrf.mxu0
        %v1732 = vadd.f32 0.0, %v1731
        %v1733 = vpop.f32.mrf.mxu0
        %v1734 = vadd.f32 0.0, %v1733
        %1735 = vmatmul.bf16.gmra.mxu0 %v609
        %v1736 = vpop.f32.mrf.mxu0
        %v1737 = vadd.f32 0.0, %v1736
        %v1738 = vpop.f32.mrf.mxu0
        %v1739 = vadd.f32 0.0, %v1738
        %1740 = vmatmul.bf16.gmra.mxu0 %v612
        %v1741 = vpop.f32.mrf.mxu0
        %v1742 = vadd.f32 0.0, %v1741
        %v1743 = vpop.f32.mrf.mxu0
        %v1744 = vadd.f32 0.0, %v1743
        %1745 = vmatmul.bf16.gmra.mxu0 %v615
        %v1746 = vpop.f32.mrf.mxu0
        %v1747 = vadd.f32 0.0, %v1746
        %v1748 = vpop.f32.mrf.mxu0
        %v1749 = vadd.f32 0.0, %v1748
        %1750 = vmatmul.bf16.gmra.mxu0 %v618
        %v1751 = vpop.f32.mrf.mxu0
        %v1752 = vadd.f32 0.0, %v1751
        %v1753 = vpop.f32.mrf.mxu0
        %v1754 = vadd.f32 0.0, %v1753
        %1755 = vmatmul.bf16.gmra.mxu0 %v621
        %v1756 = vpop.f32.mrf.mxu0
        %v1757 = vadd.f32 0.0, %v1756
        %v1758 = vpop.f32.mrf.mxu0
        %v1759 = vadd.f32 0.0, %v1758
        %1760 = vmatmul.bf16.gmra.mxu0 %v624
        %v1761 = vpop.f32.mrf.mxu0
        %v1762 = vadd.f32 0.0, %v1761
        %v1763 = vpop.f32.mrf.mxu0
        %v1764 = vadd.f32 0.0, %v1763
        %1765 = vmatmul.bf16.gmra.mxu0 %v627
        %v1766 = vpop.f32.mrf.mxu0
        %v1767 = vadd.f32 0.0, %v1766
        %v1768 = vpop.f32.mrf.mxu0
        %v1769 = vadd.f32 0.0, %v1768
        %1770 = vmatmul.bf16.gmra.mxu0 %v630
        %v1771 = vpop.f32.mrf.mxu0
        %v1772 = vadd.f32 0.0, %v1771
        %v1773 = vpop.f32.mrf.mxu0
        %v1774 = vadd.f32 0.0, %v1773
        %1775 = vmatmul.bf16.gmra.mxu0 %v633
        %v1776 = vpop.f32.mrf.mxu0
        %v1777 = vadd.f32 0.0, %v1776
        %v1778 = vpop.f32.mrf.mxu0
        %v1779 = vadd.f32 0.0, %v1778
        %1780 = vmatmul.bf16.gmra.mxu0 %v636
        %v1781 = vpop.f32.mrf.mxu0
        %v1782 = vadd.f32 0.0, %v1781
        %v1783 = vpop.f32.mrf.mxu0
        %v1784 = vadd.f32 0.0, %v1783
        %1785 = vmatmul.bf16.gmra.mxu0 %v639
        %v1786 = vpop.f32.mrf.mxu0
        %v1787 = vadd.f32 0.0, %v1786
        %v1788 = vpop.f32.mrf.mxu0
        %v1789 = vadd.f32 0.0, %v1788
        %1790 = vmatmul.bf16.gmra.mxu0 %v642
        %v1791 = vpop.f32.mrf.mxu0
        %v1792 = vadd.f32 0.0, %v1791
        %v1793 = vpop.f32.mrf.mxu0
        %v1794 = vadd.f32 0.0, %v1793
        %1795 = vdwg.mxu0
        %1796 = vmatpush.bf16.msra.mxu0 %v1043
        %1797 = vmatpush.bf16.msra.mxu0 %v1039
        %1798 = vmatpush.bf16.msra.mxu0 %v1035
        %1799 = vmatpush.bf16.msra.mxu0 %v1031
        %1800 = vmatpush.bf16.msra.mxu0 %v1027
        %1801 = vmatpush.bf16.msra.mxu0 %v1023
        %1802 = vmatpush.bf16.msra.mxu0 %v1019
        %1803 = vmatpush.bf16.msra.mxu0 %v1015
        %1804 = vmatmul.bf16.gmra.mxu0 %v598
        %v1805 = vpop.f32.mrf.mxu0
        %v1806 = vadd.f32 %v1717, %v1805
        %v1807 = vpop.f32.mrf.mxu0
        %v1808 = vadd.f32 %v1719, %v1807
        %1809 = vmatmul.bf16.gmra.mxu0 %v601
        %v1810 = vpop.f32.mrf.mxu0
        %v1811 = vadd.f32 %v1722, %v1810
        %v1812 = vpop.f32.mrf.mxu0
        %v1813 = vadd.f32 %v1724, %v1812
        %1814 = vmatmul.bf16.gmra.mxu0 %v604
        %v1815 = vpop.f32.mrf.mxu0
        %v1816 = vadd.f32 %v1727, %v1815
        %v1817 = vpop.f32.mrf.mxu0
        %v1818 = vadd.f32 %v1729, %v1817
        %1819 = vmatmul.bf16.gmra.mxu0 %v607
        %v1820 = vpop.f32.mrf.mxu0
        %v1821 = vadd.f32 %v1732, %v1820
        %v1822 = vpop.f32.mrf.mxu0
        %v1823 = vadd.f32 %v1734, %v1822
        %1824 = vmatmul.bf16.gmra.mxu0 %v610
        %v1825 = vpop.f32.mrf.mxu0
        %v1826 = vadd.f32 %v1737, %v1825
        %v1827 = vpop.f32.mrf.mxu0
        %v1828 = vadd.f32 %v1739, %v1827
        %1829 = vmatmul.bf16.gmra.mxu0 %v613
        %v1830 = vpop.f32.mrf.mxu0
        %v1831 = vadd.f32 %v1742, %v1830
        %v1832 = vpop.f32.mrf.mxu0
        %v1833 = vadd.f32 %v1744, %v1832
        %1834 = vmatmul.bf16.gmra.mxu0 %v616
        %v1835 = vpop.f32.mrf.mxu0
        %v1836 = vadd.f32 %v1747, %v1835
        %v1837 = vpop.f32.mrf.mxu0
        %v1838 = vadd.f32 %v1749, %v1837
        %1839 = vmatmul.bf16.gmra.mxu0 %v619
        %v1840 = vpop.f32.mrf.mxu0
        %v1841 = vadd.f32 %v1752, %v1840
        %v1842 = vpop.f32.mrf.mxu0
        %v1843 = vadd.f32 %v1754, %v1842
        %1844 = vmatmul.bf16.gmra.mxu0 %v622
        %v1845 = vpop.f32.mrf.mxu0
        %v1846 = vadd.f32 %v1757, %v1845
        %v1847 = vpop.f32.mrf.mxu0
        %v1848 = vadd.f32 %v1759, %v1847
        %1849 = vmatmul.bf16.gmra.mxu0 %v625
        %v1850 = vpop.f32.mrf.mxu0
        %v1851 = vadd.f32 %v1762, %v1850
        %v1852 = vpop.f32.mrf.mxu0
        %v1853 = vadd.f32 %v1764, %v1852
        %1854 = vmatmul.bf16.gmra.mxu0 %v628
        %v1855 = vpop.f32.mrf.mxu0
        %v1856 = vadd.f32 %v1767, %v1855
        %v1857 = vpop.f32.mrf.mxu0
        %v1858 = vadd.f32 %v1769, %v1857
        %1859 = vmatmul.bf16.gmra.mxu0 %v631
        %v1860 = vpop.f32.mrf.mxu0
        %v1861 = vadd.f32 %v1772, %v1860
        %v1862 = vpop.f32.mrf.mxu0
        %v1863 = vadd.f32 %v1774, %v1862
        %1864 = vmatmul.bf16.gmra.mxu0 %v634
        %v1865 = vpop.f32.mrf.mxu0
        %v1866 = vadd.f32 %v1777, %v1865
        %v1867 = vpop.f32.mrf.mxu0
        %v1868 = vadd.f32 %v1779, %v1867
        %1869 = vmatmul.bf16.gmra.mxu0 %v637
        %v1870 = vpop.f32.mrf.mxu0
        %v1871 = vadd.f32 %v1782, %v1870
        %v1872 = vpop.f32.mrf.mxu0
        %v1873 = vadd.f32 %v1784, %v1872
        %1874 = vmatmul.bf16.gmra.mxu0 %v640
        %v1875 = vpop.f32.mrf.mxu0
        %v1876 = vadd.f32 %v1787, %v1875
        %v1877 = vpop.f32.mrf.mxu0
        %v1878 = vadd.f32 %v1789, %v1877
        %1879 = vmatmul.bf16.gmra.mxu0 %v643
        %v1880 = vpop.f32.mrf.mxu0
        %v1881 = vadd.f32 %v1792, %v1880
        %v1882 = vpop.f32.mrf.mxu0
        %v1883 = vadd.f32 %v1794, %v1882
        %1884 = vdwg.mxu0
        %1885 = vmatpush.bf16.msra.mxu0 %v1075
        %1886 = vmatpush.bf16.msra.mxu0 %v1071
        %1887 = vmatpush.bf16.msra.mxu0 %v1067
        %1888 = vmatpush.bf16.msra.mxu0 %v1063
        %1889 = vmatpush.bf16.msra.mxu0 %v1059
        %1890 = vmatpush.bf16.msra.mxu0 %v1055
        %1891 = vmatpush.bf16.msra.mxu0 %v1051
        %1892 = vmatpush.bf16.msra.mxu0 %v1047
        %1893 = vmatmul.bf16.gmra.mxu0 %v599
        %v1894 = vpop.f32.mrf.mxu0
        %v1895 = vadd.f32 %v1806, %v1894
        %v1896 = vpop.f32.mrf.mxu0
        %v1897 = vadd.f32 %v1808, %v1896
        %1898 = vmatmul.bf16.gmra.mxu0 %v602
        %v1899 = vpop.f32.mrf.mxu0
        %v1900 = vadd.f32 %v1811, %v1899
        %v1901 = vpop.f32.mrf.mxu0
        %v1902 = vadd.f32 %v1813, %v1901
        %1903 = vmatmul.bf16.gmra.mxu0 %v605
        %v1904 = vpop.f32.mrf.mxu0
        %v1905 = vadd.f32 %v1816, %v1904
        %v1906 = vpop.f32.mrf.mxu0
        %v1907 = vadd.f32 %v1818, %v1906
        %1908 = vmatmul.bf16.gmra.mxu0 %v608
        %v1909 = vpop.f32.mrf.mxu0
        %v1910 = vadd.f32 %v1821, %v1909
        %v1911 = vpop.f32.mrf.mxu0
        %v1912 = vadd.f32 %v1823, %v1911
        %1913 = vmatmul.bf16.gmra.mxu0 %v611
        %v1914 = vpop.f32.mrf.mxu0
        %v1915 = vadd.f32 %v1826, %v1914
        %v1916 = vpop.f32.mrf.mxu0
        %v1917 = vadd.f32 %v1828, %v1916
        %1918 = vmatmul.bf16.gmra.mxu0 %v614
        %v1919 = vpop.f32.mrf.mxu0
        %v1920 = vadd.f32 %v1831, %v1919
        %v1921 = vpop.f32.mrf.mxu0
        %v1922 = vadd.f32 %v1833, %v1921
        %1923 = vmatmul.bf16.gmra.mxu0 %v617
        %v1924 = vpop.f32.mrf.mxu0
        %v1925 = vadd.f32 %v1836, %v1924
        %v1926 = vpop.f32.mrf.mxu0
        %v1927 = vadd.f32 %v1838, %v1926
        %1928 = vmatmul.bf16.gmra.mxu0 %v620
        %v1929 = vpop.f32.mrf.mxu0
        %v1930 = vadd.f32 %v1841, %v1929
        %v1931 = vpop.f32.mrf.mxu0
        %v1932 = vadd.f32 %v1843, %v1931
        %1933 = vmatmul.bf16.gmra.mxu0 %v623
        %v1934 = vpop.f32.mrf.mxu0
        %v1935 = vadd.f32 %v1846, %v1934
        %v1936 = vpop.f32.mrf.mxu0
        %v1937 = vadd.f32 %v1848, %v1936
        %1938 = vmatmul.bf16.gmra.mxu0 %v626
        %v1939 = vpop.f32.mrf.mxu0
        %v1940 = vadd.f32 %v1851, %v1939
        %v1941 = vpop.f32.mrf.mxu0
        %v1942 = vadd.f32 %v1853, %v1941
        %1943 = vmatmul.bf16.gmra.mxu0 %v629
        %v1944 = vpop.f32.mrf.mxu0
        %v1945 = vadd.f32 %v1856, %v1944
        %v1946 = vpop.f32.mrf.mxu0
        %v1947 = vadd.f32 %v1858, %v1946
        %1948 = vmatmul.bf16.gmra.mxu0 %v632
        %v1949 = vpop.f32.mrf.mxu0
        %v1950 = vadd.f32 %v1861, %v1949
        %v1951 = vpop.f32.mrf.mxu0
        %v1952 = vadd.f32 %v1863, %v1951
        %1953 = vmatmul.bf16.gmra.mxu0 %v635
        %v1954 = vpop.f32.mrf.mxu0
        %v1955 = vadd.f32 %v1866, %v1954
        %v1956 = vpop.f32.mrf.mxu0
        %v1957 = vadd.f32 %v1868, %v1956
        %1958 = vmatmul.bf16.gmra.mxu0 %v638
        %v1959 = vpop.f32.mrf.mxu0
        %v1960 = vadd.f32 %v1871, %v1959
        %v1961 = vpop.f32.mrf.mxu0
        %v1962 = vadd.f32 %v1873, %v1961
        %1963 = vmatmul.bf16.gmra.mxu0 %v641
        %v1964 = vpop.f32.mrf.mxu0
        %v1965 = vadd.f32 %v1876, %v1964
        %v1966 = vpop.f32.mrf.mxu0
        %v1967 = vadd.f32 %v1878, %v1966
        %1968 = vmatmul.bf16.gmra.mxu0 %v644
        %v1969 = vpop.f32.mrf.mxu0
        %v1970 = vadd.f32 %v1881, %v1969
        %v1971 = vpop.f32.mrf.mxu0
        %v1972 = vadd.f32 %v1883, %v1971
        %1973 = vdwg.mxu0
        %1974 = vmatpush.bf16.msra.mxu0 %v1012
        %1975 = vmatpush.bf16.msra.mxu0 %v1008
        %1976 = vmatpush.bf16.msra.mxu0 %v1004
        %1977 = vmatpush.bf16.msra.mxu0 %v1000
        %1978 = vmatpush.bf16.msra.mxu0 %v996
        %1979 = vmatpush.bf16.msra.mxu0 %v992
        %1980 = vmatpush.bf16.msra.mxu0 %v988
        %1981 = vmatpush.bf16.msra.mxu0 %v984
        %1982 = vmatmul.bf16.gmra.mxu0 %v597
        %v1983 = vpop.f32.mrf.mxu0
        %v1984 = vadd.f32 0.0, %v1983
        %v1985 = vpop.f32.mrf.mxu0
        %v1986 = vadd.f32 0.0, %v1985
        %1987 = vmatmul.bf16.gmra.mxu0 %v600
        %v1988 = vpop.f32.mrf.mxu0
        %v1989 = vadd.f32 0.0, %v1988
        %v1990 = vpop.f32.mrf.mxu0
        %v1991 = vadd.f32 0.0, %v1990
        %1992 = vmatmul.bf16.gmra.mxu0 %v603
        %v1993 = vpop.f32.mrf.mxu0
        %v1994 = vadd.f32 0.0, %v1993
        %v1995 = vpop.f32.mrf.mxu0
        %v1996 = vadd.f32 0.0, %v1995
        %1997 = vmatmul.bf16.gmra.mxu0 %v606
        %v1998 = vpop.f32.mrf.mxu0
        %v1999 = vadd.f32 0.0, %v1998
        %v2000 = vpop.f32.mrf.mxu0
        %v2001 = vadd.f32 0.0, %v2000
        %2002 = vmatmul.bf16.gmra.mxu0 %v609
        %v2003 = vpop.f32.mrf.mxu0
        %v2004 = vadd.f32 0.0, %v2003
        %v2005 = vpop.f32.mrf.mxu0
        %v2006 = vadd.f32 0.0, %v2005
        %2007 = vmatmul.bf16.gmra.mxu0 %v612
        %v2008 = vpop.f32.mrf.mxu0
        %v2009 = vadd.f32 0.0, %v2008
        %v2010 = vpop.f32.mrf.mxu0
        %v2011 = vadd.f32 0.0, %v2010
        %2012 = vmatmul.bf16.gmra.mxu0 %v615
        %v2013 = vpop.f32.mrf.mxu0
        %v2014 = vadd.f32 0.0, %v2013
        %v2015 = vpop.f32.mrf.mxu0
        %v2016 = vadd.f32 0.0, %v2015
        %2017 = vmatmul.bf16.gmra.mxu0 %v618
        %v2018 = vpop.f32.mrf.mxu0
        %v2019 = vadd.f32 0.0, %v2018
        %v2020 = vpop.f32.mrf.mxu0
        %v2021 = vadd.f32 0.0, %v2020
        %2022 = vmatmul.bf16.gmra.mxu0 %v621
        %v2023 = vpop.f32.mrf.mxu0
        %v2024 = vadd.f32 0.0, %v2023
        %v2025 = vpop.f32.mrf.mxu0
        %v2026 = vadd.f32 0.0, %v2025
        %2027 = vmatmul.bf16.gmra.mxu0 %v624
        %v2028 = vpop.f32.mrf.mxu0
        %v2029 = vadd.f32 0.0, %v2028
        %v2030 = vpop.f32.mrf.mxu0
        %v2031 = vadd.f32 0.0, %v2030
        %2032 = vmatmul.bf16.gmra.mxu0 %v627
        %v2033 = vpop.f32.mrf.mxu0
        %v2034 = vadd.f32 0.0, %v2033
        %v2035 = vpop.f32.mrf.mxu0
        %v2036 = vadd.f32 0.0, %v2035
        %2037 = vmatmul.bf16.gmra.mxu0 %v630
        %v2038 = vpop.f32.mrf.mxu0
        %v2039 = vadd.f32 0.0, %v2038
        %v2040 = vpop.f32.mrf.mxu0
        %v2041 = vadd.f32 0.0, %v2040
        %2042 = vmatmul.bf16.gmra.mxu0 %v633
        %v2043 = vpop.f32.mrf.mxu0
        %v2044 = vadd.f32 0.0, %v2043
        %v2045 = vpop.f32.mrf.mxu0
        %v2046 = vadd.f32 0.0, %v2045
        %2047 = vmatmul.bf16.gmra.mxu0 %v636
        %v2048 = vpop.f32.mrf.mxu0
        %v2049 = vadd.f32 0.0, %v2048
        %v2050 = vpop.f32.mrf.mxu0
        %v2051 = vadd.f32 0.0, %v2050
        %2052 = vmatmul.bf16.gmra.mxu0 %v639
        %v2053 = vpop.f32.mrf.mxu0
        %v2054 = vadd.f32 0.0, %v2053
        %v2055 = vpop.f32.mrf.mxu0
        %v2056 = vadd.f32 0.0, %v2055
        %2057 = vmatmul.bf16.gmra.mxu0 %v642
        %v2058 = vpop.f32.mrf.mxu0
        %v2059 = vadd.f32 0.0, %v2058
        %v2060 = vpop.f32.mrf.mxu0
        %v2061 = vadd.f32 0.0, %v2060
        %2062 = vdwg.mxu0
        %2063 = vmatpush.bf16.msra.mxu0 %v1044
        %2064 = vmatpush.bf16.msra.mxu0 %v1040
        %2065 = vmatpush.bf16.msra.mxu0 %v1036
        %2066 = vmatpush.bf16.msra.mxu0 %v1032
        %2067 = vmatpush.bf16.msra.mxu0 %v1028
        %2068 = vmatpush.bf16.msra.mxu0 %v1024
        %2069 = vmatpush.bf16.msra.mxu0 %v1020
        %2070 = vmatpush.bf16.msra.mxu0 %v1016
        %2071 = vmatmul.bf16.gmra.mxu0 %v598
        %v2072 = vpop.f32.mrf.mxu0
        %v2073 = vadd.f32 %v1984, %v2072
        %v2074 = vpop.f32.mrf.mxu0
        %v2075 = vadd.f32 %v1986, %v2074
        %2076 = vmatmul.bf16.gmra.mxu0 %v601
        %v2077 = vpop.f32.mrf.mxu0
        %v2078 = vadd.f32 %v1989, %v2077
        %v2079 = vpop.f32.mrf.mxu0
        %v2080 = vadd.f32 %v1991, %v2079
        %2081 = vmatmul.bf16.gmra.mxu0 %v604
        %v2082 = vpop.f32.mrf.mxu0
        %v2083 = vadd.f32 %v1994, %v2082
        %v2084 = vpop.f32.mrf.mxu0
        %v2085 = vadd.f32 %v1996, %v2084
        %2086 = vmatmul.bf16.gmra.mxu0 %v607
        %v2087 = vpop.f32.mrf.mxu0
        %v2088 = vadd.f32 %v1999, %v2087
        %v2089 = vpop.f32.mrf.mxu0
        %v2090 = vadd.f32 %v2001, %v2089
        %2091 = vmatmul.bf16.gmra.mxu0 %v610
        %v2092 = vpop.f32.mrf.mxu0
        %v2093 = vadd.f32 %v2004, %v2092
        %v2094 = vpop.f32.mrf.mxu0
        %v2095 = vadd.f32 %v2006, %v2094
        %2096 = vmatmul.bf16.gmra.mxu0 %v613
        %v2097 = vpop.f32.mrf.mxu0
        %v2098 = vadd.f32 %v2009, %v2097
        %v2099 = vpop.f32.mrf.mxu0
        %v2100 = vadd.f32 %v2011, %v2099
        %2101 = vmatmul.bf16.gmra.mxu0 %v616
        %v2102 = vpop.f32.mrf.mxu0
        %v2103 = vadd.f32 %v2014, %v2102
        %v2104 = vpop.f32.mrf.mxu0
        %v2105 = vadd.f32 %v2016, %v2104
        %2106 = vmatmul.bf16.gmra.mxu0 %v619
        %v2107 = vpop.f32.mrf.mxu0
        %v2108 = vadd.f32 %v2019, %v2107
        %v2109 = vpop.f32.mrf.mxu0
        %v2110 = vadd.f32 %v2021, %v2109
        %2111 = vmatmul.bf16.gmra.mxu0 %v622
        %v2112 = vpop.f32.mrf.mxu0
        %v2113 = vadd.f32 %v2024, %v2112
        %v2114 = vpop.f32.mrf.mxu0
        %v2115 = vadd.f32 %v2026, %v2114
        %2116 = vmatmul.bf16.gmra.mxu0 %v625
        %v2117 = vpop.f32.mrf.mxu0
        %v2118 = vadd.f32 %v2029, %v2117
        %v2119 = vpop.f32.mrf.mxu0
        %v2120 = vadd.f32 %v2031, %v2119
        %2121 = vmatmul.bf16.gmra.mxu0 %v628
        %v2122 = vpop.f32.mrf.mxu0
        %v2123 = vadd.f32 %v2034, %v2122
        %v2124 = vpop.f32.mrf.mxu0
        %v2125 = vadd.f32 %v2036, %v2124
        %2126 = vmatmul.bf16.gmra.mxu0 %v631
        %v2127 = vpop.f32.mrf.mxu0
        %v2128 = vadd.f32 %v2039, %v2127
        %v2129 = vpop.f32.mrf.mxu0
        %v2130 = vadd.f32 %v2041, %v2129
        %2131 = vmatmul.bf16.gmra.mxu0 %v634
        %v2132 = vpop.f32.mrf.mxu0
        %v2133 = vadd.f32 %v2044, %v2132
        %v2134 = vpop.f32.mrf.mxu0
        %v2135 = vadd.f32 %v2046, %v2134
        %2136 = vmatmul.bf16.gmra.mxu0 %v637
        %v2137 = vpop.f32.mrf.mxu0
        %v2138 = vadd.f32 %v2049, %v2137
        %v2139 = vpop.f32.mrf.mxu0
        %v2140 = vadd.f32 %v2051, %v2139
        %2141 = vmatmul.bf16.gmra.mxu0 %v640
        %v2142 = vpop.f32.mrf.mxu0
        %v2143 = vadd.f32 %v2054, %v2142
        %v2144 = vpop.f32.mrf.mxu0
        %v2145 = vadd.f32 %v2056, %v2144
        %2146 = vmatmul.bf16.gmra.mxu0 %v643
        %v2147 = vpop.f32.mrf.mxu0
        %v2148 = vadd.f32 %v2059, %v2147
        %v2149 = vpop.f32.mrf.mxu0
        %v2150 = vadd.f32 %v2061, %v2149
        %2151 = vdwg.mxu0
        %2152 = vmatpush.bf16.msra.mxu0 %v1076
        %2153 = vmatpush.bf16.msra.mxu0 %v1072
        %2154 = vmatpush.bf16.msra.mxu0 %v1068
        %2155 = vmatpush.bf16.msra.mxu0 %v1064
        %2156 = vmatpush.bf16.msra.mxu0 %v1060
        %2157 = vmatpush.bf16.msra.mxu0 %v1056
        %2158 = vmatpush.bf16.msra.mxu0 %v1052
        %2159 = vmatpush.bf16.msra.mxu0 %v1048
        %2160 = vmatmul.bf16.gmra.mxu0 %v599
        %v2161 = vpop.f32.mrf.mxu0
        %v2162 = vadd.f32 %v2073, %v2161
        %v2163 = vpop.f32.mrf.mxu0
        %v2164 = vadd.f32 %v2075, %v2163
        %2165 = vmatmul.bf16.gmra.mxu0 %v602
        %v2166 = vpop.f32.mrf.mxu0
        %v2167 = vadd.f32 %v2078, %v2166
        %v2168 = vpop.f32.mrf.mxu0
        %v2169 = vadd.f32 %v2080, %v2168
        %2170 = vmatmul.bf16.gmra.mxu0 %v605
        %v2171 = vpop.f32.mrf.mxu0
        %v2172 = vadd.f32 %v2083, %v2171
        %v2173 = vpop.f32.mrf.mxu0
        %v2174 = vadd.f32 %v2085, %v2173
        %2175 = vmatmul.bf16.gmra.mxu0 %v608
        %v2176 = vpop.f32.mrf.mxu0
        %v2177 = vadd.f32 %v2088, %v2176
        %v2178 = vpop.f32.mrf.mxu0
        %v2179 = vadd.f32 %v2090, %v2178
        %2180 = vmatmul.bf16.gmra.mxu0 %v611
        %v2181 = vpop.f32.mrf.mxu0
        %v2182 = vadd.f32 %v2093, %v2181
        %v2183 = vpop.f32.mrf.mxu0
        %v2184 = vadd.f32 %v2095, %v2183
        %2185 = vmatmul.bf16.gmra.mxu0 %v614
        %v2186 = vpop.f32.mrf.mxu0
        %v2187 = vadd.f32 %v2098, %v2186
        %v2188 = vpop.f32.mrf.mxu0
        %v2189 = vadd.f32 %v2100, %v2188
        %2190 = vmatmul.bf16.gmra.mxu0 %v617
        %v2191 = vpop.f32.mrf.mxu0
        %v2192 = vadd.f32 %v2103, %v2191
        %v2193 = vpop.f32.mrf.mxu0
        %v2194 = vadd.f32 %v2105, %v2193
        %2195 = vmatmul.bf16.gmra.mxu0 %v620
        %v2196 = vpop.f32.mrf.mxu0
        %v2197 = vadd.f32 %v2108, %v2196
        %v2198 = vpop.f32.mrf.mxu0
        %v2199 = vadd.f32 %v2110, %v2198
        %2200 = vmatmul.bf16.gmra.mxu0 %v623
        %v2201 = vpop.f32.mrf.mxu0
        %v2202 = vadd.f32 %v2113, %v2201
        %v2203 = vpop.f32.mrf.mxu0
        %v2204 = vadd.f32 %v2115, %v2203
        %2205 = vmatmul.bf16.gmra.mxu0 %v626
        %v2206 = vpop.f32.mrf.mxu0
        %v2207 = vadd.f32 %v2118, %v2206
        %v2208 = vpop.f32.mrf.mxu0
        %v2209 = vadd.f32 %v2120, %v2208
        %2210 = vmatmul.bf16.gmra.mxu0 %v629
        %v2211 = vpop.f32.mrf.mxu0
        %v2212 = vadd.f32 %v2123, %v2211
        %v2213 = vpop.f32.mrf.mxu0
        %v2214 = vadd.f32 %v2125, %v2213
        %2215 = vmatmul.bf16.gmra.mxu0 %v632
        %v2216 = vpop.f32.mrf.mxu0
        %v2217 = vadd.f32 %v2128, %v2216
        %v2218 = vpop.f32.mrf.mxu0
        %v2219 = vadd.f32 %v2130, %v2218
        %2220 = vmatmul.bf16.gmra.mxu0 %v635
        %v2221 = vpop.f32.mrf.mxu0
        %v2222 = vadd.f32 %v2133, %v2221
        %v2223 = vpop.f32.mrf.mxu0
        %v2224 = vadd.f32 %v2135, %v2223
        %2225 = vmatmul.bf16.gmra.mxu0 %v638
        %v2226 = vpop.f32.mrf.mxu0
        %v2227 = vadd.f32 %v2138, %v2226
        %v2228 = vpop.f32.mrf.mxu0
        %v2229 = vadd.f32 %v2140, %v2228
        %2230 = vmatmul.bf16.gmra.mxu0 %v641
        %v2231 = vpop.f32.mrf.mxu0
        %v2232 = vadd.f32 %v2143, %v2231
        %v2233 = vpop.f32.mrf.mxu0
        %v2234 = vadd.f32 %v2145, %v2233
        %2235 = vmatmul.bf16.gmra.mxu0 %v644
        %v2236 = vpop.f32.mrf.mxu0
        %v2237 = vadd.f32 %v2148, %v2236
        %v2238 = vpop.f32.mrf.mxu0
        %v2239 = vadd.f32 %v2150, %v2238
        %2240 = vdwg.mxu0
        %v2241 = vmax.f32 %v1361, %v1401
        %v2242 = vmax.f32 %v1628, %v1668
        %v2243 = vmax.f32 %v1895, %v1935
        %v2244 = vmax.f32 %v2162, %v2202
        %v2245 = vmax.f32 %v1363, %v1403
        %v2246 = vmax.f32 %v1630, %v1670
        %v2247 = vmax.f32 %v1897, %v1937
        %v2248 = vmax.f32 %v2164, %v2204
        %v2249 = vmax.f32 %v1366, %v1406
        %v2250 = vmax.f32 %v1633, %v1673
        %v2251 = vmax.f32 %v1900, %v1940
        %v2252 = vmax.f32 %v2167, %v2207
        %v2253 = vmax.f32 %v1368, %v1408
        %v2254 = vmax.f32 %v1635, %v1675
        %v2255 = vmax.f32 %v1902, %v1942
        %v2256 = vmax.f32 %v2169, %v2209
        %v2257 = vmax.f32 %v1371, %v1411
        %v2258 = vmax.f32 %v1638, %v1678
        %v2259 = vmax.f32 %v1905, %v1945
        %v2260 = vmax.f32 %v2172, %v2212
        %v2261 = vmax.f32 %v1373, %v1413
        %v2262 = vmax.f32 %v1640, %v1680
        %v2263 = vmax.f32 %v1907, %v1947
        %v2264 = vmax.f32 %v2174, %v2214
        %v2265 = vmax.f32 %v1376, %v1416
        %v2266 = vmax.f32 %v1643, %v1683
        %v2267 = vmax.f32 %v1910, %v1950
        %v2268 = vmax.f32 %v2177, %v2217
        %v2269 = vmax.f32 %v1378, %v1418
        %v2270 = vmax.f32 %v1645, %v1685
        %v2271 = vmax.f32 %v1912, %v1952
        %v2272 = vmax.f32 %v2179, %v2219
        %v2273 = vmax.f32 %v1381, %v1421
        %v2274 = vmax.f32 %v1648, %v1688
        %v2275 = vmax.f32 %v1915, %v1955
        %v2276 = vmax.f32 %v2182, %v2222
        %v2277 = vmax.f32 %v1383, %v1423
        %v2278 = vmax.f32 %v1650, %v1690
        %v2279 = vmax.f32 %v1917, %v1957
        %v2280 = vmax.f32 %v2184, %v2224
        %v2281 = vmax.f32 %v1386, %v1426
        %v2282 = vmax.f32 %v1653, %v1693
        %v2283 = vmax.f32 %v1920, %v1960
        %v2284 = vmax.f32 %v2187, %v2227
        %v2285 = vmax.f32 %v1388, %v1428
        %v2286 = vmax.f32 %v1655, %v1695
        %v2287 = vmax.f32 %v1922, %v1962
        %v2288 = vmax.f32 %v2189, %v2229
        %v2289 = vmax.f32 %v1391, %v1431
        %v2290 = vmax.f32 %v1658, %v1698
        %v2291 = vmax.f32 %v1925, %v1965
        %v2292 = vmax.f32 %v2192, %v2232
        %v2293 = vmax.f32 %v1393, %v1433
        %v2294 = vmax.f32 %v1660, %v1700
        %v2295 = vmax.f32 %v1927, %v1967
        %v2296 = vmax.f32 %v2194, %v2234
        %v2297 = vmax.f32 %v1396, %v1436
        %v2298 = vmax.f32 %v1663, %v1703
        %v2299 = vmax.f32 %v1930, %v1970
        %v2300 = vmax.f32 %v2197, %v2237
        %v2301 = vmax.f32 %v1398, %v1438
        %v2302 = vmax.f32 %v1665, %v1705
        %v2303 = vmax.f32 %v1932, %v1972
        %v2304 = vmax.f32 %v2199, %v2239
        %v2305 = vmax.f32 %v2241, %v2243
        %v2306 = vmax.f32 %v2242, %v2244
        %v2307 = vmax.f32 %v2245, %v2247
        %v2308 = vmax.f32 %v2246, %v2248
        %v2309 = vmax.f32 %v2249, %v2251
        %v2310 = vmax.f32 %v2250, %v2252
        %v2311 = vmax.f32 %v2253, %v2255
        %v2312 = vmax.f32 %v2254, %v2256
        %v2313 = vmax.f32 %v2257, %v2259
        %v2314 = vmax.f32 %v2258, %v2260
        %v2315 = vmax.f32 %v2261, %v2263
        %v2316 = vmax.f32 %v2262, %v2264
        %v2317 = vmax.f32 %v2265, %v2267
        %v2318 = vmax.f32 %v2266, %v2268
        %v2319 = vmax.f32 %v2269, %v2271
        %v2320 = vmax.f32 %v2270, %v2272
        %v2321 = vmax.f32 %v2273, %v2275
        %v2322 = vmax.f32 %v2274, %v2276
        %v2323 = vmax.f32 %v2277, %v2279
        %v2324 = vmax.f32 %v2278, %v2280
        %v2325 = vmax.f32 %v2281, %v2283
        %v2326 = vmax.f32 %v2282, %v2284
        %v2327 = vmax.f32 %v2285, %v2287
        %v2328 = vmax.f32 %v2286, %v2288
        %v2329 = vmax.f32 %v2289, %v2291
        %v2330 = vmax.f32 %v2290, %v2292
        %v2331 = vmax.f32 %v2293, %v2295
        %v2332 = vmax.f32 %v2294, %v2296
        %v2333 = vmax.f32 %v2297, %v2299
        %v2334 = vmax.f32 %v2298, %v2300
        %v2335 = vmax.f32 %v2301, %v2303
        %v2336 = vmax.f32 %v2302, %v2304
        %v2337 = vld [vmem:[%s2] sm:$0x3]
        %v2339 = vperm.slane %v2337, 0
        %v2340 = vperm.slane %v2337, 1
        %v2343 = vadd.f32 %v2305, %v2339
        %v2344 = vadd.f32 %v2306, %v2340
        %v2345 = vadd.f32 %v2307, %v2339
        %v2346 = vadd.f32 %v2308, %v2340
        %v2347 = vadd.f32 %v2309, %v2339
        %v2348 = vadd.f32 %v2310, %v2340
        %v2349 = vadd.f32 %v2311, %v2339
        %v2350 = vadd.f32 %v2312, %v2340
        %v2351 = vadd.f32 %v2313, %v2339
        %v2352 = vadd.f32 %v2314, %v2340
        %v2353 = vadd.f32 %v2315, %v2339
        %v2354 = vadd.f32 %v2316, %v2340
        %v2355 = vadd.f32 %v2317, %v2339
        %v2356 = vadd.f32 %v2318, %v2340
        %v2357 = vadd.f32 %v2319, %v2339
        %v2358 = vadd.f32 %v2320, %v2340
        %v2359 = vadd.f32 %v2321, %v2339
        %v2360 = vadd.f32 %v2322, %v2340
        %v2361 = vadd.f32 %v2323, %v2339
        %v2362 = vadd.f32 %v2324, %v2340
        %v2363 = vadd.f32 %v2325, %v2339
        %v2364 = vadd.f32 %v2326, %v2340
        %v2365 = vadd.f32 %v2327, %v2339
        %v2366 = vadd.f32 %v2328, %v2340
        %v2367 = vadd.f32 %v2329, %v2339
        %v2368 = vadd.f32 %v2330, %v2340
        %v2369 = vadd.f32 %v2331, %v2339
        %v2370 = vadd.f32 %v2332, %v2340
        %v2371 = vadd.f32 %v2333, %v2339
        %v2372 = vadd.f32 %v2334, %v2340
        %v2373 = vadd.f32 %v2335, %v2339
        %v2374 = vadd.f32 %v2336, %v2340
        %v2375 = vmax.f32 %v2343, 0.0
        %v2376 = vmax.f32 %v2344, 0.0
        %v2377 = vmax.f32 %v2345, 0.0
        %v2378 = vmax.f32 %v2346, 0.0
        %v2379 = vmax.f32 %v2347, 0.0
        %v2380 = vmax.f32 %v2348, 0.0
        %v2381 = vmax.f32 %v2349, 0.0
        %v2382 = vmax.f32 %v2350, 0.0
        %v2383 = vmax.f32 %v2351, 0.0
        %v2384 = vmax.f32 %v2352, 0.0
        %v2385 = vmax.f32 %v2353, 0.0
        %v2386 = vmax.f32 %v2354, 0.0
        %v2387 = vmax.f32 %v2355, 0.0
        %v2388 = vmax.f32 %v2356, 0.0
        %v2389 = vmax.f32 %v2357, 0.0
        %v2390 = vmax.f32 %v2358, 0.0
        %v2391 = vmax.f32 %v2359, 0.0
        %v2392 = vmax.f32 %v2360, 0.0
        %v2393 = vmax.f32 %v2361, 0.0
        %v2394 = vmax.f32 %v2362, 0.0
        %v2395 = vmax.f32 %v2363, 0.0
        %v2396 = vmax.f32 %v2364, 0.0
        %v2397 = vmax.f32 %v2365, 0.0
        %v2398 = vmax.f32 %v2366, 0.0
        %v2399 = vmax.f32 %v2367, 0.0
        %v2400 = vmax.f32 %v2368, 0.0
        %v2401 = vmax.f32 %v2369, 0.0
        %v2402 = vmax.f32 %v2370, 0.0
        %v2403 = vmax.f32 %v2371, 0.0
        %v2404 = vmax.f32 %v2372, 0.0
        %v2405 = vmax.f32 %v2373, 0.0
        %v2406 = vmax.f32 %v2374, 0.0
        %v2407 = vpack.c.bf16 %v2375, 0.0
        %v2408 = vpack.c.bf16 %v2376, 0.0
        %v2409 = vpack.c.bf16 %v2377, %v2375
        %v2410 = vpack.c.bf16 %v2378, %v2376
        %v2411 = vpack.c.bf16 %v2379, %v2377
        %v2412 = vpack.c.bf16 %v2380, %v2378
        %v2413 = vpack.c.bf16 %v2381, %v2379
        %v2414 = vpack.c.bf16 %v2382, %v2380
        %v2415 = vpack.c.bf16 %v2383, %v2381
        %v2416 = vpack.c.bf16 %v2384, %v2382
        %v2417 = vpack.c.bf16 %v2385, %v2383
        %v2418 = vpack.c.bf16 %v2386, %v2384
        %v2419 = vpack.c.bf16 %v2387, %v2385
        %v2420 = vpack.c.bf16 %v2388, %v2386
        %v2421 = vpack.c.bf16 %v2389, %v2387
        %v2422 = vpack.c.bf16 %v2390, %v2388
        %v2423 = vpack.c.bf16 %v2391, %v2389
        %v2424 = vpack.c.bf16 %v2392, %v2390
        %v2425 = vpack.c.bf16 %v2393, %v2391
        %v2426 = vpack.c.bf16 %v2394, %v2392
        %v2427 = vpack.c.bf16 %v2395, %v2393
        %v2428 = vpack.c.bf16 %v2396, %v2394
        %v2429 = vpack.c.bf16 %v2397, %v2395
        %v2430 = vpack.c.bf16 %v2398, %v2396
        %v2431 = vpack.c.bf16 %v2399, %v2397
        %v2432 = vpack.c.bf16 %v2400, %v2398
        %v2433 = vpack.c.bf16 %v2401, %v2399
        %v2434 = vpack.c.bf16 %v2402, %v2400
        %v2435 = vpack.c.bf16 %v2403, %v2401
        %v2436 = vpack.c.bf16 %v2404, %v2402
        %v2437 = vpack.c.bf16 %v2405, %v2403
        %v2438 = vpack.c.bf16 %v2406, %v2404
        %v2439 = vpack.c.bf16 0.0, %v2405
        %v2440 = vpack.c.bf16 0.0, %v2406
        %v2441 = vld [vmem:[%s3] sm:$0xff]
        %v2442 = vld [vmem:[%s3 + $0x8] sm:$0xff]
        %v2443 = vld [vmem:[%s3 + $0x10] sm:$0xff]
        %v2444 = vld [vmem:[%s3 + $0x18] sm:$0xff]
        %v2445 = vld [vmem:[%s3 + $0x20] sm:$0xff]
        %v2446 = vld [vmem:[%s3 + $0x28] sm:$0xff]
        %v2447 = vld [vmem:[%s3 + $0x30] sm:$0xff]
        %v2448 = vld [vmem:[%s3 + $0x38] sm:$0xff]
        %v2449 = vld [vmem:[%s3 + $0x40] sm:$0xff]
        %v2450 = vld [vmem:[%s3 + $0x48] sm:$0xff]
        %v2451 = vld [vmem:[%s3 + $0x50] sm:$0xff]
        %v2452 = vld [vmem:[%s3 + $0x58] sm:$0xff]
        %v2453 = vld [vmem:[%s3 + $0x60] sm:$0xff]
        %v2454 = vld [vmem:[%s3 + $0x68] sm:$0xff]
        %v2455 = vld [vmem:[%s3 + $0x70] sm:$0xff]
        %v2456 = vld [vmem:[%s3 + $0x78] sm:$0xff]
        %v2457 = vld [vmem:[%s3 + $0x80] sm:$0xff]
        %v2458 = vld [vmem:[%s3 + $0x88] sm:$0xff]
        %v2459 = vld [vmem:[%s3 + $0x90] sm:$0xff]
        %v2460 = vld [vmem:[%s3 + $0x98] sm:$0xff]
        %v2461 = vld [vmem:[%s3 + $0xa0] sm:$0xff]
        %v2462 = vld [vmem:[%s3 + $0xa8] sm:$0xff]
        %v2463 = vld [vmem:[%s3 + $0xb0] sm:$0xff]
        %v2464 = vld [vmem:[%s3 + $0xb8] sm:$0xff]
        %v2465 = vld [vmem:[%s3 + $0xc0] sm:$0xff]
        %v2466 = vld [vmem:[%s3 + $0xc8] sm:$0xff]
        %v2467 = vld [vmem:[%s3 + $0xd0] sm:$0xff]
        %v2468 = vld [vmem:[%s3 + $0xd8] sm:$0xff]
        %v2469 = vld [vmem:[%s3 + $0xe0] sm:$0xff]
        %v2470 = vld [vmem:[%s3 + $0xe8] sm:$0xff]
        %v2471 = vld [vmem:[%s3 + $0xf0] sm:$0xff]
        %v2472 = vld [vmem:[%s3 + $0xf8] sm:$0xff]
        %v2473 = vld [vmem:[%s3 + $0x100] sm:$0xff]
        %v2474 = vld [vmem:[%s3 + $0x108] sm:$0xff]
        %v2475 = vld [vmem:[%s3 + $0x110] sm:$0xff]
        %v2476 = vld [vmem:[%s3 + $0x118] sm:$0xff]
        %v2477 = vld [vmem:[%s3 + $0x120] sm:$0xff]
        %v2478 = vld [vmem:[%s3 + $0x128] sm:$0xff]
        %v2479 = vld [vmem:[%s3 + $0x130] sm:$0xff]
        %v2480 = vld [vmem:[%s3 + $0x138] sm:$0xff]
        %v2481 = vld [vmem:[%s3 + $0x140] sm:$0xff]
        %v2482 = vld [vmem:[%s3 + $0x148] sm:$0xff]
        %v2483 = vld [vmem:[%s3 + $0x150] sm:$0xff]
        %v2484 = vld [vmem:[%s3 + $0x158] sm:$0xff]
        %v2485 = vld [vmem:[%s3 + $0x160] sm:$0xff]
        %v2486 = vld [vmem:[%s3 + $0x168] sm:$0xff]
        %v2487 = vld [vmem:[%s3 + $0x170] sm:$0xff]
        %v2488 = vld [vmem:[%s3 + $0x178] sm:$0xff]
        %v2489 = vld [vmem:[%s3 + $0x180] sm:$0xff]
        %v2490 = vld [vmem:[%s3 + $0x188] sm:$0xff]
        %v2491 = vld [vmem:[%s3 + $0x190] sm:$0xff]
        %v2492 = vld [vmem:[%s3 + $0x198] sm:$0xff]
        %v2493 = vld [vmem:[%s3 + $0x1a0] sm:$0xff]
        %v2494 = vld [vmem:[%s3 + $0x1a8] sm:$0xff]
        %v2495 = vld [vmem:[%s3 + $0x1b0] sm:$0xff]
        %v2496 = vld [vmem:[%s3 + $0x1b8] sm:$0xff]
        %v2497 = vld [vmem:[%s3 + $0x1c0] sm:$0xff]
        %v2498 = vld [vmem:[%s3 + $0x1c8] sm:$0xff]
        %v2499 = vld [vmem:[%s3 + $0x1d0] sm:$0xff]
        %v2500 = vld [vmem:[%s3 + $0x1d8] sm:$0xff]
        %v2501 = vld [vmem:[%s3 + $0x1e0] sm:$0xff]
        %v2502 = vld [vmem:[%s3 + $0x1e8] sm:$0xff]
        %v2503 = vld [vmem:[%s3 + $0x1f0] sm:$0xff]
        %v2504 = vld [vmem:[%s3 + $0x1f8] sm:$0xff]
        %v2505 = vld [vmem:[%s3 + $0x200] sm:$0xff]
        %v2506 = vld [vmem:[%s3 + $0x208] sm:$0xff]
        %v2507 = vld [vmem:[%s3 + $0x210] sm:$0xff]
        %v2508 = vld [vmem:[%s3 + $0x218] sm:$0xff]
        %v2509 = vld [vmem:[%s3 + $0x220] sm:$0xff]
        %v2510 = vld [vmem:[%s3 + $0x228] sm:$0xff]
        %v2511 = vld [vmem:[%s3 + $0x230] sm:$0xff]
        %v2512 = vld [vmem:[%s3 + $0x238] sm:$0xff]
        %v2513 = vld [vmem:[%s3 + $0x240] sm:$0xff]
        %v2514 = vld [vmem:[%s3 + $0x248] sm:$0xff]
        %v2515 = vld [vmem:[%s3 + $0x250] sm:$0xff]
        %v2516 = vld [vmem:[%s3 + $0x258] sm:$0xff]
        %v2517 = vld [vmem:[%s3 + $0x260] sm:$0xff]
        %v2518 = vld [vmem:[%s3 + $0x268] sm:$0xff]
        %v2519 = vld [vmem:[%s3 + $0x270] sm:$0xff]
        %v2520 = vld [vmem:[%s3 + $0x278] sm:$0xff]
        %v2521 = vld [vmem:[%s3 + $0x280] sm:$0xff]
        %v2522 = vld [vmem:[%s3 + $0x288] sm:$0xff]
        %v2523 = vld [vmem:[%s3 + $0x290] sm:$0xff]
        %v2524 = vld [vmem:[%s3 + $0x298] sm:$0xff]
        %v2525 = vld [vmem:[%s3 + $0x2a0] sm:$0xff]
        %v2526 = vld [vmem:[%s3 + $0x2a8] sm:$0xff]
        %v2527 = vld [vmem:[%s3 + $0x2b0] sm:$0xff]
        %v2528 = vld [vmem:[%s3 + $0x2b8] sm:$0xff]
        %v2529 = vld [vmem:[%s3 + $0x2c0] sm:$0xff]
        %v2530 = vld [vmem:[%s3 + $0x2c8] sm:$0xff]
        %v2531 = vld [vmem:[%s3 + $0x2d0] sm:$0xff]
        %v2532 = vld [vmem:[%s3 + $0x2d8] sm:$0xff]
        %v2533 = vld [vmem:[%s3 + $0x2e0] sm:$0xff]
        %v2534 = vld [vmem:[%s3 + $0x2e8] sm:$0xff]
        %v2535 = vld [vmem:[%s3 + $0x2f0] sm:$0xff]
        %v2536 = vld [vmem:[%s3 + $0x2f8] sm:$0xff]
        %v2537 = vld [vmem:[%s3 + $0x300] sm:$0xff]
        %v2538 = vld [vmem:[%s3 + $0x308] sm:$0xff]
        %v2539 = vld [vmem:[%s3 + $0x310] sm:$0xff]
        %v2540 = vld [vmem:[%s3 + $0x318] sm:$0xff]
        %v2541 = vld [vmem:[%s3 + $0x320] sm:$0xff]
        %v2542 = vld [vmem:[%s3 + $0x328] sm:$0xff]
        %v2543 = vld [vmem:[%s3 + $0x330] sm:$0xff]
        %v2544 = vld [vmem:[%s3 + $0x338] sm:$0xff]
        %v2545 = vld [vmem:[%s3 + $0x340] sm:$0xff]
        %v2546 = vld [vmem:[%s3 + $0x348] sm:$0xff]
        %v2547 = vld [vmem:[%s3 + $0x350] sm:$0xff]
        %v2548 = vld [vmem:[%s3 + $0x358] sm:$0xff]
        %v2549 = vld [vmem:[%s3 + $0x360] sm:$0xff]
        %v2550 = vld [vmem:[%s3 + $0x368] sm:$0xff]
        %v2551 = vld [vmem:[%s3 + $0x370] sm:$0xff]
        %v2552 = vld [vmem:[%s3 + $0x378] sm:$0xff]
        %v2553 = vld [vmem:[%s3 + $0x380] sm:$0xff]
        %v2554 = vld [vmem:[%s3 + $0x388] sm:$0xff]
        %v2555 = vld [vmem:[%s3 + $0x390] sm:$0xff]
        %v2556 = vld [vmem:[%s3 + $0x398] sm:$0xff]
        %v2557 = vld [vmem:[%s3 + $0x3a0] sm:$0xff]
        %v2558 = vld [vmem:[%s3 + $0x3a8] sm:$0xff]
        %v2559 = vld [vmem:[%s3 + $0x3b0] sm:$0xff]
        %v2560 = vld [vmem:[%s3 + $0x3b8] sm:$0xff]
        %v2561 = vld [vmem:[%s3 + $0x3c0] sm:$0xff]
        %v2562 = vld [vmem:[%s3 + $0x3c8] sm:$0xff]
        %v2563 = vld [vmem:[%s3 + $0x3d0] sm:$0xff]
        %v2564 = vld [vmem:[%s3 + $0x3d8] sm:$0xff]
        %v2565 = vld [vmem:[%s3 + $0x3e0] sm:$0xff]
        %v2566 = vld [vmem:[%s3 + $0x3e8] sm:$0xff]
        %v2567 = vld [vmem:[%s3 + $0x3f0] sm:$0xff]
        %v2568 = vld [vmem:[%s3 + $0x3f8] sm:$0xff]
        %v2569 = vld [vmem:[%s3 + $0x400] sm:$0xff]
        %v2570 = vld [vmem:[%s3 + $0x408] sm:$0xff]
        %v2571 = vld [vmem:[%s3 + $0x410] sm:$0xff]
        %v2572 = vld [vmem:[%s3 + $0x418] sm:$0xff]
        %v2573 = vld [vmem:[%s3 + $0x420] sm:$0xff]
        %v2574 = vld [vmem:[%s3 + $0x428] sm:$0xff]
        %v2575 = vld [vmem:[%s3 + $0x430] sm:$0xff]
        %v2576 = vld [vmem:[%s3 + $0x438] sm:$0xff]
        %v2577 = vld [vmem:[%s3 + $0x440] sm:$0xff]
        %v2578 = vld [vmem:[%s3 + $0x448] sm:$0xff]
        %v2579 = vld [vmem:[%s3 + $0x450] sm:$0xff]
        %v2580 = vld [vmem:[%s3 + $0x458] sm:$0xff]
        %v2581 = vld [vmem:[%s3 + $0x460] sm:$0xff]
        %v2582 = vld [vmem:[%s3 + $0x468] sm:$0xff]
        %v2583 = vld [vmem:[%s3 + $0x470] sm:$0xff]
        %v2584 = vld [vmem:[%s3 + $0x478] sm:$0xff]
        %v2585 = vld [vmem:[%s3 + $0x480] sm:$0xff]
        %v2586 = vld [vmem:[%s3 + $0x488] sm:$0xff]
        %v2587 = vld [vmem:[%s3 + $0x490] sm:$0xff]
        %v2588 = vld [vmem:[%s3 + $0x498] sm:$0xff]
        %v2589 = vld [vmem:[%s3 + $0x4a0] sm:$0xff]
        %v2590 = vld [vmem:[%s3 + $0x4a8] sm:$0xff]
        %v2591 = vld [vmem:[%s3 + $0x4b0] sm:$0xff]
        %v2592 = vld [vmem:[%s3 + $0x4b8] sm:$0xff]
        %v2593 = vld [vmem:[%s3 + $0x4c0] sm:$0xff]
        %v2594 = vld [vmem:[%s3 + $0x4c8] sm:$0xff]
        %v2595 = vld [vmem:[%s3 + $0x4d0] sm:$0xff]
        %v2596 = vld [vmem:[%s3 + $0x4d8] sm:$0xff]
        %v2597 = vld [vmem:[%s3 + $0x4e0] sm:$0xff]
        %v2598 = vld [vmem:[%s3 + $0x4e8] sm:$0xff]
        %v2599 = vld [vmem:[%s3 + $0x4f0] sm:$0xff]
        %v2600 = vld [vmem:[%s3 + $0x4f8] sm:$0xff]
        %v2601 = vld [vmem:[%s3 + $0x500] sm:$0xff]
        %v2602 = vld [vmem:[%s3 + $0x508] sm:$0xff]
        %v2603 = vld [vmem:[%s3 + $0x510] sm:$0xff]
        %v2604 = vld [vmem:[%s3 + $0x518] sm:$0xff]
        %v2605 = vld [vmem:[%s3 + $0x520] sm:$0xff]
        %v2606 = vld [vmem:[%s3 + $0x528] sm:$0xff]
        %v2607 = vld [vmem:[%s3 + $0x530] sm:$0xff]
        %v2608 = vld [vmem:[%s3 + $0x538] sm:$0xff]
        %v2609 = vld [vmem:[%s3 + $0x540] sm:$0xff]
        %v2610 = vld [vmem:[%s3 + $0x548] sm:$0xff]
        %v2611 = vld [vmem:[%s3 + $0x550] sm:$0xff]
        %v2612 = vld [vmem:[%s3 + $0x558] sm:$0xff]
        %v2613 = vld [vmem:[%s3 + $0x560] sm:$0xff]
        %v2614 = vld [vmem:[%s3 + $0x568] sm:$0xff]
        %v2615 = vld [vmem:[%s3 + $0x570] sm:$0xff]
        %v2616 = vld [vmem:[%s3 + $0x578] sm:$0xff]
        %v2617 = vld [vmem:[%s3 + $0x580] sm:$0xff]
        %v2618 = vld [vmem:[%s3 + $0x588] sm:$0xff]
        %v2619 = vld [vmem:[%s3 + $0x590] sm:$0xff]
        %v2620 = vld [vmem:[%s3 + $0x598] sm:$0xff]
        %v2621 = vld [vmem:[%s3 + $0x5a0] sm:$0xff]
        %v2622 = vld [vmem:[%s3 + $0x5a8] sm:$0xff]
        %v2623 = vld [vmem:[%s3 + $0x5b0] sm:$0xff]
        %v2624 = vld [vmem:[%s3 + $0x5b8] sm:$0xff]
        %v2625 = vld [vmem:[%s3 + $0x5c0] sm:$0xff]
        %v2626 = vld [vmem:[%s3 + $0x5c8] sm:$0xff]
        %v2627 = vld [vmem:[%s3 + $0x5d0] sm:$0xff]
        %v2628 = vld [vmem:[%s3 + $0x5d8] sm:$0xff]
        %v2629 = vld [vmem:[%s3 + $0x5e0] sm:$0xff]
        %v2630 = vld [vmem:[%s3 + $0x5e8] sm:$0xff]
        %v2631 = vld [vmem:[%s3 + $0x5f0] sm:$0xff]
        %v2632 = vld [vmem:[%s3 + $0x5f8] sm:$0xff]
        %v2825 = vunpack.c.l.b16 %v2441
        %v2826 = vunpack.c.h.b16 %v2441
        %v2827 = vunpack.c.l.b16 %v2442
        %v2828 = vunpack.c.h.b16 %v2442
        %v2829 = vunpack.c.l.b16 %v2443
        %v2830 = vunpack.c.h.b16 %v2443
        %v2831 = vunpack.c.l.b16 %v2444
        %v2832 = vunpack.c.h.b16 %v2444
        %v2833 = vunpack.c.l.b16 %v2445
        %v2834 = vunpack.c.h.b16 %v2445
        %v2835 = vunpack.c.l.b16 %v2446
        %v2836 = vunpack.c.h.b16 %v2446
        %v2837 = vunpack.c.l.b16 %v2447
        %v2838 = vunpack.c.h.b16 %v2447
        %v2839 = vunpack.c.l.b16 %v2448
        %v2840 = vunpack.c.h.b16 %v2448
        %v2841 = vunpack.c.l.b16 %v2449
        %v2842 = vunpack.c.h.b16 %v2449
        %v2843 = vunpack.c.l.b16 %v2450
        %v2844 = vunpack.c.h.b16 %v2450
        %v2845 = vunpack.c.l.b16 %v2451
        %v2846 = vunpack.c.h.b16 %v2451
        %v2847 = vunpack.c.l.b16 %v2452
        %v2848 = vunpack.c.h.b16 %v2452
        %v2849 = vunpack.c.l.b16 %v2453
        %v2850 = vunpack.c.h.b16 %v2453
        %v2851 = vunpack.c.l.b16 %v2454
        %v2852 = vunpack.c.h.b16 %v2454
        %v2853 = vunpack.c.l.b16 %v2455
        %v2854 = vunpack.c.h.b16 %v2455
        %v2855 = vunpack.c.l.b16 %v2456
        %v2856 = vunpack.c.h.b16 %v2456
        %v2857 = vunpack.c.l.b16 %v2457
        %v2858 = vunpack.c.h.b16 %v2457
        %v2859 = vunpack.c.l.b16 %v2458
        %v2860 = vunpack.c.h.b16 %v2458
        %v2861 = vunpack.c.l.b16 %v2459
        %v2862 = vunpack.c.h.b16 %v2459
        %v2863 = vunpack.c.l.b16 %v2460
        %v2864 = vunpack.c.h.b16 %v2460
        %v2865 = vunpack.c.l.b16 %v2461
        %v2866 = vunpack.c.h.b16 %v2461
        %v2867 = vunpack.c.l.b16 %v2462
        %v2868 = vunpack.c.h.b16 %v2462
        %v2869 = vunpack.c.l.b16 %v2463
        %v2870 = vunpack.c.h.b16 %v2463
        %v2871 = vunpack.c.l.b16 %v2464
        %v2872 = vunpack.c.h.b16 %v2464
        %v2873 = vunpack.c.l.b16 %v2465
        %v2874 = vunpack.c.h.b16 %v2465
        %v2875 = vunpack.c.l.b16 %v2466
        %v2876 = vunpack.c.h.b16 %v2466
        %v2877 = vunpack.c.l.b16 %v2467
        %v2878 = vunpack.c.h.b16 %v2467
        %v2879 = vunpack.c.l.b16 %v2468
        %v2880 = vunpack.c.h.b16 %v2468
        %v2881 = vunpack.c.l.b16 %v2469
        %v2882 = vunpack.c.h.b16 %v2469
        %v2883 = vunpack.c.l.b16 %v2470
        %v2884 = vunpack.c.h.b16 %v2470
        %v2885 = vunpack.c.l.b16 %v2471
        %v2886 = vunpack.c.h.b16 %v2471
        %v2887 = vunpack.c.l.b16 %v2472
        %v2888 = vunpack.c.h.b16 %v2472
        %v2889 = vunpack.c.l.b16 %v2473
        %v2890 = vunpack.c.h.b16 %v2473
        %v2891 = vunpack.c.l.b16 %v2474
        %v2892 = vunpack.c.h.b16 %v2474
        %v2893 = vunpack.c.l.b16 %v2475
        %v2894 = vunpack.c.h.b16 %v2475
        %v2895 = vunpack.c.l.b16 %v2476
        %v2896 = vunpack.c.h.b16 %v2476
        %v2897 = vunpack.c.l.b16 %v2477
        %v2898 = vunpack.c.h.b16 %v2477
        %v2899 = vunpack.c.l.b16 %v2478
        %v2900 = vunpack.c.h.b16 %v2478
        %v2901 = vunpack.c.l.b16 %v2479
        %v2902 = vunpack.c.h.b16 %v2479
        %v2903 = vunpack.c.l.b16 %v2480
        %v2904 = vunpack.c.h.b16 %v2480
        %v2905 = vunpack.c.l.b16 %v2481
        %v2906 = vunpack.c.h.b16 %v2481
        %v2907 = vunpack.c.l.b16 %v2482
        %v2908 = vunpack.c.h.b16 %v2482
        %v2909 = vunpack.c.l.b16 %v2483
        %v2910 = vunpack.c.h.b16 %v2483
        %v2911 = vunpack.c.l.b16 %v2484
        %v2912 = vunpack.c.h.b16 %v2484
        %v2913 = vunpack.c.l.b16 %v2485
        %v2914 = vunpack.c.h.b16 %v2485
        %v2915 = vunpack.c.l.b16 %v2486
        %v2916 = vunpack.c.h.b16 %v2486
        %v2917 = vunpack.c.l.b16 %v2487
        %v2918 = vunpack.c.h.b16 %v2487
        %v2919 = vunpack.c.l.b16 %v2488
        %v2920 = vunpack.c.h.b16 %v2488
        %v2921 = vunpack.c.l.b16 %v2489
        %v2922 = vunpack.c.h.b16 %v2489
        %v2923 = vunpack.c.l.b16 %v2490
        %v2924 = vunpack.c.h.b16 %v2490
        %v2925 = vunpack.c.l.b16 %v2491
        %v2926 = vunpack.c.h.b16 %v2491
        %v2927 = vunpack.c.l.b16 %v2492
        %v2928 = vunpack.c.h.b16 %v2492
        %v2929 = vunpack.c.l.b16 %v2493
        %v2930 = vunpack.c.h.b16 %v2493
        %v2931 = vunpack.c.l.b16 %v2494
        %v2932 = vunpack.c.h.b16 %v2494
        %v2933 = vunpack.c.l.b16 %v2495
        %v2934 = vunpack.c.h.b16 %v2495
        %v2935 = vunpack.c.l.b16 %v2496
        %v2936 = vunpack.c.h.b16 %v2496
        %v2937 = vunpack.c.l.b16 %v2497
        %v2938 = vunpack.c.h.b16 %v2497
        %v2939 = vunpack.c.l.b16 %v2498
        %v2940 = vunpack.c.h.b16 %v2498
        %v2941 = vunpack.c.l.b16 %v2499
        %v2942 = vunpack.c.h.b16 %v2499
        %v2943 = vunpack.c.l.b16 %v2500
        %v2944 = vunpack.c.h.b16 %v2500
        %v2945 = vunpack.c.l.b16 %v2501
        %v2946 = vunpack.c.h.b16 %v2501
        %v2947 = vunpack.c.l.b16 %v2502
        %v2948 = vunpack.c.h.b16 %v2502
        %v2949 = vunpack.c.l.b16 %v2503
        %v2950 = vunpack.c.h.b16 %v2503
        %v2951 = vunpack.c.l.b16 %v2504
        %v2952 = vunpack.c.h.b16 %v2504
        %v2953 = vunpack.c.l.b16 %v2505
        %v2954 = vunpack.c.h.b16 %v2505
        %v2955 = vunpack.c.l.b16 %v2506
        %v2956 = vunpack.c.h.b16 %v2506
        %v2957 = vunpack.c.l.b16 %v2507
        %v2958 = vunpack.c.h.b16 %v2507
        %v2959 = vunpack.c.l.b16 %v2508
        %v2960 = vunpack.c.h.b16 %v2508
        %v2961 = vunpack.c.l.b16 %v2509
        %v2962 = vunpack.c.h.b16 %v2509
        %v2963 = vunpack.c.l.b16 %v2510
        %v2964 = vunpack.c.h.b16 %v2510
        %v2965 = vunpack.c.l.b16 %v2511
        %v2966 = vunpack.c.h.b16 %v2511
        %v2967 = vunpack.c.l.b16 %v2512
        %v2968 = vunpack.c.h.b16 %v2512
        %v2969 = vunpack.c.l.b16 %v2513
        %v2970 = vunpack.c.h.b16 %v2513
        %v2971 = vunpack.c.l.b16 %v2514
        %v2972 = vunpack.c.h.b16 %v2514
        %v2973 = vunpack.c.l.b16 %v2515
        %v2974 = vunpack.c.h.b16 %v2515
        %v2975 = vunpack.c.l.b16 %v2516
        %v2976 = vunpack.c.h.b16 %v2516
        %v2977 = vunpack.c.l.b16 %v2517
        %v2978 = vunpack.c.h.b16 %v2517
        %v2979 = vunpack.c.l.b16 %v2518
        %v2980 = vunpack.c.h.b16 %v2518
        %v2981 = vunpack.c.l.b16 %v2519
        %v2982 = vunpack.c.h.b16 %v2519
        %v2983 = vunpack.c.l.b16 %v2520
        %v2984 = vunpack.c.h.b16 %v2520
        %v2985 = vunpack.c.l.b16 %v2521
        %v2986 = vunpack.c.h.b16 %v2521
        %v2987 = vunpack.c.l.b16 %v2522
        %v2988 = vunpack.c.h.b16 %v2522
        %v2989 = vunpack.c.l.b16 %v2523
        %v2990 = vunpack.c.h.b16 %v2523
        %v2991 = vunpack.c.l.b16 %v2524
        %v2992 = vunpack.c.h.b16 %v2524
        %v2993 = vunpack.c.l.b16 %v2525
        %v2994 = vunpack.c.h.b16 %v2525
        %v2995 = vunpack.c.l.b16 %v2526
        %v2996 = vunpack.c.h.b16 %v2526
        %v2997 = vunpack.c.l.b16 %v2527
        %v2998 = vunpack.c.h.b16 %v2527
        %v2999 = vunpack.c.l.b16 %v2528
        %v3000 = vunpack.c.h.b16 %v2528
        %v3001 = vunpack.c.l.b16 %v2529
        %v3002 = vunpack.c.h.b16 %v2529
        %v3003 = vunpack.c.l.b16 %v2530
        %v3004 = vunpack.c.h.b16 %v2530
        %v3005 = vunpack.c.l.b16 %v2531
        %v3006 = vunpack.c.h.b16 %v2531
        %v3007 = vunpack.c.l.b16 %v2532
        %v3008 = vunpack.c.h.b16 %v2532
        %v3009 = vunpack.c.l.b16 %v2533
        %v3010 = vunpack.c.h.b16 %v2533
        %v3011 = vunpack.c.l.b16 %v2534
        %v3012 = vunpack.c.h.b16 %v2534
        %v3013 = vunpack.c.l.b16 %v2535
        %v3014 = vunpack.c.h.b16 %v2535
        %v3015 = vunpack.c.l.b16 %v2536
        %v3016 = vunpack.c.h.b16 %v2536
        %v3017 = vunpack.c.l.b16 %v2537
        %v3018 = vunpack.c.h.b16 %v2537
        %v3019 = vunpack.c.l.b16 %v2538
        %v3020 = vunpack.c.h.b16 %v2538
        %v3021 = vunpack.c.l.b16 %v2539
        %v3022 = vunpack.c.h.b16 %v2539
        %v3023 = vunpack.c.l.b16 %v2540
        %v3024 = vunpack.c.h.b16 %v2540
        %v3025 = vunpack.c.l.b16 %v2541
        %v3026 = vunpack.c.h.b16 %v2541
        %v3027 = vunpack.c.l.b16 %v2542
        %v3028 = vunpack.c.h.b16 %v2542
        %v3029 = vunpack.c.l.b16 %v2543
        %v3030 = vunpack.c.h.b16 %v2543
        %v3031 = vunpack.c.l.b16 %v2544
        %v3032 = vunpack.c.h.b16 %v2544
        %v3033 = vunpack.c.l.b16 %v2545
        %v3034 = vunpack.c.h.b16 %v2545
        %v3035 = vunpack.c.l.b16 %v2546
        %v3036 = vunpack.c.h.b16 %v2546
        %v3037 = vunpack.c.l.b16 %v2547
        %v3038 = vunpack.c.h.b16 %v2547
        %v3039 = vunpack.c.l.b16 %v2548
        %v3040 = vunpack.c.h.b16 %v2548
        %v3041 = vunpack.c.l.b16 %v2549
        %v3042 = vunpack.c.h.b16 %v2549
        %v3043 = vunpack.c.l.b16 %v2550
        %v3044 = vunpack.c.h.b16 %v2550
        %v3045 = vunpack.c.l.b16 %v2551
        %v3046 = vunpack.c.h.b16 %v2551
        %v3047 = vunpack.c.l.b16 %v2552
        %v3048 = vunpack.c.h.b16 %v2552
        %v3049 = vunpack.c.l.b16 %v2553
        %v3050 = vunpack.c.h.b16 %v2553
        %v3051 = vunpack.c.l.b16 %v2554
        %v3052 = vunpack.c.h.b16 %v2554
        %v3053 = vunpack.c.l.b16 %v2555
        %v3054 = vunpack.c.h.b16 %v2555
        %v3055 = vunpack.c.l.b16 %v2556
        %v3056 = vunpack.c.h.b16 %v2556
        %v3057 = vunpack.c.l.b16 %v2557
        %v3058 = vunpack.c.h.b16 %v2557
        %v3059 = vunpack.c.l.b16 %v2558
        %v3060 = vunpack.c.h.b16 %v2558
        %v3061 = vunpack.c.l.b16 %v2559
        %v3062 = vunpack.c.h.b16 %v2559
        %v3063 = vunpack.c.l.b16 %v2560
        %v3064 = vunpack.c.h.b16 %v2560
        %v3065 = vunpack.c.l.b16 %v2561
        %v3066 = vunpack.c.h.b16 %v2561
        %v3067 = vunpack.c.l.b16 %v2562
        %v3068 = vunpack.c.h.b16 %v2562
        %v3069 = vunpack.c.l.b16 %v2563
        %v3070 = vunpack.c.h.b16 %v2563
        %v3071 = vunpack.c.l.b16 %v2564
        %v3072 = vunpack.c.h.b16 %v2564
        %v3073 = vunpack.c.l.b16 %v2565
        %v3074 = vunpack.c.h.b16 %v2565
        %v3075 = vunpack.c.l.b16 %v2566
        %v3076 = vunpack.c.h.b16 %v2566
        %v3077 = vunpack.c.l.b16 %v2567
        %v3078 = vunpack.c.h.b16 %v2567
        %v3079 = vunpack.c.l.b16 %v2568
        %v3080 = vunpack.c.h.b16 %v2568
        %v3081 = vunpack.c.l.b16 %v2569
        %v3082 = vunpack.c.h.b16 %v2569
        %v3083 = vunpack.c.l.b16 %v2570
        %v3084 = vunpack.c.h.b16 %v2570
        %v3085 = vunpack.c.l.b16 %v2571
        %v3086 = vunpack.c.h.b16 %v2571
        %v3087 = vunpack.c.l.b16 %v2572
        %v3088 = vunpack.c.h.b16 %v2572
        %v3089 = vunpack.c.l.b16 %v2573
        %v3090 = vunpack.c.h.b16 %v2573
        %v3091 = vunpack.c.l.b16 %v2574
        %v3092 = vunpack.c.h.b16 %v2574
        %v3093 = vunpack.c.l.b16 %v2575
        %v3094 = vunpack.c.h.b16 %v2575
        %v3095 = vunpack.c.l.b16 %v2576
        %v3096 = vunpack.c.h.b16 %v2576
        %v3097 = vunpack.c.l.b16 %v2577
        %v3098 = vunpack.c.h.b16 %v2577
        %v3099 = vunpack.c.l.b16 %v2578
        %v3100 = vunpack.c.h.b16 %v2578
        %v3101 = vunpack.c.l.b16 %v2579
        %v3102 = vunpack.c.h.b16 %v2579
        %v3103 = vunpack.c.l.b16 %v2580
        %v3104 = vunpack.c.h.b16 %v2580
        %v3105 = vunpack.c.l.b16 %v2581
        %v3106 = vunpack.c.h.b16 %v2581
        %v3107 = vunpack.c.l.b16 %v2582
        %v3108 = vunpack.c.h.b16 %v2582
        %v3109 = vunpack.c.l.b16 %v2583
        %v3110 = vunpack.c.h.b16 %v2583
        %v3111 = vunpack.c.l.b16 %v2584
        %v3112 = vunpack.c.h.b16 %v2584
        %v3113 = vunpack.c.l.b16 %v2585
        %v3114 = vunpack.c.h.b16 %v2585
        %v3115 = vunpack.c.l.b16 %v2586
        %v3116 = vunpack.c.h.b16 %v2586
        %v3117 = vunpack.c.l.b16 %v2587
        %v3118 = vunpack.c.h.b16 %v2587
        %v3119 = vunpack.c.l.b16 %v2588
        %v3120 = vunpack.c.h.b16 %v2588
        %v3121 = vunpack.c.l.b16 %v2589
        %v3122 = vunpack.c.h.b16 %v2589
        %v3123 = vunpack.c.l.b16 %v2590
        %v3124 = vunpack.c.h.b16 %v2590
        %v3125 = vunpack.c.l.b16 %v2591
        %v3126 = vunpack.c.h.b16 %v2591
        %v3127 = vunpack.c.l.b16 %v2592
        %v3128 = vunpack.c.h.b16 %v2592
        %v3129 = vunpack.c.l.b16 %v2593
        %v3130 = vunpack.c.h.b16 %v2593
        %v3131 = vunpack.c.l.b16 %v2594
        %v3132 = vunpack.c.h.b16 %v2594
        %v3133 = vunpack.c.l.b16 %v2595
        %v3134 = vunpack.c.h.b16 %v2595
        %v3135 = vunpack.c.l.b16 %v2596
        %v3136 = vunpack.c.h.b16 %v2596
        %v3137 = vunpack.c.l.b16 %v2597
        %v3138 = vunpack.c.h.b16 %v2597
        %v3139 = vunpack.c.l.b16 %v2598
        %v3140 = vunpack.c.h.b16 %v2598
        %v3141 = vunpack.c.l.b16 %v2599
        %v3142 = vunpack.c.h.b16 %v2599
        %v3143 = vunpack.c.l.b16 %v2600
        %v3144 = vunpack.c.h.b16 %v2600
        %v3145 = vunpack.c.l.b16 %v2601
        %v3146 = vunpack.c.h.b16 %v2601
        %v3147 = vunpack.c.l.b16 %v2602
        %v3148 = vunpack.c.h.b16 %v2602
        %v3149 = vunpack.c.l.b16 %v2603
        %v3150 = vunpack.c.h.b16 %v2603
        %v3151 = vunpack.c.l.b16 %v2604
        %v3152 = vunpack.c.h.b16 %v2604
        %v3153 = vunpack.c.l.b16 %v2605
        %v3154 = vunpack.c.h.b16 %v2605
        %v3155 = vunpack.c.l.b16 %v2606
        %v3156 = vunpack.c.h.b16 %v2606
        %v3157 = vunpack.c.l.b16 %v2607
        %v3158 = vunpack.c.h.b16 %v2607
        %v3159 = vunpack.c.l.b16 %v2608
        %v3160 = vunpack.c.h.b16 %v2608
        %v3161 = vunpack.c.l.b16 %v2609
        %v3162 = vunpack.c.h.b16 %v2609
        %v3163 = vunpack.c.l.b16 %v2610
        %v3164 = vunpack.c.h.b16 %v2610
        %v3165 = vunpack.c.l.b16 %v2611
        %v3166 = vunpack.c.h.b16 %v2611
        %v3167 = vunpack.c.l.b16 %v2612
        %v3168 = vunpack.c.h.b16 %v2612
        %v3169 = vunpack.c.l.b16 %v2613
        %v3170 = vunpack.c.h.b16 %v2613
        %v3171 = vunpack.c.l.b16 %v2614
        %v3172 = vunpack.c.h.b16 %v2614
        %v3173 = vunpack.c.l.b16 %v2615
        %v3174 = vunpack.c.h.b16 %v2615
        %v3175 = vunpack.c.l.b16 %v2616
        %v3176 = vunpack.c.h.b16 %v2616
        %v3177 = vunpack.c.l.b16 %v2617
        %v3178 = vunpack.c.h.b16 %v2617
        %v3179 = vunpack.c.l.b16 %v2618
        %v3180 = vunpack.c.h.b16 %v2618
        %v3181 = vunpack.c.l.b16 %v2619
        %v3182 = vunpack.c.h.b16 %v2619
        %v3183 = vunpack.c.l.b16 %v2620
        %v3184 = vunpack.c.h.b16 %v2620
        %v3185 = vunpack.c.l.b16 %v2621
        %v3186 = vunpack.c.h.b16 %v2621
        %v3187 = vunpack.c.l.b16 %v2622
        %v3188 = vunpack.c.h.b16 %v2622
        %v3189 = vunpack.c.l.b16 %v2623
        %v3190 = vunpack.c.h.b16 %v2623
        %v3191 = vunpack.c.l.b16 %v2624
        %v3192 = vunpack.c.h.b16 %v2624
        %v3193 = vunpack.c.l.b16 %v2625
        %v3194 = vunpack.c.h.b16 %v2625
        %v3195 = vunpack.c.l.b16 %v2626
        %v3196 = vunpack.c.h.b16 %v2626
        %v3197 = vunpack.c.l.b16 %v2627
        %v3198 = vunpack.c.h.b16 %v2627
        %v3199 = vunpack.c.l.b16 %v2628
        %v3200 = vunpack.c.h.b16 %v2628
        %v3201 = vunpack.c.l.b16 %v2629
        %v3202 = vunpack.c.h.b16 %v2629
        %v3203 = vunpack.c.l.b16 %v2630
        %v3204 = vunpack.c.h.b16 %v2630
        %v3205 = vunpack.c.l.b16 %v2631
        %v3206 = vunpack.c.h.b16 %v2631
        %v3207 = vunpack.c.l.b16 %v2632
        %v3208 = vunpack.c.h.b16 %v2632
        %v3209 = vpack.c.b16 %v2829, %v2825
        %v3210 = vpack.c.b16 %v2830, %v2826
        %v3211 = vpack.c.b16 %v2831, %v2827
        %v3212 = vpack.c.b16 %v2832, %v2828
        %v3213 = vpack.c.b16 %v2837, %v2833
        %v3214 = vpack.c.b16 %v2838, %v2834
        %v3215 = vpack.c.b16 %v2839, %v2835
        %v3216 = vpack.c.b16 %v2840, %v2836
        %v3217 = vpack.c.b16 %v2845, %v2841
        %v3218 = vpack.c.b16 %v2846, %v2842
        %v3219 = vpack.c.b16 %v2847, %v2843
        %v3220 = vpack.c.b16 %v2848, %v2844
        %v3221 = vpack.c.b16 %v2853, %v2849
        %v3222 = vpack.c.b16 %v2854, %v2850
        %v3223 = vpack.c.b16 %v2855, %v2851
        %v3224 = vpack.c.b16 %v2856, %v2852
        %v3225 = vpack.c.b16 %v2861, %v2857
        %v3226 = vpack.c.b16 %v2862, %v2858
        %v3227 = vpack.c.b16 %v2863, %v2859
        %v3228 = vpack.c.b16 %v2864, %v2860
        %v3229 = vpack.c.b16 %v2869, %v2865
        %v3230 = vpack.c.b16 %v2870, %v2866
        %v3231 = vpack.c.b16 %v2871, %v2867
        %v3232 = vpack.c.b16 %v2872, %v2868
        %v3233 = vpack.c.b16 %v2877, %v2873
        %v3234 = vpack.c.b16 %v2878, %v2874
        %v3235 = vpack.c.b16 %v2879, %v2875
        %v3236 = vpack.c.b16 %v2880, %v2876
        %v3237 = vpack.c.b16 %v2885, %v2881
        %v3238 = vpack.c.b16 %v2886, %v2882
        %v3239 = vpack.c.b16 %v2887, %v2883
        %v3240 = vpack.c.b16 %v2888, %v2884
        %v3241 = vpack.c.b16 %v2893, %v2889
        %v3242 = vpack.c.b16 %v2894, %v2890
        %v3243 = vpack.c.b16 %v2895, %v2891
        %v3244 = vpack.c.b16 %v2896, %v2892
        %v3245 = vpack.c.b16 %v2901, %v2897
        %v3246 = vpack.c.b16 %v2902, %v2898
        %v3247 = vpack.c.b16 %v2903, %v2899
        %v3248 = vpack.c.b16 %v2904, %v2900
        %v3249 = vpack.c.b16 %v2909, %v2905
        %v3250 = vpack.c.b16 %v2910, %v2906
        %v3251 = vpack.c.b16 %v2911, %v2907
        %v3252 = vpack.c.b16 %v2912, %v2908
        %v3253 = vpack.c.b16 %v2917, %v2913
        %v3254 = vpack.c.b16 %v2918, %v2914
        %v3255 = vpack.c.b16 %v2919, %v2915
        %v3256 = vpack.c.b16 %v2920, %v2916
        %v3257 = vpack.c.b16 %v2925, %v2921
        %v3258 = vpack.c.b16 %v2926, %v2922
        %v3259 = vpack.c.b16 %v2927, %v2923
        %v3260 = vpack.c.b16 %v2928, %v2924
        %v3261 = vpack.c.b16 %v2933, %v2929
        %v3262 = vpack.c.b16 %v2934, %v2930
        %v3263 = vpack.c.b16 %v2935, %v2931
        %v3264 = vpack.c.b16 %v2936, %v2932
        %v3265 = vpack.c.b16 %v2941, %v2937
        %v3266 = vpack.c.b16 %v2942, %v2938
        %v3267 = vpack.c.b16 %v2943, %v2939
        %v3268 = vpack.c.b16 %v2944, %v2940
        %v3269 = vpack.c.b16 %v2949, %v2945
        %v3270 = vpack.c.b16 %v2950, %v2946
        %v3271 = vpack.c.b16 %v2951, %v2947
        %v3272 = vpack.c.b16 %v2952, %v2948
        %v3273 = vpack.c.b16 %v2957, %v2953
        %v3274 = vpack.c.b16 %v2958, %v2954
        %v3275 = vpack.c.b16 %v2959, %v2955
        %v3276 = vpack.c.b16 %v2960, %v2956
        %v3277 = vpack.c.b16 %v2965, %v2961
        %v3278 = vpack.c.b16 %v2966, %v2962
        %v3279 = vpack.c.b16 %v2967, %v2963
        %v3280 = vpack.c.b16 %v2968, %v2964
        %v3281 = vpack.c.b16 %v2973, %v2969
        %v3282 = vpack.c.b16 %v2974, %v2970
        %v3283 = vpack.c.b16 %v2975, %v2971
        %v3284 = vpack.c.b16 %v2976, %v2972
        %v3285 = vpack.c.b16 %v2981, %v2977
        %v3286 = vpack.c.b16 %v2982, %v2978
        %v3287 = vpack.c.b16 %v2983, %v2979
        %v3288 = vpack.c.b16 %v2984, %v2980
        %v3289 = vpack.c.b16 %v2989, %v2985
        %v3290 = vpack.c.b16 %v2990, %v2986
        %v3291 = vpack.c.b16 %v2991, %v2987
        %v3292 = vpack.c.b16 %v2992, %v2988
        %v3293 = vpack.c.b16 %v2997, %v2993
        %v3294 = vpack.c.b16 %v2998, %v2994
        %v3295 = vpack.c.b16 %v2999, %v2995
        %v3296 = vpack.c.b16 %v3000, %v2996
        %v3297 = vpack.c.b16 %v3005, %v3001
        %v3298 = vpack.c.b16 %v3006, %v3002
        %v3299 = vpack.c.b16 %v3007, %v3003
        %v3300 = vpack.c.b16 %v3008, %v3004
        %v3301 = vpack.c.b16 %v3013, %v3009
        %v3302 = vpack.c.b16 %v3014, %v3010
        %v3303 = vpack.c.b16 %v3015, %v3011
        %v3304 = vpack.c.b16 %v3016, %v3012
        %v3305 = vpack.c.b16 %v3021, %v3017
        %v3306 = vpack.c.b16 %v3022, %v3018
        %v3307 = vpack.c.b16 %v3023, %v3019
        %v3308 = vpack.c.b16 %v3024, %v3020
        %v3309 = vpack.c.b16 %v3029, %v3025
        %v3310 = vpack.c.b16 %v3030, %v3026
        %v3311 = vpack.c.b16 %v3031, %v3027
        %v3312 = vpack.c.b16 %v3032, %v3028
        %v3313 = vpack.c.b16 %v3037, %v3033
        %v3314 = vpack.c.b16 %v3038, %v3034
        %v3315 = vpack.c.b16 %v3039, %v3035
        %v3316 = vpack.c.b16 %v3040, %v3036
        %v3317 = vpack.c.b16 %v3045, %v3041
        %v3318 = vpack.c.b16 %v3046, %v3042
        %v3319 = vpack.c.b16 %v3047, %v3043
        %v3320 = vpack.c.b16 %v3048, %v3044
        %v3321 = vpack.c.b16 %v3053, %v3049
        %v3322 = vpack.c.b16 %v3054, %v3050
        %v3323 = vpack.c.b16 %v3055, %v3051
        %v3324 = vpack.c.b16 %v3056, %v3052
        %v3325 = vpack.c.b16 %v3061, %v3057
        %v3326 = vpack.c.b16 %v3062, %v3058
        %v3327 = vpack.c.b16 %v3063, %v3059
        %v3328 = vpack.c.b16 %v3064, %v3060
        %v3329 = vpack.c.b16 %v3069, %v3065
        %v3330 = vpack.c.b16 %v3070, %v3066
        %v3331 = vpack.c.b16 %v3071, %v3067
        %v3332 = vpack.c.b16 %v3072, %v3068
        %v3333 = vpack.c.b16 %v3077, %v3073
        %v3334 = vpack.c.b16 %v3078, %v3074
        %v3335 = vpack.c.b16 %v3079, %v3075
        %v3336 = vpack.c.b16 %v3080, %v3076
        %v3337 = vpack.c.b16 %v3085, %v3081
        %v3338 = vpack.c.b16 %v3086, %v3082
        %v3339 = vpack.c.b16 %v3087, %v3083
        %v3340 = vpack.c.b16 %v3088, %v3084
        %v3341 = vpack.c.b16 %v3093, %v3089
        %v3342 = vpack.c.b16 %v3094, %v3090
        %v3343 = vpack.c.b16 %v3095, %v3091
        %v3344 = vpack.c.b16 %v3096, %v3092
        %v3345 = vpack.c.b16 %v3101, %v3097
        %v3346 = vpack.c.b16 %v3102, %v3098
        %v3347 = vpack.c.b16 %v3103, %v3099
        %v3348 = vpack.c.b16 %v3104, %v3100
        %v3349 = vpack.c.b16 %v3109, %v3105
        %v3350 = vpack.c.b16 %v3110, %v3106
        %v3351 = vpack.c.b16 %v3111, %v3107
        %v3352 = vpack.c.b16 %v3112, %v3108
        %v3353 = vpack.c.b16 %v3117, %v3113
        %v3354 = vpack.c.b16 %v3118, %v3114
        %v3355 = vpack.c.b16 %v3119, %v3115
        %v3356 = vpack.c.b16 %v3120, %v3116
        %v3357 = vpack.c.b16 %v3125, %v3121
        %v3358 = vpack.c.b16 %v3126, %v3122
        %v3359 = vpack.c.b16 %v3127, %v3123
        %v3360 = vpack.c.b16 %v3128, %v3124
        %v3361 = vpack.c.b16 %v3133, %v3129
        %v3362 = vpack.c.b16 %v3134, %v3130
        %v3363 = vpack.c.b16 %v3135, %v3131
        %v3364 = vpack.c.b16 %v3136, %v3132
        %v3365 = vpack.c.b16 %v3141, %v3137
        %v3366 = vpack.c.b16 %v3142, %v3138
        %v3367 = vpack.c.b16 %v3143, %v3139
        %v3368 = vpack.c.b16 %v3144, %v3140
        %v3369 = vpack.c.b16 %v3149, %v3145
        %v3370 = vpack.c.b16 %v3150, %v3146
        %v3371 = vpack.c.b16 %v3151, %v3147
        %v3372 = vpack.c.b16 %v3152, %v3148
        %v3373 = vpack.c.b16 %v3157, %v3153
        %v3374 = vpack.c.b16 %v3158, %v3154
        %v3375 = vpack.c.b16 %v3159, %v3155
        %v3376 = vpack.c.b16 %v3160, %v3156
        %v3377 = vpack.c.b16 %v3165, %v3161
        %v3378 = vpack.c.b16 %v3166, %v3162
        %v3379 = vpack.c.b16 %v3167, %v3163
        %v3380 = vpack.c.b16 %v3168, %v3164
        %v3381 = vpack.c.b16 %v3173, %v3169
        %v3382 = vpack.c.b16 %v3174, %v3170
        %v3383 = vpack.c.b16 %v3175, %v3171
        %v3384 = vpack.c.b16 %v3176, %v3172
        %v3385 = vpack.c.b16 %v3181, %v3177
        %v3386 = vpack.c.b16 %v3182, %v3178
        %v3387 = vpack.c.b16 %v3183, %v3179
        %v3388 = vpack.c.b16 %v3184, %v3180
        %v3389 = vpack.c.b16 %v3189, %v3185
        %v3390 = vpack.c.b16 %v3190, %v3186
        %v3391 = vpack.c.b16 %v3191, %v3187
        %v3392 = vpack.c.b16 %v3192, %v3188
        %v3393 = vpack.c.b16 %v3197, %v3193
        %v3394 = vpack.c.b16 %v3198, %v3194
        %v3395 = vpack.c.b16 %v3199, %v3195
        %v3396 = vpack.c.b16 %v3200, %v3196
        %v3397 = vpack.c.b16 %v3205, %v3201
        %v3398 = vpack.c.b16 %v3206, %v3202
        %v3399 = vpack.c.b16 %v3207, %v3203
        %v3400 = vpack.c.b16 %v3208, %v3204
        %3593 = vmatpush.bf16.msra.mxu0 %v3237
        %3594 = vmatpush.bf16.msra.mxu0 %v3233
        %3595 = vmatpush.bf16.msra.mxu0 %v3229
        %3596 = vmatpush.bf16.msra.mxu0 %v3225
        %3597 = vmatpush.bf16.msra.mxu0 %v3221
        %3598 = vmatpush.bf16.msra.mxu0 %v3217
        %3599 = vmatpush.bf16.msra.mxu0 %v3213
        %3600 = vmatpush.bf16.msra.mxu0 %v3209
        %3601 = vmatmul.bf16.gmra.mxu0 %v2407
        %v3602 = vpop.f32.mrf.mxu0
        %v3603 = vadd.f32 0.0, %v3602
        %v3604 = vpop.f32.mrf.mxu0
        %v3605 = vadd.f32 0.0, %v3604
        %3606 = vmatmul.bf16.gmra.mxu0 %v2411
        %v3607 = vpop.f32.mrf.mxu0
        %v3608 = vadd.f32 0.0, %v3607
        %v3609 = vpop.f32.mrf.mxu0
        %v3610 = vadd.f32 0.0, %v3609
        %3611 = vmatmul.bf16.gmra.mxu0 %v2415
        %v3612 = vpop.f32.mrf.mxu0
        %v3613 = vadd.f32 0.0, %v3612
        %v3614 = vpop.f32.mrf.mxu0
        %v3615 = vadd.f32 0.0, %v3614
        %3616 = vmatmul.bf16.gmra.mxu0 %v2419
        %v3617 = vpop.f32.mrf.mxu0
        %v3618 = vadd.f32 0.0, %v3617
        %v3619 = vpop.f32.mrf.mxu0
        %v3620 = vadd.f32 0.0, %v3619
        %3621 = vmatmul.bf16.gmra.mxu0 %v2423
        %v3622 = vpop.f32.mrf.mxu0
        %v3623 = vadd.f32 0.0, %v3622
        %v3624 = vpop.f32.mrf.mxu0
        %v3625 = vadd.f32 0.0, %v3624
        %3626 = vmatmul.bf16.gmra.mxu0 %v2427
        %v3627 = vpop.f32.mrf.mxu0
        %v3628 = vadd.f32 0.0, %v3627
        %v3629 = vpop.f32.mrf.mxu0
        %v3630 = vadd.f32 0.0, %v3629
        %3631 = vmatmul.bf16.gmra.mxu0 %v2431
        %v3632 = vpop.f32.mrf.mxu0
        %v3633 = vadd.f32 0.0, %v3632
        %v3634 = vpop.f32.mrf.mxu0
        %v3635 = vadd.f32 0.0, %v3634
        %3636 = vmatmul.bf16.gmra.mxu0 %v2435
        %v3637 = vpop.f32.mrf.mxu0
        %v3638 = vadd.f32 0.0, %v3637
        %v3639 = vpop.f32.mrf.mxu0
        %v3640 = vadd.f32 0.0, %v3639
        %3641 = vdwg.mxu0
        %3642 = vmatpush.bf16.msra.mxu0 %v3269
        %3643 = vmatpush.bf16.msra.mxu0 %v3265
        %3644 = vmatpush.bf16.msra.mxu0 %v3261
        %3645 = vmatpush.bf16.msra.mxu0 %v3257
        %3646 = vmatpush.bf16.msra.mxu0 %v3253
        %3647 = vmatpush.bf16.msra.mxu0 %v3249
        %3648 = vmatpush.bf16.msra.mxu0 %v3245
        %3649 = vmatpush.bf16.msra.mxu0 %v3241
        %3650 = vmatmul.bf16.gmra.mxu0 %v2408
        %v3651 = vpop.f32.mrf.mxu0
        %v3652 = vadd.f32 %v3603, %v3651
        %v3653 = vpop.f32.mrf.mxu0
        %v3654 = vadd.f32 %v3605, %v3653
        %3655 = vmatmul.bf16.gmra.mxu0 %v2412
        %v3656 = vpop.f32.mrf.mxu0
        %v3657 = vadd.f32 %v3608, %v3656
        %v3658 = vpop.f32.mrf.mxu0
        %v3659 = vadd.f32 %v3610, %v3658
        %3660 = vmatmul.bf16.gmra.mxu0 %v2416
        %v3661 = vpop.f32.mrf.mxu0
        %v3662 = vadd.f32 %v3613, %v3661
        %v3663 = vpop.f32.mrf.mxu0
        %v3664 = vadd.f32 %v3615, %v3663
        %3665 = vmatmul.bf16.gmra.mxu0 %v2420
        %v3666 = vpop.f32.mrf.mxu0
        %v3667 = vadd.f32 %v3618, %v3666
        %v3668 = vpop.f32.mrf.mxu0
        %v3669 = vadd.f32 %v3620, %v3668
        %3670 = vmatmul.bf16.gmra.mxu0 %v2424
        %v3671 = vpop.f32.mrf.mxu0
        %v3672 = vadd.f32 %v3623, %v3671
        %v3673 = vpop.f32.mrf.mxu0
        %v3674 = vadd.f32 %v3625, %v3673
        %3675 = vmatmul.bf16.gmra.mxu0 %v2428
        %v3676 = vpop.f32.mrf.mxu0
        %v3677 = vadd.f32 %v3628, %v3676
        %v3678 = vpop.f32.mrf.mxu0
        %v3679 = vadd.f32 %v3630, %v3678
        %3680 = vmatmul.bf16.gmra.mxu0 %v2432
        %v3681 = vpop.f32.mrf.mxu0
        %v3682 = vadd.f32 %v3633, %v3681
        %v3683 = vpop.f32.mrf.mxu0
        %v3684 = vadd.f32 %v3635, %v3683
        %3685 = vmatmul.bf16.gmra.mxu0 %v2436
        %v3686 = vpop.f32.mrf.mxu0
        %v3687 = vadd.f32 %v3638, %v3686
        %v3688 = vpop.f32.mrf.mxu0
        %v3689 = vadd.f32 %v3640, %v3688
        %3690 = vdwg.mxu0
        %3691 = vmatpush.bf16.msra.mxu0 %v3301
        %3692 = vmatpush.bf16.msra.mxu0 %v3297
        %3693 = vmatpush.bf16.msra.mxu0 %v3293
        %3694 = vmatpush.bf16.msra.mxu0 %v3289
        %3695 = vmatpush.bf16.msra.mxu0 %v3285
        %3696 = vmatpush.bf16.msra.mxu0 %v3281
        %3697 = vmatpush.bf16.msra.mxu0 %v3277
        %3698 = vmatpush.bf16.msra.mxu0 %v3273
        %3699 = vmatmul.bf16.gmra.mxu0 %v2409
        %v3700 = vpop.f32.mrf.mxu0
        %v3701 = vadd.f32 %v3652, %v3700
        %v3702 = vpop.f32.mrf.mxu0
        %v3703 = vadd.f32 %v3654, %v3702
        %3704 = vmatmul.bf16.gmra.mxu0 %v2413
        %v3705 = vpop.f32.mrf.mxu0
        %v3706 = vadd.f32 %v3657, %v3705
        %v3707 = vpop.f32.mrf.mxu0
        %v3708 = vadd.f32 %v3659, %v3707
        %3709 = vmatmul.bf16.gmra.mxu0 %v2417
        %v3710 = vpop.f32.mrf.mxu0
        %v3711 = vadd.f32 %v3662, %v3710
        %v3712 = vpop.f32.mrf.mxu0
        %v3713 = vadd.f32 %v3664, %v3712
        %3714 = vmatmul.bf16.gmra.mxu0 %v2421
        %v3715 = vpop.f32.mrf.mxu0
        %v3716 = vadd.f32 %v3667, %v3715
        %v3717 = vpop.f32.mrf.mxu0
        %v3718 = vadd.f32 %v3669, %v3717
        %3719 = vmatmul.bf16.gmra.mxu0 %v2425
        %v3720 = vpop.f32.mrf.mxu0
        %v3721 = vadd.f32 %v3672, %v3720
        %v3722 = vpop.f32.mrf.mxu0
        %v3723 = vadd.f32 %v3674, %v3722
        %3724 = vmatmul.bf16.gmra.mxu0 %v2429
        %v3725 = vpop.f32.mrf.mxu0
        %v3726 = vadd.f32 %v3677, %v3725
        %v3727 = vpop.f32.mrf.mxu0
        %v3728 = vadd.f32 %v3679, %v3727
        %3729 = vmatmul.bf16.gmra.mxu0 %v2433
        %v3730 = vpop.f32.mrf.mxu0
        %v3731 = vadd.f32 %v3682, %v3730
        %v3732 = vpop.f32.mrf.mxu0
        %v3733 = vadd.f32 %v3684, %v3732
        %3734 = vmatmul.bf16.gmra.mxu0 %v2437
        %v3735 = vpop.f32.mrf.mxu0
        %v3736 = vadd.f32 %v3687, %v3735
        %v3737 = vpop.f32.mrf.mxu0
        %v3738 = vadd.f32 %v3689, %v3737
        %3739 = vdwg.mxu0
        %3740 = vmatpush.bf16.msra.mxu0 %v3333
        %3741 = vmatpush.bf16.msra.mxu0 %v3329
        %3742 = vmatpush.bf16.msra.mxu0 %v3325
        %3743 = vmatpush.bf16.msra.mxu0 %v3321
        %3744 = vmatpush.bf16.msra.mxu0 %v3317
        %3745 = vmatpush.bf16.msra.mxu0 %v3313
        %3746 = vmatpush.bf16.msra.mxu0 %v3309
        %3747 = vmatpush.bf16.msra.mxu0 %v3305
        %3748 = vmatmul.bf16.gmra.mxu0 %v2410
        %v3749 = vpop.f32.mrf.mxu0
        %v3750 = vadd.f32 %v3701, %v3749
        %v3751 = vpop.f32.mrf.mxu0
        %v3752 = vadd.f32 %v3703, %v3751
        %3753 = vmatmul.bf16.gmra.mxu0 %v2414
        %v3754 = vpop.f32.mrf.mxu0
        %v3755 = vadd.f32 %v3706, %v3754
        %v3756 = vpop.f32.mrf.mxu0
        %v3757 = vadd.f32 %v3708, %v3756
        %3758 = vmatmul.bf16.gmra.mxu0 %v2418
        %v3759 = vpop.f32.mrf.mxu0
        %v3760 = vadd.f32 %v3711, %v3759
        %v3761 = vpop.f32.mrf.mxu0
        %v3762 = vadd.f32 %v3713, %v3761
        %3763 = vmatmul.bf16.gmra.mxu0 %v2422
        %v3764 = vpop.f32.mrf.mxu0
        %v3765 = vadd.f32 %v3716, %v3764
        %v3766 = vpop.f32.mrf.mxu0
        %v3767 = vadd.f32 %v3718, %v3766
        %3768 = vmatmul.bf16.gmra.mxu0 %v2426
        %v3769 = vpop.f32.mrf.mxu0
        %v3770 = vadd.f32 %v3721, %v3769
        %v3771 = vpop.f32.mrf.mxu0
        %v3772 = vadd.f32 %v3723, %v3771
        %3773 = vmatmul.bf16.gmra.mxu0 %v2430
        %v3774 = vpop.f32.mrf.mxu0
        %v3775 = vadd.f32 %v3726, %v3774
        %v3776 = vpop.f32.mrf.mxu0
        %v3777 = vadd.f32 %v3728, %v3776
        %3778 = vmatmul.bf16.gmra.mxu0 %v2434
        %v3779 = vpop.f32.mrf.mxu0
        %v3780 = vadd.f32 %v3731, %v3779
        %v3781 = vpop.f32.mrf.mxu0
        %v3782 = vadd.f32 %v3733, %v3781
        %3783 = vmatmul.bf16.gmra.mxu0 %v2438
        %v3784 = vpop.f32.mrf.mxu0
        %v3785 = vadd.f32 %v3736, %v3784
        %v3786 = vpop.f32.mrf.mxu0
        %v3787 = vadd.f32 %v3738, %v3786
        %3788 = vdwg.mxu0
        %3789 = vmatpush.bf16.msra.mxu0 %v3365
        %3790 = vmatpush.bf16.msra.mxu0 %v3361
        %3791 = vmatpush.bf16.msra.mxu0 %v3357
        %3792 = vmatpush.bf16.msra.mxu0 %v3353
        %3793 = vmatpush.bf16.msra.mxu0 %v3349
        %3794 = vmatpush.bf16.msra.mxu0 %v3345
        %3795 = vmatpush.bf16.msra.mxu0 %v3341
        %3796 = vmatpush.bf16.msra.mxu0 %v3337
        %3797 = vmatmul.bf16.gmra.mxu0 %v2411
        %v3798 = vpop.f32.mrf.mxu0
        %v3799 = vadd.f32 %v3750, %v3798
        %v3800 = vpop.f32.mrf.mxu0
        %v3801 = vadd.f32 %v3752, %v3800
        %3802 = vmatmul.bf16.gmra.mxu0 %v2415
        %v3803 = vpop.f32.mrf.mxu0
        %v3804 = vadd.f32 %v3755, %v3803
        %v3805 = vpop.f32.mrf.mxu0
        %v3806 = vadd.f32 %v3757, %v3805
        %3807 = vmatmul.bf16.gmra.mxu0 %v2419
        %v3808 = vpop.f32.mrf.mxu0
        %v3809 = vadd.f32 %v3760, %v3808
        %v3810 = vpop.f32.mrf.mxu0
        %v3811 = vadd.f32 %v3762, %v3810
        %3812 = vmatmul.bf16.gmra.mxu0 %v2423
        %v3813 = vpop.f32.mrf.mxu0
        %v3814 = vadd.f32 %v3765, %v3813
        %v3815 = vpop.f32.mrf.mxu0
        %v3816 = vadd.f32 %v3767, %v3815
        %3817 = vmatmul.bf16.gmra.mxu0 %v2427
        %v3818 = vpop.f32.mrf.mxu0
        %v3819 = vadd.f32 %v3770, %v3818
        %v3820 = vpop.f32.mrf.mxu0
        %v3821 = vadd.f32 %v3772, %v3820
        %3822 = vmatmul.bf16.gmra.mxu0 %v2431
        %v3823 = vpop.f32.mrf.mxu0
        %v3824 = vadd.f32 %v3775, %v3823
        %v3825 = vpop.f32.mrf.mxu0
        %v3826 = vadd.f32 %v3777, %v3825
        %3827 = vmatmul.bf16.gmra.mxu0 %v2435
        %v3828 = vpop.f32.mrf.mxu0
        %v3829 = vadd.f32 %v3780, %v3828
        %v3830 = vpop.f32.mrf.mxu0
        %v3831 = vadd.f32 %v3782, %v3830
        %3832 = vmatmul.bf16.gmra.mxu0 %v2439
        %v3833 = vpop.f32.mrf.mxu0
        %v3834 = vadd.f32 %v3785, %v3833
        %v3835 = vpop.f32.mrf.mxu0
        %v3836 = vadd.f32 %v3787, %v3835
        %3837 = vdwg.mxu0
        %3838 = vmatpush.bf16.msra.mxu0 %v3397
        %3839 = vmatpush.bf16.msra.mxu0 %v3393
        %3840 = vmatpush.bf16.msra.mxu0 %v3389
        %3841 = vmatpush.bf16.msra.mxu0 %v3385
        %3842 = vmatpush.bf16.msra.mxu0 %v3381
        %3843 = vmatpush.bf16.msra.mxu0 %v3377
        %3844 = vmatpush.bf16.msra.mxu0 %v3373
        %3845 = vmatpush.bf16.msra.mxu0 %v3369
        %3846 = vmatmul.bf16.gmra.mxu0 %v2412
        %v3847 = vpop.f32.mrf.mxu0
        %v3848 = vadd.f32 %v3799, %v3847
        %v3849 = vpop.f32.mrf.mxu0
        %v3850 = vadd.f32 %v3801, %v3849
        %3851 = vmatmul.bf16.gmra.mxu0 %v2416
        %v3852 = vpop.f32.mrf.mxu0
        %v3853 = vadd.f32 %v3804, %v3852
        %v3854 = vpop.f32.mrf.mxu0
        %v3855 = vadd.f32 %v3806, %v3854
        %3856 = vmatmul.bf16.gmra.mxu0 %v2420
        %v3857 = vpop.f32.mrf.mxu0
        %v3858 = vadd.f32 %v3809, %v3857
        %v3859 = vpop.f32.mrf.mxu0
        %v3860 = vadd.f32 %v3811, %v3859
        %3861 = vmatmul.bf16.gmra.mxu0 %v2424
        %v3862 = vpop.f32.mrf.mxu0
        %v3863 = vadd.f32 %v3814, %v3862
        %v3864 = vpop.f32.mrf.mxu0
        %v3865 = vadd.f32 %v3816, %v3864
        %3866 = vmatmul.bf16.gmra.mxu0 %v2428
        %v3867 = vpop.f32.mrf.mxu0
        %v3868 = vadd.f32 %v3819, %v3867
        %v3869 = vpop.f32.mrf.mxu0
        %v3870 = vadd.f32 %v3821, %v3869
        %3871 = vmatmul.bf16.gmra.mxu0 %v2432
        %v3872 = vpop.f32.mrf.mxu0
        %v3873 = vadd.f32 %v3824, %v3872
        %v3874 = vpop.f32.mrf.mxu0
        %v3875 = vadd.f32 %v3826, %v3874
        %3876 = vmatmul.bf16.gmra.mxu0 %v2436
        %v3877 = vpop.f32.mrf.mxu0
        %v3878 = vadd.f32 %v3829, %v3877
        %v3879 = vpop.f32.mrf.mxu0
        %v3880 = vadd.f32 %v3831, %v3879
        %3881 = vmatmul.bf16.gmra.mxu0 %v2440
        %v3882 = vpop.f32.mrf.mxu0
        %v3883 = vadd.f32 %v3834, %v3882
        %v3884 = vpop.f32.mrf.mxu0
        %v3885 = vadd.f32 %v3836, %v3884
        %3886 = vdwg.mxu0
        %3887 = vmatpush.bf16.msra.mxu0 %v3238
        %3888 = vmatpush.bf16.msra.mxu0 %v3234
        %3889 = vmatpush.bf16.msra.mxu0 %v3230
        %3890 = vmatpush.bf16.msra.mxu0 %v3226
        %3891 = vmatpush.bf16.msra.mxu0 %v3222
        %3892 = vmatpush.bf16.msra.mxu0 %v3218
        %3893 = vmatpush.bf16.msra.mxu0 %v3214
        %3894 = vmatpush.bf16.msra.mxu0 %v3210
        %3895 = vmatmul.bf16.gmra.mxu0 %v2407
        %v3896 = vpop.f32.mrf.mxu0
        %v3897 = vadd.f32 0.0, %v3896
        %v3898 = vpop.f32.mrf.mxu0
        %v3899 = vadd.f32 0.0, %v3898
        %3900 = vmatmul.bf16.gmra.mxu0 %v2411
        %v3901 = vpop.f32.mrf.mxu0
        %v3902 = vadd.f32 0.0, %v3901
        %v3903 = vpop.f32.mrf.mxu0
        %v3904 = vadd.f32 0.0, %v3903
        %3905 = vmatmul.bf16.gmra.mxu0 %v2415
        %v3906 = vpop.f32.mrf.mxu0
        %v3907 = vadd.f32 0.0, %v3906
        %v3908 = vpop.f32.mrf.mxu0
        %v3909 = vadd.f32 0.0, %v3908
        %3910 = vmatmul.bf16.gmra.mxu0 %v2419
        %v3911 = vpop.f32.mrf.mxu0
        %v3912 = vadd.f32 0.0, %v3911
        %v3913 = vpop.f32.mrf.mxu0
        %v3914 = vadd.f32 0.0, %v3913
        %3915 = vmatmul.bf16.gmra.mxu0 %v2423
        %v3916 = vpop.f32.mrf.mxu0
        %v3917 = vadd.f32 0.0, %v3916
        %v3918 = vpop.f32.mrf.mxu0
        %v3919 = vadd.f32 0.0, %v3918
        %3920 = vmatmul.bf16.gmra.mxu0 %v2427
        %v3921 = vpop.f32.mrf.mxu0
        %v3922 = vadd.f32 0.0, %v3921
        %v3923 = vpop.f32.mrf.mxu0
        %v3924 = vadd.f32 0.0, %v3923
        %3925 = vmatmul.bf16.gmra.mxu0 %v2431
        %v3926 = vpop.f32.mrf.mxu0
        %v3927 = vadd.f32 0.0, %v3926
        %v3928 = vpop.f32.mrf.mxu0
        %v3929 = vadd.f32 0.0, %v3928
        %3930 = vmatmul.bf16.gmra.mxu0 %v2435
        %v3931 = vpop.f32.mrf.mxu0
        %v3932 = vadd.f32 0.0, %v3931
        %v3933 = vpop.f32.mrf.mxu0
        %v3934 = vadd.f32 0.0, %v3933
        %3935 = vdwg.mxu0
        %3936 = vmatpush.bf16.msra.mxu0 %v3270
        %3937 = vmatpush.bf16.msra.mxu0 %v3266
        %3938 = vmatpush.bf16.msra.mxu0 %v3262
        %3939 = vmatpush.bf16.msra.mxu0 %v3258
        %3940 = vmatpush.bf16.msra.mxu0 %v3254
        %3941 = vmatpush.bf16.msra.mxu0 %v3250
        %3942 = vmatpush.bf16.msra.mxu0 %v3246
        %3943 = vmatpush.bf16.msra.mxu0 %v3242
        %3944 = vmatmul.bf16.gmra.mxu0 %v2408
        %v3945 = vpop.f32.mrf.mxu0
        %v3946 = vadd.f32 %v3897, %v3945
        %v3947 = vpop.f32.mrf.mxu0
        %v3948 = vadd.f32 %v3899, %v3947
        %3949 = vmatmul.bf16.gmra.mxu0 %v2412
        %v3950 = vpop.f32.mrf.mxu0
        %v3951 = vadd.f32 %v3902, %v3950
        %v3952 = vpop.f32.mrf.mxu0
        %v3953 = vadd.f32 %v3904, %v3952
        %3954 = vmatmul.bf16.gmra.mxu0 %v2416
        %v3955 = vpop.f32.mrf.mxu0
        %v3956 = vadd.f32 %v3907, %v3955
        %v3957 = vpop.f32.mrf.mxu0
        %v3958 = vadd.f32 %v3909, %v3957
        %3959 = vmatmul.bf16.gmra.mxu0 %v2420
        %v3960 = vpop.f32.mrf.mxu0
        %v3961 = vadd.f32 %v3912, %v3960
        %v3962 = vpop.f32.mrf.mxu0
        %v3963 = vadd.f32 %v3914, %v3962
        %3964 = vmatmul.bf16.gmra.mxu0 %v2424
        %v3965 = vpop.f32.mrf.mxu0
        %v3966 = vadd.f32 %v3917, %v3965
        %v3967 = vpop.f32.mrf.mxu0
        %v3968 = vadd.f32 %v3919, %v3967
        %3969 = vmatmul.bf16.gmra.mxu0 %v2428
        %v3970 = vpop.f32.mrf.mxu0
        %v3971 = vadd.f32 %v3922, %v3970
        %v3972 = vpop.f32.mrf.mxu0
        %v3973 = vadd.f32 %v3924, %v3972
        %3974 = vmatmul.bf16.gmra.mxu0 %v2432
        %v3975 = vpop.f32.mrf.mxu0
        %v3976 = vadd.f32 %v3927, %v3975
        %v3977 = vpop.f32.mrf.mxu0
        %v3978 = vadd.f32 %v3929, %v3977
        %3979 = vmatmul.bf16.gmra.mxu0 %v2436
        %v3980 = vpop.f32.mrf.mxu0
        %v3981 = vadd.f32 %v3932, %v3980
        %v3982 = vpop.f32.mrf.mxu0
        %v3983 = vadd.f32 %v3934, %v3982
        %3984 = vdwg.mxu0
        %3985 = vmatpush.bf16.msra.mxu0 %v3302
        %3986 = vmatpush.bf16.msra.mxu0 %v3298
        %3987 = vmatpush.bf16.msra.mxu0 %v3294
        %3988 = vmatpush.bf16.msra.mxu0 %v3290
        %3989 = vmatpush.bf16.msra.mxu0 %v3286
        %3990 = vmatpush.bf16.msra.mxu0 %v3282
        %3991 = vmatpush.bf16.msra.mxu0 %v3278
        %3992 = vmatpush.bf16.msra.mxu0 %v3274
        %3993 = vmatmul.bf16.gmra.mxu0 %v2409
        %v3994 = vpop.f32.mrf.mxu0
        %v3995 = vadd.f32 %v3946, %v3994
        %v3996 = vpop.f32.mrf.mxu0
        %v3997 = vadd.f32 %v3948, %v3996
        %3998 = vmatmul.bf16.gmra.mxu0 %v2413
        %v3999 = vpop.f32.mrf.mxu0
        %v4000 = vadd.f32 %v3951, %v3999
        %v4001 = vpop.f32.mrf.mxu0
        %v4002 = vadd.f32 %v3953, %v4001
        %4003 = vmatmul.bf16.gmra.mxu0 %v2417
        %v4004 = vpop.f32.mrf.mxu0
        %v4005 = vadd.f32 %v3956, %v4004
        %v4006 = vpop.f32.mrf.mxu0
        %v4007 = vadd.f32 %v3958, %v4006
        %4008 = vmatmul.bf16.gmra.mxu0 %v2421
        %v4009 = vpop.f32.mrf.mxu0
        %v4010 = vadd.f32 %v3961, %v4009
        %v4011 = vpop.f32.mrf.mxu0
        %v4012 = vadd.f32 %v3963, %v4011
        %4013 = vmatmul.bf16.gmra.mxu0 %v2425
        %v4014 = vpop.f32.mrf.mxu0
        %v4015 = vadd.f32 %v3966, %v4014
        %v4016 = vpop.f32.mrf.mxu0
        %v4017 = vadd.f32 %v3968, %v4016
        %4018 = vmatmul.bf16.gmra.mxu0 %v2429
        %v4019 = vpop.f32.mrf.mxu0
        %v4020 = vadd.f32 %v3971, %v4019
        %v4021 = vpop.f32.mrf.mxu0
        %v4022 = vadd.f32 %v3973, %v4021
        %4023 = vmatmul.bf16.gmra.mxu0 %v2433
        %v4024 = vpop.f32.mrf.mxu0
        %v4025 = vadd.f32 %v3976, %v4024
        %v4026 = vpop.f32.mrf.mxu0
        %v4027 = vadd.f32 %v3978, %v4026
        %4028 = vmatmul.bf16.gmra.mxu0 %v2437
        %v4029 = vpop.f32.mrf.mxu0
        %v4030 = vadd.f32 %v3981, %v4029
        %v4031 = vpop.f32.mrf.mxu0
        %v4032 = vadd.f32 %v3983, %v4031
        %4033 = vdwg.mxu0
        %4034 = vmatpush.bf16.msra.mxu0 %v3334
        %4035 = vmatpush.bf16.msra.mxu0 %v3330
        %4036 = vmatpush.bf16.msra.mxu0 %v3326
        %4037 = vmatpush.bf16.msra.mxu0 %v3322
        %4038 = vmatpush.bf16.msra.mxu0 %v3318
        %4039 = vmatpush.bf16.msra.mxu0 %v3314
        %4040 = vmatpush.bf16.msra.mxu0 %v3310
        %4041 = vmatpush.bf16.msra.mxu0 %v3306
        %4042 = vmatmul.bf16.gmra.mxu0 %v2410
        %v4043 = vpop.f32.mrf.mxu0
        %v4044 = vadd.f32 %v3995, %v4043
        %v4045 = vpop.f32.mrf.mxu0
        %v4046 = vadd.f32 %v3997, %v4045
        %4047 = vmatmul.bf16.gmra.mxu0 %v2414
        %v4048 = vpop.f32.mrf.mxu0
        %v4049 = vadd.f32 %v4000, %v4048
        %v4050 = vpop.f32.mrf.mxu0
        %v4051 = vadd.f32 %v4002, %v4050
        %4052 = vmatmul.bf16.gmra.mxu0 %v2418
        %v4053 = vpop.f32.mrf.mxu0
        %v4054 = vadd.f32 %v4005, %v4053
        %v4055 = vpop.f32.mrf.mxu0
        %v4056 = vadd.f32 %v4007, %v4055
        %4057 = vmatmul.bf16.gmra.mxu0 %v2422
        %v4058 = vpop.f32.mrf.mxu0
        %v4059 = vadd.f32 %v4010, %v4058
        %v4060 = vpop.f32.mrf.mxu0
        %v4061 = vadd.f32 %v4012, %v4060
        %4062 = vmatmul.bf16.gmra.mxu0 %v2426
        %v4063 = vpop.f32.mrf.mxu0
        %v4064 = vadd.f32 %v4015, %v4063
        %v4065 = vpop.f32.mrf.mxu0
        %v4066 = vadd.f32 %v4017, %v4065
        %4067 = vmatmul.bf16.gmra.mxu0 %v2430
        %v4068 = vpop.f32.mrf.mxu0
        %v4069 = vadd.f32 %v4020, %v4068
        %v4070 = vpop.f32.mrf.mxu0
        %v4071 = vadd.f32 %v4022, %v4070
        %4072 = vmatmul.bf16.gmra.mxu0 %v2434
        %v4073 = vpop.f32.mrf.mxu0
        %v4074 = vadd.f32 %v4025, %v4073
        %v4075 = vpop.f32.mrf.mxu0
        %v4076 = vadd.f32 %v4027, %v4075
        %4077 = vmatmul.bf16.gmra.mxu0 %v2438
        %v4078 = vpop.f32.mrf.mxu0
        %v4079 = vadd.f32 %v4030, %v4078
        %v4080 = vpop.f32.mrf.mxu0
        %v4081 = vadd.f32 %v4032, %v4080
        %4082 = vdwg.mxu0
        %4083 = vmatpush.bf16.msra.mxu0 %v3366
        %4084 = vmatpush.bf16.msra.mxu0 %v3362
        %4085 = vmatpush.bf16.msra.mxu0 %v3358
        %4086 = vmatpush.bf16.msra.mxu0 %v3354
        %4087 = vmatpush.bf16.msra.mxu0 %v3350
        %4088 = vmatpush.bf16.msra.mxu0 %v3346
        %4089 = vmatpush.bf16.msra.mxu0 %v3342
        %4090 = vmatpush.bf16.msra.mxu0 %v3338
        %4091 = vmatmul.bf16.gmra.mxu0 %v2411
        %v4092 = vpop.f32.mrf.mxu0
        %v4093 = vadd.f32 %v4044, %v4092
        %v4094 = vpop.f32.mrf.mxu0
        %v4095 = vadd.f32 %v4046, %v4094
        %4096 = vmatmul.bf16.gmra.mxu0 %v2415
        %v4097 = vpop.f32.mrf.mxu0
        %v4098 = vadd.f32 %v4049, %v4097
        %v4099 = vpop.f32.mrf.mxu0
        %v4100 = vadd.f32 %v4051, %v4099
        %4101 = vmatmul.bf16.gmra.mxu0 %v2419
        %v4102 = vpop.f32.mrf.mxu0
        %v4103 = vadd.f32 %v4054, %v4102
        %v4104 = vpop.f32.mrf.mxu0
        %v4105 = vadd.f32 %v4056, %v4104
        %4106 = vmatmul.bf16.gmra.mxu0 %v2423
        %v4107 = vpop.f32.mrf.mxu0
        %v4108 = vadd.f32 %v4059, %v4107
        %v4109 = vpop.f32.mrf.mxu0
        %v4110 = vadd.f32 %v4061, %v4109
        %4111 = vmatmul.bf16.gmra.mxu0 %v2427
        %v4112 = vpop.f32.mrf.mxu0
        %v4113 = vadd.f32 %v4064, %v4112
        %v4114 = vpop.f32.mrf.mxu0
        %v4115 = vadd.f32 %v4066, %v4114
        %4116 = vmatmul.bf16.gmra.mxu0 %v2431
        %v4117 = vpop.f32.mrf.mxu0
        %v4118 = vadd.f32 %v4069, %v4117
        %v4119 = vpop.f32.mrf.mxu0
        %v4120 = vadd.f32 %v4071, %v4119
        %4121 = vmatmul.bf16.gmra.mxu0 %v2435
        %v4122 = vpop.f32.mrf.mxu0
        %v4123 = vadd.f32 %v4074, %v4122
        %v4124 = vpop.f32.mrf.mxu0
        %v4125 = vadd.f32 %v4076, %v4124
        %4126 = vmatmul.bf16.gmra.mxu0 %v2439
        %v4127 = vpop.f32.mrf.mxu0
        %v4128 = vadd.f32 %v4079, %v4127
        %v4129 = vpop.f32.mrf.mxu0
        %v4130 = vadd.f32 %v4081, %v4129
        %4131 = vdwg.mxu0
        %4132 = vmatpush.bf16.msra.mxu0 %v3398
        %4133 = vmatpush.bf16.msra.mxu0 %v3394
        %4134 = vmatpush.bf16.msra.mxu0 %v3390
        %4135 = vmatpush.bf16.msra.mxu0 %v3386
        %4136 = vmatpush.bf16.msra.mxu0 %v3382
        %4137 = vmatpush.bf16.msra.mxu0 %v3378
        %4138 = vmatpush.bf16.msra.mxu0 %v3374
        %4139 = vmatpush.bf16.msra.mxu0 %v3370
        %4140 = vmatmul.bf16.gmra.mxu0 %v2412
        %v4141 = vpop.f32.mrf.mxu0
        %v4142 = vadd.f32 %v4093, %v4141
        %v4143 = vpop.f32.mrf.mxu0
        %v4144 = vadd.f32 %v4095, %v4143
        %4145 = vmatmul.bf16.gmra.mxu0 %v2416
        %v4146 = vpop.f32.mrf.mxu0
        %v4147 = vadd.f32 %v4098, %v4146
        %v4148 = vpop.f32.mrf.mxu0
        %v4149 = vadd.f32 %v4100, %v4148
        %4150 = vmatmul.bf16.gmra.mxu0 %v2420
        %v4151 = vpop.f32.mrf.mxu0
        %v4152 = vadd.f32 %v4103, %v4151
        %v4153 = vpop.f32.mrf.mxu0
        %v4154 = vadd.f32 %v4105, %v4153
        %4155 = vmatmul.bf16.gmra.mxu0 %v2424
        %v4156 = vpop.f32.mrf.mxu0
        %v4157 = vadd.f32 %v4108, %v4156
        %v4158 = vpop.f32.mrf.mxu0
        %v4159 = vadd.f32 %v4110, %v4158
        %4160 = vmatmul.bf16.gmra.mxu0 %v2428
        %v4161 = vpop.f32.mrf.mxu0
        %v4162 = vadd.f32 %v4113, %v4161
        %v4163 = vpop.f32.mrf.mxu0
        %v4164 = vadd.f32 %v4115, %v4163
        %4165 = vmatmul.bf16.gmra.mxu0 %v2432
        %v4166 = vpop.f32.mrf.mxu0
        %v4167 = vadd.f32 %v4118, %v4166
        %v4168 = vpop.f32.mrf.mxu0
        %v4169 = vadd.f32 %v4120, %v4168
        %4170 = vmatmul.bf16.gmra.mxu0 %v2436
        %v4171 = vpop.f32.mrf.mxu0
        %v4172 = vadd.f32 %v4123, %v4171
        %v4173 = vpop.f32.mrf.mxu0
        %v4174 = vadd.f32 %v4125, %v4173
        %4175 = vmatmul.bf16.gmra.mxu0 %v2440
        %v4176 = vpop.f32.mrf.mxu0
        %v4177 = vadd.f32 %v4128, %v4176
        %v4178 = vpop.f32.mrf.mxu0
        %v4179 = vadd.f32 %v4130, %v4178
        %4180 = vdwg.mxu0
        %4181 = vmatpush.bf16.msra.mxu0 %v3239
        %4182 = vmatpush.bf16.msra.mxu0 %v3235
        %4183 = vmatpush.bf16.msra.mxu0 %v3231
        %4184 = vmatpush.bf16.msra.mxu0 %v3227
        %4185 = vmatpush.bf16.msra.mxu0 %v3223
        %4186 = vmatpush.bf16.msra.mxu0 %v3219
        %4187 = vmatpush.bf16.msra.mxu0 %v3215
        %4188 = vmatpush.bf16.msra.mxu0 %v3211
        %4189 = vmatmul.bf16.gmra.mxu0 %v2407
        %v4190 = vpop.f32.mrf.mxu0
        %v4191 = vadd.f32 0.0, %v4190
        %v4192 = vpop.f32.mrf.mxu0
        %v4193 = vadd.f32 0.0, %v4192
        %4194 = vmatmul.bf16.gmra.mxu0 %v2411
        %v4195 = vpop.f32.mrf.mxu0
        %v4196 = vadd.f32 0.0, %v4195
        %v4197 = vpop.f32.mrf.mxu0
        %v4198 = vadd.f32 0.0, %v4197
        %4199 = vmatmul.bf16.gmra.mxu0 %v2415
        %v4200 = vpop.f32.mrf.mxu0
        %v4201 = vadd.f32 0.0, %v4200
        %v4202 = vpop.f32.mrf.mxu0
        %v4203 = vadd.f32 0.0, %v4202
        %4204 = vmatmul.bf16.gmra.mxu0 %v2419
        %v4205 = vpop.f32.mrf.mxu0
        %v4206 = vadd.f32 0.0, %v4205
        %v4207 = vpop.f32.mrf.mxu0
        %v4208 = vadd.f32 0.0, %v4207
        %4209 = vmatmul.bf16.gmra.mxu0 %v2423
        %v4210 = vpop.f32.mrf.mxu0
        %v4211 = vadd.f32 0.0, %v4210
        %v4212 = vpop.f32.mrf.mxu0
        %v4213 = vadd.f32 0.0, %v4212
        %4214 = vmatmul.bf16.gmra.mxu0 %v2427
        %v4215 = vpop.f32.mrf.mxu0
        %v4216 = vadd.f32 0.0, %v4215
        %v4217 = vpop.f32.mrf.mxu0
        %v4218 = vadd.f32 0.0, %v4217
        %4219 = vmatmul.bf16.gmra.mxu0 %v2431
        %v4220 = vpop.f32.mrf.mxu0
        %v4221 = vadd.f32 0.0, %v4220
        %v4222 = vpop.f32.mrf.mxu0
        %v4223 = vadd.f32 0.0, %v4222
        %4224 = vmatmul.bf16.gmra.mxu0 %v2435
        %v4225 = vpop.f32.mrf.mxu0
        %v4226 = vadd.f32 0.0, %v4225
        %v4227 = vpop.f32.mrf.mxu0
        %v4228 = vadd.f32 0.0, %v4227
        %4229 = vdwg.mxu0
        %4230 = vmatpush.bf16.msra.mxu0 %v3271
        %4231 = vmatpush.bf16.msra.mxu0 %v3267
        %4232 = vmatpush.bf16.msra.mxu0 %v3263
        %4233 = vmatpush.bf16.msra.mxu0 %v3259
        %4234 = vmatpush.bf16.msra.mxu0 %v3255
        %4235 = vmatpush.bf16.msra.mxu0 %v3251
        %4236 = vmatpush.bf16.msra.mxu0 %v3247
        %4237 = vmatpush.bf16.msra.mxu0 %v3243
        %4238 = vmatmul.bf16.gmra.mxu0 %v2408
        %v4239 = vpop.f32.mrf.mxu0
        %v4240 = vadd.f32 %v4191, %v4239
        %v4241 = vpop.f32.mrf.mxu0
        %v4242 = vadd.f32 %v4193, %v4241
        %4243 = vmatmul.bf16.gmra.mxu0 %v2412
        %v4244 = vpop.f32.mrf.mxu0
        %v4245 = vadd.f32 %v4196, %v4244
        %v4246 = vpop.f32.mrf.mxu0
        %v4247 = vadd.f32 %v4198, %v4246
        %4248 = vmatmul.bf16.gmra.mxu0 %v2416
        %v4249 = vpop.f32.mrf.mxu0
        %v4250 = vadd.f32 %v4201, %v4249
        %v4251 = vpop.f32.mrf.mxu0
        %v4252 = vadd.f32 %v4203, %v4251
        %4253 = vmatmul.bf16.gmra.mxu0 %v2420
        %v4254 = vpop.f32.mrf.mxu0
        %v4255 = vadd.f32 %v4206, %v4254
        %v4256 = vpop.f32.mrf.mxu0
        %v4257 = vadd.f32 %v4208, %v4256
        %4258 = vmatmul.bf16.gmra.mxu0 %v2424
        %v4259 = vpop.f32.mrf.mxu0
        %v4260 = vadd.f32 %v4211, %v4259
        %v4261 = vpop.f32.mrf.mxu0
        %v4262 = vadd.f32 %v4213, %v4261
        %4263 = vmatmul.bf16.gmra.mxu0 %v2428
        %v4264 = vpop.f32.mrf.mxu0
        %v4265 = vadd.f32 %v4216, %v4264
        %v4266 = vpop.f32.mrf.mxu0
        %v4267 = vadd.f32 %v4218, %v4266
        %4268 = vmatmul.bf16.gmra.mxu0 %v2432
        %v4269 = vpop.f32.mrf.mxu0
        %v4270 = vadd.f32 %v4221, %v4269
        %v4271 = vpop.f32.mrf.mxu0
        %v4272 = vadd.f32 %v4223, %v4271
        %4273 = vmatmul.bf16.gmra.mxu0 %v2436
        %v4274 = vpop.f32.mrf.mxu0
        %v4275 = vadd.f32 %v4226, %v4274
        %v4276 = vpop.f32.mrf.mxu0
        %v4277 = vadd.f32 %v4228, %v4276
        %4278 = vdwg.mxu0
        %4279 = vmatpush.bf16.msra.mxu0 %v3303
        %4280 = vmatpush.bf16.msra.mxu0 %v3299
        %4281 = vmatpush.bf16.msra.mxu0 %v3295
        %4282 = vmatpush.bf16.msra.mxu0 %v3291
        %4283 = vmatpush.bf16.msra.mxu0 %v3287
        %4284 = vmatpush.bf16.msra.mxu0 %v3283
        %4285 = vmatpush.bf16.msra.mxu0 %v3279
        %4286 = vmatpush.bf16.msra.mxu0 %v3275
        %4287 = vmatmul.bf16.gmra.mxu0 %v2409
        %v4288 = vpop.f32.mrf.mxu0
        %v4289 = vadd.f32 %v4240, %v4288
        %v4290 = vpop.f32.mrf.mxu0
        %v4291 = vadd.f32 %v4242, %v4290
        %4292 = vmatmul.bf16.gmra.mxu0 %v2413
        %v4293 = vpop.f32.mrf.mxu0
        %v4294 = vadd.f32 %v4245, %v4293
        %v4295 = vpop.f32.mrf.mxu0
        %v4296 = vadd.f32 %v4247, %v4295
        %4297 = vmatmul.bf16.gmra.mxu0 %v2417
        %v4298 = vpop.f32.mrf.mxu0
        %v4299 = vadd.f32 %v4250, %v4298
        %v4300 = vpop.f32.mrf.mxu0
        %v4301 = vadd.f32 %v4252, %v4300
        %4302 = vmatmul.bf16.gmra.mxu0 %v2421
        %v4303 = vpop.f32.mrf.mxu0
        %v4304 = vadd.f32 %v4255, %v4303
        %v4305 = vpop.f32.mrf.mxu0
        %v4306 = vadd.f32 %v4257, %v4305
        %4307 = vmatmul.bf16.gmra.mxu0 %v2425
        %v4308 = vpop.f32.mrf.mxu0
        %v4309 = vadd.f32 %v4260, %v4308
        %v4310 = vpop.f32.mrf.mxu0
        %v4311 = vadd.f32 %v4262, %v4310
        %4312 = vmatmul.bf16.gmra.mxu0 %v2429
        %v4313 = vpop.f32.mrf.mxu0
        %v4314 = vadd.f32 %v4265, %v4313
        %v4315 = vpop.f32.mrf.mxu0
        %v4316 = vadd.f32 %v4267, %v4315
        %4317 = vmatmul.bf16.gmra.mxu0 %v2433
        %v4318 = vpop.f32.mrf.mxu0
        %v4319 = vadd.f32 %v4270, %v4318
        %v4320 = vpop.f32.mrf.mxu0
        %v4321 = vadd.f32 %v4272, %v4320
        %4322 = vmatmul.bf16.gmra.mxu0 %v2437
        %v4323 = vpop.f32.mrf.mxu0
        %v4324 = vadd.f32 %v4275, %v4323
        %v4325 = vpop.f32.mrf.mxu0
        %v4326 = vadd.f32 %v4277, %v4325
        %4327 = vdwg.mxu0
        %4328 = vmatpush.bf16.msra.mxu0 %v3335
        %4329 = vmatpush.bf16.msra.mxu0 %v3331
        %4330 = vmatpush.bf16.msra.mxu0 %v3327
        %4331 = vmatpush.bf16.msra.mxu0 %v3323
        %4332 = vmatpush.bf16.msra.mxu0 %v3319
        %4333 = vmatpush.bf16.msra.mxu0 %v3315
        %4334 = vmatpush.bf16.msra.mxu0 %v3311
        %4335 = vmatpush.bf16.msra.mxu0 %v3307
        %4336 = vmatmul.bf16.gmra.mxu0 %v2410
        %v4337 = vpop.f32.mrf.mxu0
        %v4338 = vadd.f32 %v4289, %v4337
        %v4339 = vpop.f32.mrf.mxu0
        %v4340 = vadd.f32 %v4291, %v4339
        %4341 = vmatmul.bf16.gmra.mxu0 %v2414
        %v4342 = vpop.f32.mrf.mxu0
        %v4343 = vadd.f32 %v4294, %v4342
        %v4344 = vpop.f32.mrf.mxu0
        %v4345 = vadd.f32 %v4296, %v4344
        %4346 = vmatmul.bf16.gmra.mxu0 %v2418
        %v4347 = vpop.f32.mrf.mxu0
        %v4348 = vadd.f32 %v4299, %v4347
        %v4349 = vpop.f32.mrf.mxu0
        %v4350 = vadd.f32 %v4301, %v4349
        %4351 = vmatmul.bf16.gmra.mxu0 %v2422
        %v4352 = vpop.f32.mrf.mxu0
        %v4353 = vadd.f32 %v4304, %v4352
        %v4354 = vpop.f32.mrf.mxu0
        %v4355 = vadd.f32 %v4306, %v4354
        %4356 = vmatmul.bf16.gmra.mxu0 %v2426
        %v4357 = vpop.f32.mrf.mxu0
        %v4358 = vadd.f32 %v4309, %v4357
        %v4359 = vpop.f32.mrf.mxu0
        %v4360 = vadd.f32 %v4311, %v4359
        %4361 = vmatmul.bf16.gmra.mxu0 %v2430
        %v4362 = vpop.f32.mrf.mxu0
        %v4363 = vadd.f32 %v4314, %v4362
        %v4364 = vpop.f32.mrf.mxu0
        %v4365 = vadd.f32 %v4316, %v4364
        %4366 = vmatmul.bf16.gmra.mxu0 %v2434
        %v4367 = vpop.f32.mrf.mxu0
        %v4368 = vadd.f32 %v4319, %v4367
        %v4369 = vpop.f32.mrf.mxu0
        %v4370 = vadd.f32 %v4321, %v4369
        %4371 = vmatmul.bf16.gmra.mxu0 %v2438
        %v4372 = vpop.f32.mrf.mxu0
        %v4373 = vadd.f32 %v4324, %v4372
        %v4374 = vpop.f32.mrf.mxu0
        %v4375 = vadd.f32 %v4326, %v4374
        %4376 = vdwg.mxu0
        %4377 = vmatpush.bf16.msra.mxu0 %v3367
        %4378 = vmatpush.bf16.msra.mxu0 %v3363
        %4379 = vmatpush.bf16.msra.mxu0 %v3359
        %4380 = vmatpush.bf16.msra.mxu0 %v3355
        %4381 = vmatpush.bf16.msra.mxu0 %v3351
        %4382 = vmatpush.bf16.msra.mxu0 %v3347
        %4383 = vmatpush.bf16.msra.mxu0 %v3343
        %4384 = vmatpush.bf16.msra.mxu0 %v3339
        %4385 = vmatmul.bf16.gmra.mxu0 %v2411
        %v4386 = vpop.f32.mrf.mxu0
        %v4387 = vadd.f32 %v4338, %v4386
        %v4388 = vpop.f32.mrf.mxu0
        %v4389 = vadd.f32 %v4340, %v4388
        %4390 = vmatmul.bf16.gmra.mxu0 %v2415
        %v4391 = vpop.f32.mrf.mxu0
        %v4392 = vadd.f32 %v4343, %v4391
        %v4393 = vpop.f32.mrf.mxu0
        %v4394 = vadd.f32 %v4345, %v4393
        %4395 = vmatmul.bf16.gmra.mxu0 %v2419
        %v4396 = vpop.f32.mrf.mxu0
        %v4397 = vadd.f32 %v4348, %v4396
        %v4398 = vpop.f32.mrf.mxu0
        %v4399 = vadd.f32 %v4350, %v4398
        %4400 = vmatmul.bf16.gmra.mxu0 %v2423
        %v4401 = vpop.f32.mrf.mxu0
        %v4402 = vadd.f32 %v4353, %v4401
        %v4403 = vpop.f32.mrf.mxu0
        %v4404 = vadd.f32 %v4355, %v4403
        %4405 = vmatmul.bf16.gmra.mxu0 %v2427
        %v4406 = vpop.f32.mrf.mxu0
        %v4407 = vadd.f32 %v4358, %v4406
        %v4408 = vpop.f32.mrf.mxu0
        %v4409 = vadd.f32 %v4360, %v4408
        %4410 = vmatmul.bf16.gmra.mxu0 %v2431
        %v4411 = vpop.f32.mrf.mxu0
        %v4412 = vadd.f32 %v4363, %v4411
        %v4413 = vpop.f32.mrf.mxu0
        %v4414 = vadd.f32 %v4365, %v4413
        %4415 = vmatmul.bf16.gmra.mxu0 %v2435
        %v4416 = vpop.f32.mrf.mxu0
        %v4417 = vadd.f32 %v4368, %v4416
        %v4418 = vpop.f32.mrf.mxu0
        %v4419 = vadd.f32 %v4370, %v4418
        %4420 = vmatmul.bf16.gmra.mxu0 %v2439
        %v4421 = vpop.f32.mrf.mxu0
        %v4422 = vadd.f32 %v4373, %v4421
        %v4423 = vpop.f32.mrf.mxu0
        %v4424 = vadd.f32 %v4375, %v4423
        %4425 = vdwg.mxu0
        %4426 = vmatpush.bf16.msra.mxu0 %v3399
        %4427 = vmatpush.bf16.msra.mxu0 %v3395
        %4428 = vmatpush.bf16.msra.mxu0 %v3391
        %4429 = vmatpush.bf16.msra.mxu0 %v3387
        %4430 = vmatpush.bf16.msra.mxu0 %v3383
        %4431 = vmatpush.bf16.msra.mxu0 %v3379
        %4432 = vmatpush.bf16.msra.mxu0 %v3375
        %4433 = vmatpush.bf16.msra.mxu0 %v3371
        %4434 = vmatmul.bf16.gmra.mxu0 %v2412
        %v4435 = vpop.f32.mrf.mxu0
        %v4436 = vadd.f32 %v4387, %v4435
        %v4437 = vpop.f32.mrf.mxu0
        %v4438 = vadd.f32 %v4389, %v4437
        %4439 = vmatmul.bf16.gmra.mxu0 %v2416
        %v4440 = vpop.f32.mrf.mxu0
        %v4441 = vadd.f32 %v4392, %v4440
        %v4442 = vpop.f32.mrf.mxu0
        %v4443 = vadd.f32 %v4394, %v4442
        %4444 = vmatmul.bf16.gmra.mxu0 %v2420
        %v4445 = vpop.f32.mrf.mxu0
        %v4446 = vadd.f32 %v4397, %v4445
        %v4447 = vpop.f32.mrf.mxu0
        %v4448 = vadd.f32 %v4399, %v4447
        %4449 = vmatmul.bf16.gmra.mxu0 %v2424
        %v4450 = vpop.f32.mrf.mxu0
        %v4451 = vadd.f32 %v4402, %v4450
        %v4452 = vpop.f32.mrf.mxu0
        %v4453 = vadd.f32 %v4404, %v4452
        %4454 = vmatmul.bf16.gmra.mxu0 %v2428
        %v4455 = vpop.f32.mrf.mxu0
        %v4456 = vadd.f32 %v4407, %v4455
        %v4457 = vpop.f32.mrf.mxu0
        %v4458 = vadd.f32 %v4409, %v4457
        %4459 = vmatmul.bf16.gmra.mxu0 %v2432
        %v4460 = vpop.f32.mrf.mxu0
        %v4461 = vadd.f32 %v4412, %v4460
        %v4462 = vpop.f32.mrf.mxu0
        %v4463 = vadd.f32 %v4414, %v4462
        %4464 = vmatmul.bf16.gmra.mxu0 %v2436
        %v4465 = vpop.f32.mrf.mxu0
        %v4466 = vadd.f32 %v4417, %v4465
        %v4467 = vpop.f32.mrf.mxu0
        %v4468 = vadd.f32 %v4419, %v4467
        %4469 = vmatmul.bf16.gmra.mxu0 %v2440
        %v4470 = vpop.f32.mrf.mxu0
        %v4471 = vadd.f32 %v4422, %v4470
        %v4472 = vpop.f32.mrf.mxu0
        %v4473 = vadd.f32 %v4424, %v4472
        %4474 = vdwg.mxu0
        %4475 = vmatpush.bf16.msra.mxu0 %v3240
        %4476 = vmatpush.bf16.msra.mxu0 %v3236
        %4477 = vmatpush.bf16.msra.mxu0 %v3232
        %4478 = vmatpush.bf16.msra.mxu0 %v3228
        %4479 = vmatpush.bf16.msra.mxu0 %v3224
        %4480 = vmatpush.bf16.msra.mxu0 %v3220
        %4481 = vmatpush.bf16.msra.mxu0 %v3216
        %4482 = vmatpush.bf16.msra.mxu0 %v3212
        %4483 = vmatmul.bf16.gmra.mxu0 %v2407
        %v4484 = vpop.f32.mrf.mxu0
        %v4485 = vadd.f32 0.0, %v4484
        %v4486 = vpop.f32.mrf.mxu0
        %v4487 = vadd.f32 0.0, %v4486
        %4488 = vmatmul.bf16.gmra.mxu0 %v2411
        %v4489 = vpop.f32.mrf.mxu0
        %v4490 = vadd.f32 0.0, %v4489
        %v4491 = vpop.f32.mrf.mxu0
        %v4492 = vadd.f32 0.0, %v4491
        %4493 = vmatmul.bf16.gmra.mxu0 %v2415
        %v4494 = vpop.f32.mrf.mxu0
        %v4495 = vadd.f32 0.0, %v4494
        %v4496 = vpop.f32.mrf.mxu0
        %v4497 = vadd.f32 0.0, %v4496
        %4498 = vmatmul.bf16.gmra.mxu0 %v2419
        %v4499 = vpop.f32.mrf.mxu0
        %v4500 = vadd.f32 0.0, %v4499
        %v4501 = vpop.f32.mrf.mxu0
        %v4502 = vadd.f32 0.0, %v4501
        %4503 = vmatmul.bf16.gmra.mxu0 %v2423
        %v4504 = vpop.f32.mrf.mxu0
        %v4505 = vadd.f32 0.0, %v4504
        %v4506 = vpop.f32.mrf.mxu0
        %v4507 = vadd.f32 0.0, %v4506
        %4508 = vmatmul.bf16.gmra.mxu0 %v2427
        %v4509 = vpop.f32.mrf.mxu0
        %v4510 = vadd.f32 0.0, %v4509
        %v4511 = vpop.f32.mrf.mxu0
        %v4512 = vadd.f32 0.0, %v4511
        %4513 = vmatmul.bf16.gmra.mxu0 %v2431
        %v4514 = vpop.f32.mrf.mxu0
        %v4515 = vadd.f32 0.0, %v4514
        %v4516 = vpop.f32.mrf.mxu0
        %v4517 = vadd.f32 0.0, %v4516
        %4518 = vmatmul.bf16.gmra.mxu0 %v2435
        %v4519 = vpop.f32.mrf.mxu0
        %v4520 = vadd.f32 0.0, %v4519
        %v4521 = vpop.f32.mrf.mxu0
        %v4522 = vadd.f32 0.0, %v4521
        %4523 = vdwg.mxu0
        %4524 = vmatpush.bf16.msra.mxu0 %v3272
        %4525 = vmatpush.bf16.msra.mxu0 %v3268
        %4526 = vmatpush.bf16.msra.mxu0 %v3264
        %4527 = vmatpush.bf16.msra.mxu0 %v3260
        %4528 = vmatpush.bf16.msra.mxu0 %v3256
        %4529 = vmatpush.bf16.msra.mxu0 %v3252
        %4530 = vmatpush.bf16.msra.mxu0 %v3248
        %4531 = vmatpush.bf16.msra.mxu0 %v3244
        %4532 = vmatmul.bf16.gmra.mxu0 %v2408
        %v4533 = vpop.f32.mrf.mxu0
        %v4534 = vadd.f32 %v4485, %v4533
        %v4535 = vpop.f32.mrf.mxu0
        %v4536 = vadd.f32 %v4487, %v4535
        %4537 = vmatmul.bf16.gmra.mxu0 %v2412
        %v4538 = vpop.f32.mrf.mxu0
        %v4539 = vadd.f32 %v4490, %v4538
        %v4540 = vpop.f32.mrf.mxu0
        %v4541 = vadd.f32 %v4492, %v4540
        %4542 = vmatmul.bf16.gmra.mxu0 %v2416
        %v4543 = vpop.f32.mrf.mxu0
        %v4544 = vadd.f32 %v4495, %v4543
        %v4545 = vpop.f32.mrf.mxu0
        %v4546 = vadd.f32 %v4497, %v4545
        %4547 = vmatmul.bf16.gmra.mxu0 %v2420
        %v4548 = vpop.f32.mrf.mxu0
        %v4549 = vadd.f32 %v4500, %v4548
        %v4550 = vpop.f32.mrf.mxu0
        %v4551 = vadd.f32 %v4502, %v4550
        %4552 = vmatmul.bf16.gmra.mxu0 %v2424
        %v4553 = vpop.f32.mrf.mxu0
        %v4554 = vadd.f32 %v4505, %v4553
        %v4555 = vpop.f32.mrf.mxu0
        %v4556 = vadd.f32 %v4507, %v4555
        %4557 = vmatmul.bf16.gmra.mxu0 %v2428
        %v4558 = vpop.f32.mrf.mxu0
        %v4559 = vadd.f32 %v4510, %v4558
        %v4560 = vpop.f32.mrf.mxu0
        %v4561 = vadd.f32 %v4512, %v4560
        %4562 = vmatmul.bf16.gmra.mxu0 %v2432
        %v4563 = vpop.f32.mrf.mxu0
        %v4564 = vadd.f32 %v4515, %v4563
        %v4565 = vpop.f32.mrf.mxu0
        %v4566 = vadd.f32 %v4517, %v4565
        %4567 = vmatmul.bf16.gmra.mxu0 %v2436
        %v4568 = vpop.f32.mrf.mxu0
        %v4569 = vadd.f32 %v4520, %v4568
        %v4570 = vpop.f32.mrf.mxu0
        %v4571 = vadd.f32 %v4522, %v4570
        %4572 = vdwg.mxu0
        %4573 = vmatpush.bf16.msra.mxu0 %v3304
        %4574 = vmatpush.bf16.msra.mxu0 %v3300
        %4575 = vmatpush.bf16.msra.mxu0 %v3296
        %4576 = vmatpush.bf16.msra.mxu0 %v3292
        %4577 = vmatpush.bf16.msra.mxu0 %v3288
        %4578 = vmatpush.bf16.msra.mxu0 %v3284
        %4579 = vmatpush.bf16.msra.mxu0 %v3280
        %4580 = vmatpush.bf16.msra.mxu0 %v3276
        %4581 = vmatmul.bf16.gmra.mxu0 %v2409
        %v4582 = vpop.f32.mrf.mxu0
        %v4583 = vadd.f32 %v4534, %v4582
        %v4584 = vpop.f32.mrf.mxu0
        %v4585 = vadd.f32 %v4536, %v4584
        %4586 = vmatmul.bf16.gmra.mxu0 %v2413
        %v4587 = vpop.f32.mrf.mxu0
        %v4588 = vadd.f32 %v4539, %v4587
        %v4589 = vpop.f32.mrf.mxu0
        %v4590 = vadd.f32 %v4541, %v4589
        %4591 = vmatmul.bf16.gmra.mxu0 %v2417
        %v4592 = vpop.f32.mrf.mxu0
        %v4593 = vadd.f32 %v4544, %v4592
        %v4594 = vpop.f32.mrf.mxu0
        %v4595 = vadd.f32 %v4546, %v4594
        %4596 = vmatmul.bf16.gmra.mxu0 %v2421
        %v4597 = vpop.f32.mrf.mxu0
        %v4598 = vadd.f32 %v4549, %v4597
        %v4599 = vpop.f32.mrf.mxu0
        %v4600 = vadd.f32 %v4551, %v4599
        %4601 = vmatmul.bf16.gmra.mxu0 %v2425
        %v4602 = vpop.f32.mrf.mxu0
        %v4603 = vadd.f32 %v4554, %v4602
        %v4604 = vpop.f32.mrf.mxu0
        %v4605 = vadd.f32 %v4556, %v4604
        %4606 = vmatmul.bf16.gmra.mxu0 %v2429
        %v4607 = vpop.f32.mrf.mxu0
        %v4608 = vadd.f32 %v4559, %v4607
        %v4609 = vpop.f32.mrf.mxu0
        %v4610 = vadd.f32 %v4561, %v4609
        %4611 = vmatmul.bf16.gmra.mxu0 %v2433
        %v4612 = vpop.f32.mrf.mxu0
        %v4613 = vadd.f32 %v4564, %v4612
        %v4614 = vpop.f32.mrf.mxu0
        %v4615 = vadd.f32 %v4566, %v4614
        %4616 = vmatmul.bf16.gmra.mxu0 %v2437
        %v4617 = vpop.f32.mrf.mxu0
        %v4618 = vadd.f32 %v4569, %v4617
        %v4619 = vpop.f32.mrf.mxu0
        %v4620 = vadd.f32 %v4571, %v4619
        %4621 = vdwg.mxu0
        %4622 = vmatpush.bf16.msra.mxu0 %v3336
        %4623 = vmatpush.bf16.msra.mxu0 %v3332
        %4624 = vmatpush.bf16.msra.mxu0 %v3328
        %4625 = vmatpush.bf16.msra.mxu0 %v3324
        %4626 = vmatpush.bf16.msra.mxu0 %v3320
        %4627 = vmatpush.bf16.msra.mxu0 %v3316
        %4628 = vmatpush.bf16.msra.mxu0 %v3312
        %4629 = vmatpush.bf16.msra.mxu0 %v3308
        %4630 = vmatmul.bf16.gmra.mxu0 %v2410
        %v4631 = vpop.f32.mrf.mxu0
        %v4632 = vadd.f32 %v4583, %v4631
        %v4633 = vpop.f32.mrf.mxu0
        %v4634 = vadd.f32 %v4585, %v4633
        %4635 = vmatmul.bf16.gmra.mxu0 %v2414
        %v4636 = vpop.f32.mrf.mxu0
        %v4637 = vadd.f32 %v4588, %v4636
        %v4638 = vpop.f32.mrf.mxu0
        %v4639 = vadd.f32 %v4590, %v4638
        %4640 = vmatmul.bf16.gmra.mxu0 %v2418
        %v4641 = vpop.f32.mrf.mxu0
        %v4642 = vadd.f32 %v4593, %v4641
        %v4643 = vpop.f32.mrf.mxu0
        %v4644 = vadd.f32 %v4595, %v4643
        %4645 = vmatmul.bf16.gmra.mxu0 %v2422
        %v4646 = vpop.f32.mrf.mxu0
        %v4647 = vadd.f32 %v4598, %v4646
        %v4648 = vpop.f32.mrf.mxu0
        %v4649 = vadd.f32 %v4600, %v4648
        %4650 = vmatmul.bf16.gmra.mxu0 %v2426
        %v4651 = vpop.f32.mrf.mxu0
        %v4652 = vadd.f32 %v4603, %v4651
        %v4653 = vpop.f32.mrf.mxu0
        %v4654 = vadd.f32 %v4605, %v4653
        %4655 = vmatmul.bf16.gmra.mxu0 %v2430
        %v4656 = vpop.f32.mrf.mxu0
        %v4657 = vadd.f32 %v4608, %v4656
        %v4658 = vpop.f32.mrf.mxu0
        %v4659 = vadd.f32 %v4610, %v4658
        %4660 = vmatmul.bf16.gmra.mxu0 %v2434
        %v4661 = vpop.f32.mrf.mxu0
        %v4662 = vadd.f32 %v4613, %v4661
        %v4663 = vpop.f32.mrf.mxu0
        %v4664 = vadd.f32 %v4615, %v4663
        %4665 = vmatmul.bf16.gmra.mxu0 %v2438
        %v4666 = vpop.f32.mrf.mxu0
        %v4667 = vadd.f32 %v4618, %v4666
        %v4668 = vpop.f32.mrf.mxu0
        %v4669 = vadd.f32 %v4620, %v4668
        %4670 = vdwg.mxu0
        %4671 = vmatpush.bf16.msra.mxu0 %v3368
        %4672 = vmatpush.bf16.msra.mxu0 %v3364
        %4673 = vmatpush.bf16.msra.mxu0 %v3360
        %4674 = vmatpush.bf16.msra.mxu0 %v3356
        %4675 = vmatpush.bf16.msra.mxu0 %v3352
        %4676 = vmatpush.bf16.msra.mxu0 %v3348
        %4677 = vmatpush.bf16.msra.mxu0 %v3344
        %4678 = vmatpush.bf16.msra.mxu0 %v3340
        %4679 = vmatmul.bf16.gmra.mxu0 %v2411
        %v4680 = vpop.f32.mrf.mxu0
        %v4681 = vadd.f32 %v4632, %v4680
        %v4682 = vpop.f32.mrf.mxu0
        %v4683 = vadd.f32 %v4634, %v4682
        %4684 = vmatmul.bf16.gmra.mxu0 %v2415
        %v4685 = vpop.f32.mrf.mxu0
        %v4686 = vadd.f32 %v4637, %v4685
        %v4687 = vpop.f32.mrf.mxu0
        %v4688 = vadd.f32 %v4639, %v4687
        %4689 = vmatmul.bf16.gmra.mxu0 %v2419
        %v4690 = vpop.f32.mrf.mxu0
        %v4691 = vadd.f32 %v4642, %v4690
        %v4692 = vpop.f32.mrf.mxu0
        %v4693 = vadd.f32 %v4644, %v4692
        %4694 = vmatmul.bf16.gmra.mxu0 %v2423
        %v4695 = vpop.f32.mrf.mxu0
        %v4696 = vadd.f32 %v4647, %v4695
        %v4697 = vpop.f32.mrf.mxu0
        %v4698 = vadd.f32 %v4649, %v4697
        %4699 = vmatmul.bf16.gmra.mxu0 %v2427
        %v4700 = vpop.f32.mrf.mxu0
        %v4701 = vadd.f32 %v4652, %v4700
        %v4702 = vpop.f32.mrf.mxu0
        %v4703 = vadd.f32 %v4654, %v4702
        %4704 = vmatmul.bf16.gmra.mxu0 %v2431
        %v4705 = vpop.f32.mrf.mxu0
        %v4706 = vadd.f32 %v4657, %v4705
        %v4707 = vpop.f32.mrf.mxu0
        %v4708 = vadd.f32 %v4659, %v4707
        %4709 = vmatmul.bf16.gmra.mxu0 %v2435
        %v4710 = vpop.f32.mrf.mxu0
        %v4711 = vadd.f32 %v4662, %v4710
        %v4712 = vpop.f32.mrf.mxu0
        %v4713 = vadd.f32 %v4664, %v4712
        %4714 = vmatmul.bf16.gmra.mxu0 %v2439
        %v4715 = vpop.f32.mrf.mxu0
        %v4716 = vadd.f32 %v4667, %v4715
        %v4717 = vpop.f32.mrf.mxu0
        %v4718 = vadd.f32 %v4669, %v4717
        %4719 = vdwg.mxu0
        %4720 = vmatpush.bf16.msra.mxu0 %v3400
        %4721 = vmatpush.bf16.msra.mxu0 %v3396
        %4722 = vmatpush.bf16.msra.mxu0 %v3392
        %4723 = vmatpush.bf16.msra.mxu0 %v3388
        %4724 = vmatpush.bf16.msra.mxu0 %v3384
        %4725 = vmatpush.bf16.msra.mxu0 %v3380
        %4726 = vmatpush.bf16.msra.mxu0 %v3376
        %4727 = vmatpush.bf16.msra.mxu0 %v3372
        %4728 = vmatmul.bf16.gmra.mxu0 %v2412
        %v4729 = vpop.f32.mrf.mxu0
        %v4730 = vadd.f32 %v4681, %v4729
        %v4731 = vpop.f32.mrf.mxu0
        %v4732 = vadd.f32 %v4683, %v4731
        %4733 = vmatmul.bf16.gmra.mxu0 %v2416
        %v4734 = vpop.f32.mrf.mxu0
        %v4735 = vadd.f32 %v4686, %v4734
        %v4736 = vpop.f32.mrf.mxu0
        %v4737 = vadd.f32 %v4688, %v4736
        %4738 = vmatmul.bf16.gmra.mxu0 %v2420
        %v4739 = vpop.f32.mrf.mxu0
        %v4740 = vadd.f32 %v4691, %v4739
        %v4741 = vpop.f32.mrf.mxu0
        %v4742 = vadd.f32 %v4693, %v4741
        %4743 = vmatmul.bf16.gmra.mxu0 %v2424
        %v4744 = vpop.f32.mrf.mxu0
        %v4745 = vadd.f32 %v4696, %v4744
        %v4746 = vpop.f32.mrf.mxu0
        %v4747 = vadd.f32 %v4698, %v4746
        %4748 = vmatmul.bf16.gmra.mxu0 %v2428
        %v4749 = vpop.f32.mrf.mxu0
        %v4750 = vadd.f32 %v4701, %v4749
        %v4751 = vpop.f32.mrf.mxu0
        %v4752 = vadd.f32 %v4703, %v4751
        %4753 = vmatmul.bf16.gmra.mxu0 %v2432
        %v4754 = vpop.f32.mrf.mxu0
        %v4755 = vadd.f32 %v4706, %v4754
        %v4756 = vpop.f32.mrf.mxu0
        %v4757 = vadd.f32 %v4708, %v4756
        %4758 = vmatmul.bf16.gmra.mxu0 %v2436
        %v4759 = vpop.f32.mrf.mxu0
        %v4760 = vadd.f32 %v4711, %v4759
        %v4761 = vpop.f32.mrf.mxu0
        %v4762 = vadd.f32 %v4713, %v4761
        %4763 = vmatmul.bf16.gmra.mxu0 %v2440
        %v4764 = vpop.f32.mrf.mxu0
        %v4765 = vadd.f32 %v4716, %v4764
        %v4766 = vpop.f32.mrf.mxu0
        %v4767 = vadd.f32 %v4718, %v4766
        %4768 = vdwg.mxu0
        %v4769 = vmax.f32 %v3848, %v3850
        %v4770 = vmax.f32 %v4142, %v4144
        %v4771 = vmax.f32 %v4436, %v4438
        %v4772 = vmax.f32 %v4730, %v4732
        %v4773 = vmax.f32 %v3853, %v3855
        %v4774 = vmax.f32 %v4147, %v4149
        %v4775 = vmax.f32 %v4441, %v4443
        %v4776 = vmax.f32 %v4735, %v4737
        %v4777 = vmax.f32 %v3858, %v3860
        %v4778 = vmax.f32 %v4152, %v4154
        %v4779 = vmax.f32 %v4446, %v4448
        %v4780 = vmax.f32 %v4740, %v4742
        %v4781 = vmax.f32 %v3863, %v3865
        %v4782 = vmax.f32 %v4157, %v4159
        %v4783 = vmax.f32 %v4451, %v4453
        %v4784 = vmax.f32 %v4745, %v4747
        %v4785 = vmax.f32 %v3868, %v3870
        %v4786 = vmax.f32 %v4162, %v4164
        %v4787 = vmax.f32 %v4456, %v4458
        %v4788 = vmax.f32 %v4750, %v4752
        %v4789 = vmax.f32 %v3873, %v3875
        %v4790 = vmax.f32 %v4167, %v4169
        %v4791 = vmax.f32 %v4461, %v4463
        %v4792 = vmax.f32 %v4755, %v4757
        %v4793 = vmax.f32 %v3878, %v3880
        %v4794 = vmax.f32 %v4172, %v4174
        %v4795 = vmax.f32 %v4466, %v4468
        %v4796 = vmax.f32 %v4760, %v4762
        %v4797 = vmax.f32 %v3883, %v3885
        %v4798 = vmax.f32 %v4177, %v4179
        %v4799 = vmax.f32 %v4471, %v4473
        %v4800 = vmax.f32 %v4765, %v4767
        %v4801 = vmax.f32 %v4769, %v4771
        %v4802 = vmax.f32 %v4770, %v4772
        %v4803 = vmax.f32 %v4773, %v4775
        %v4804 = vmax.f32 %v4774, %v4776
        %v4805 = vmax.f32 %v4777, %v4779
        %v4806 = vmax.f32 %v4778, %v4780
        %v4807 = vmax.f32 %v4781, %v4783
        %v4808 = vmax.f32 %v4782, %v4784
        %v4809 = vmax.f32 %v4785, %v4787
        %v4810 = vmax.f32 %v4786, %v4788
        %v4811 = vmax.f32 %v4789, %v4791
        %v4812 = vmax.f32 %v4790, %v4792
        %v4813 = vmax.f32 %v4793, %v4795
        %v4814 = vmax.f32 %v4794, %v4796
        %v4815 = vmax.f32 %v4797, %v4799
        %v4816 = vmax.f32 %v4798, %v4800
        %v4817 = vld [vmem:[%s4] sm:$0x3]
        %v4819 = vperm.slane %v4817, 0
        %v4820 = vperm.slane %v4817, 1
        %v4823 = vadd.f32 %v4801, %v4819
        %v4824 = vadd.f32 %v4802, %v4820
        %v4825 = vadd.f32 %v4803, %v4819
        %v4826 = vadd.f32 %v4804, %v4820
        %v4827 = vadd.f32 %v4805, %v4819
        %v4828 = vadd.f32 %v4806, %v4820
        %v4829 = vadd.f32 %v4807, %v4819
        %v4830 = vadd.f32 %v4808, %v4820
        %v4831 = vadd.f32 %v4809, %v4819
        %v4832 = vadd.f32 %v4810, %v4820
        %v4833 = vadd.f32 %v4811, %v4819
        %v4834 = vadd.f32 %v4812, %v4820
        %v4835 = vadd.f32 %v4813, %v4819
        %v4836 = vadd.f32 %v4814, %v4820
        %v4837 = vadd.f32 %v4815, %v4819
        %v4838 = vadd.f32 %v4816, %v4820
        %v4839 = vmax.f32 %v4823, 0.0
        %v4840 = vmax.f32 %v4824, 0.0
        %v4841 = vmax.f32 %v4825, 0.0
        %v4842 = vmax.f32 %v4826, 0.0
        %v4843 = vmax.f32 %v4827, 0.0
        %v4844 = vmax.f32 %v4828, 0.0
        %v4845 = vmax.f32 %v4829, 0.0
        %v4846 = vmax.f32 %v4830, 0.0
        %v4847 = vmax.f32 %v4831, 0.0
        %v4848 = vmax.f32 %v4832, 0.0
        %v4849 = vmax.f32 %v4833, 0.0
        %v4850 = vmax.f32 %v4834, 0.0
        %v4851 = vmax.f32 %v4835, 0.0
        %v4852 = vmax.f32 %v4836, 0.0
        %v4853 = vmax.f32 %v4837, 0.0
        %v4854 = vmax.f32 %v4838, 0.0
        %v4855 = vpack.c.bf16 %v4839, %v4839
        %v4856 = vpack.c.bf16 %v4840, %v4840
        %v4857 = vpack.c.bf16 %v4841, %v4841
        %v4858 = vpack.c.bf16 %v4842, %v4842
        %v4859 = vpack.c.bf16 %v4843, %v4843
        %v4860 = vpack.c.bf16 %v4844, %v4844
        %v4861 = vpack.c.bf16 %v4845, %v4845
        %v4862 = vpack.c.bf16 %v4846, %v4846
        %v4863 = vpack.c.bf16 %v4847, %v4847
        %v4864 = vpack.c.bf16 %v4848, %v4848
        %v4865 = vpack.c.bf16 %v4849, %v4849
        %v4866 = vpack.c.bf16 %v4850, %v4850
        %v4867 = vpack.c.bf16 %v4851, %v4851
        %v4868 = vpack.c.bf16 %v4852, %v4852
        %v4869 = vpack.c.bf16 %v4853, %v4853
        %v4870 = vpack.c.bf16 %v4854, %v4854
        %v4871 = vld [vmem:[%s5] sm:$0xf]
        %v4872 = vld [vmem:[%s5 + $0x4] sm:$0xf]
        %v4873 = vld [vmem:[%s5 + $0x8] sm:$0xf]
        %v4874 = vld [vmem:[%s5 + $0xc] sm:$0xf]
        %v4875 = vld [vmem:[%s5 + $0x10] sm:$0xf]
        %v4876 = vld [vmem:[%s5 + $0x14] sm:$0xf]
        %v4877 = vld [vmem:[%s5 + $0x18] sm:$0xf]
        %v4878 = vld [vmem:[%s5 + $0x1c] sm:$0xf]
        %v4879 = vld [vmem:[%s5 + $0x20] sm:$0xf]
        %v4880 = vld [vmem:[%s5 + $0x24] sm:$0xf]
        %v4881 = vld [vmem:[%s5 + $0x28] sm:$0xf]
        %v4882 = vld [vmem:[%s5 + $0x2c] sm:$0xf]
        %v4883 = vld [vmem:[%s5 + $0x30] sm:$0xf]
        %v4884 = vld [vmem:[%s5 + $0x34] sm:$0xf]
        %v4885 = vld [vmem:[%s5 + $0x38] sm:$0xf]
        %v4886 = vld [vmem:[%s5 + $0x3c] sm:$0xf]
        %v4887 = vld [vmem:[%s5 + $0x40] sm:$0xf]
        %v4888 = vld [vmem:[%s5 + $0x44] sm:$0xf]
        %v4889 = vld [vmem:[%s5 + $0x48] sm:$0xf]
        %v4890 = vld [vmem:[%s5 + $0x4c] sm:$0xf]
        %v4891 = vld [vmem:[%s5 + $0x50] sm:$0xf]
        %v4892 = vld [vmem:[%s5 + $0x54] sm:$0xf]
        %v4893 = vld [vmem:[%s5 + $0x58] sm:$0xf]
        %v4894 = vld [vmem:[%s5 + $0x5c] sm:$0xf]
        %v4895 = vld [vmem:[%s5 + $0x60] sm:$0xf]
        %v4896 = vld [vmem:[%s5 + $0x64] sm:$0xf]
        %v4897 = vld [vmem:[%s5 + $0x68] sm:$0xf]
        %v4898 = vld [vmem:[%s5 + $0x6c] sm:$0xf]
        %v4899 = vld [vmem:[%s5 + $0x70] sm:$0xf]
        %v4900 = vld [vmem:[%s5 + $0x74] sm:$0xf]
        %v4901 = vld [vmem:[%s5 + $0x78] sm:$0xf]
        %v4902 = vld [vmem:[%s5 + $0x7c] sm:$0xf]
        %v4903 = vld [vmem:[%s5 + $0x80] sm:$0xf]
        %v4904 = vld [vmem:[%s5 + $0x84] sm:$0xf]
        %v4905 = vld [vmem:[%s5 + $0x88] sm:$0xf]
        %v4906 = vld [vmem:[%s5 + $0x8c] sm:$0xf]
        %v4907 = vld [vmem:[%s5 + $0x90] sm:$0xf]
        %v4908 = vld [vmem:[%s5 + $0x94] sm:$0xf]
        %v4909 = vld [vmem:[%s5 + $0x98] sm:$0xf]
        %v4910 = vld [vmem:[%s5 + $0x9c] sm:$0xf]
        %v4911 = vld [vmem:[%s5 + $0xa0] sm:$0xf]
        %v4912 = vld [vmem:[%s5 + $0xa4] sm:$0xf]
        %v4913 = vld [vmem:[%s5 + $0xa8] sm:$0xf]
        %v4914 = vld [vmem:[%s5 + $0xac] sm:$0xf]
        %v4915 = vld [vmem:[%s5 + $0xb0] sm:$0xf]
        %v4916 = vld [vmem:[%s5 + $0xb4] sm:$0xf]
        %v4917 = vld [vmem:[%s5 + $0xb8] sm:$0xf]
        %v4918 = vld [vmem:[%s5 + $0xbc] sm:$0xf]
        %v4919 = vld [vmem:[%s5 + $0xc0] sm:$0xf]
        %v4920 = vld [vmem:[%s5 + $0xc4] sm:$0xf]
        %v4921 = vld [vmem:[%s5 + $0xc8] sm:$0xf]
        %v4922 = vld [vmem:[%s5 + $0xcc] sm:$0xf]
        %v4923 = vld [vmem:[%s5 + $0xd0] sm:$0xf]
        %v4924 = vld [vmem:[%s5 + $0xd4] sm:$0xf]
        %v4925 = vld [vmem:[%s5 + $0xd8] sm:$0xf]
        %v4926 = vld [vmem:[%s5 + $0xdc] sm:$0xf]
        %v4927 = vld [vmem:[%s5 + $0xe0] sm:$0xf]
        %v4928 = vld [vmem:[%s5 + $0xe4] sm:$0xf]
        %v4929 = vld [vmem:[%s5 + $0xe8] sm:$0xf]
        %v4930 = vld [vmem:[%s5 + $0xec] sm:$0xf]
        %v4931 = vld [vmem:[%s5 + $0xf0] sm:$0xf]
        %v4932 = vld [vmem:[%s5 + $0xf4] sm:$0xf]
        %v4933 = vld [vmem:[%s5 + $0xf8] sm:$0xf]
        %v4934 = vld [vmem:[%s5 + $0xfc] sm:$0xf]
        %v4935 = vld [vmem:[%s5 + $0x100] sm:$0xf]
        %v4936 = vld [vmem:[%s5 + $0x104] sm:$0xf]
        %v4937 = vld [vmem:[%s5 + $0x108] sm:$0xf]
        %v4938 = vld [vmem:[%s5 + $0x10c] sm:$0xf]
        %v4939 = vld [vmem:[%s5 + $0x110] sm:$0xf]
        %v4940 = vld [vmem:[%s5 + $0x114] sm:$0xf]
        %v4941 = vld [vmem:[%s5 + $0x118] sm:$0xf]
        %v4942 = vld [vmem:[%s5 + $0x11c] sm:$0xf]
        %v4943 = vld [vmem:[%s5 + $0x120] sm:$0xf]
        %v4944 = vld [vmem:[%s5 + $0x124] sm:$0xf]
        %v4945 = vld [vmem:[%s5 + $0x128] sm:$0xf]
        %v4946 = vld [vmem:[%s5 + $0x12c] sm:$0xf]
        %v4947 = vld [vmem:[%s5 + $0x130] sm:$0xf]
        %v4948 = vld [vmem:[%s5 + $0x134] sm:$0xf]
        %v4949 = vld [vmem:[%s5 + $0x138] sm:$0xf]
        %v4950 = vld [vmem:[%s5 + $0x13c] sm:$0xf]
        %v4951 = vld [vmem:[%s5 + $0x140] sm:$0xf]
        %v4952 = vld [vmem:[%s5 + $0x144] sm:$0xf]
        %v4953 = vld [vmem:[%s5 + $0x148] sm:$0xf]
        %v4954 = vld [vmem:[%s5 + $0x14c] sm:$0xf]
        %v4955 = vld [vmem:[%s5 + $0x150] sm:$0xf]
        %v4956 = vld [vmem:[%s5 + $0x154] sm:$0xf]
        %v4957 = vld [vmem:[%s5 + $0x158] sm:$0xf]
        %v4958 = vld [vmem:[%s5 + $0x15c] sm:$0xf]
        %v4959 = vld [vmem:[%s5 + $0x160] sm:$0xf]
        %v4960 = vld [vmem:[%s5 + $0x164] sm:$0xf]
        %v4961 = vld [vmem:[%s5 + $0x168] sm:$0xf]
        %v4962 = vld [vmem:[%s5 + $0x16c] sm:$0xf]
        %v4963 = vld [vmem:[%s5 + $0x170] sm:$0xf]
        %v4964 = vld [vmem:[%s5 + $0x174] sm:$0xf]
        %v4965 = vld [vmem:[%s5 + $0x178] sm:$0xf]
        %v4966 = vld [vmem:[%s5 + $0x17c] sm:$0xf]
        %v4967 = vld [vmem:[%s5 + $0x180] sm:$0xf]
        %v4968 = vld [vmem:[%s5 + $0x184] sm:$0xf]
        %v4969 = vld [vmem:[%s5 + $0x188] sm:$0xf]
        %v4970 = vld [vmem:[%s5 + $0x18c] sm:$0xf]
        %v4971 = vld [vmem:[%s5 + $0x190] sm:$0xf]
        %v4972 = vld [vmem:[%s5 + $0x194] sm:$0xf]
        %v4973 = vld [vmem:[%s5 + $0x198] sm:$0xf]
        %v4974 = vld [vmem:[%s5 + $0x19c] sm:$0xf]
        %v4975 = vld [vmem:[%s5 + $0x1a0] sm:$0xf]
        %v4976 = vld [vmem:[%s5 + $0x1a4] sm:$0xf]
        %v4977 = vld [vmem:[%s5 + $0x1a8] sm:$0xf]
        %v4978 = vld [vmem:[%s5 + $0x1ac] sm:$0xf]
        %v4979 = vld [vmem:[%s5 + $0x1b0] sm:$0xf]
        %v4980 = vld [vmem:[%s5 + $0x1b4] sm:$0xf]
        %v4981 = vld [vmem:[%s5 + $0x1b8] sm:$0xf]
        %v4982 = vld [vmem:[%s5 + $0x1bc] sm:$0xf]
        %v4983 = vld [vmem:[%s5 + $0x1c0] sm:$0xf]
        %v4984 = vld [vmem:[%s5 + $0x1c4] sm:$0xf]
        %v4985 = vld [vmem:[%s5 + $0x1c8] sm:$0xf]
        %v4986 = vld [vmem:[%s5 + $0x1cc] sm:$0xf]
        %v4987 = vld [vmem:[%s5 + $0x1d0] sm:$0xf]
        %v4988 = vld [vmem:[%s5 + $0x1d4] sm:$0xf]
        %v4989 = vld [vmem:[%s5 + $0x1d8] sm:$0xf]
        %v4990 = vld [vmem:[%s5 + $0x1dc] sm:$0xf]
        %v4991 = vld [vmem:[%s5 + $0x1e0] sm:$0xf]
        %v4992 = vld [vmem:[%s5 + $0x1e4] sm:$0xf]
        %v4993 = vld [vmem:[%s5 + $0x1e8] sm:$0xf]
        %v4994 = vld [vmem:[%s5 + $0x1ec] sm:$0xf]
        %v4995 = vld [vmem:[%s5 + $0x1f0] sm:$0xf]
        %v4996 = vld [vmem:[%s5 + $0x1f4] sm:$0xf]
        %v4997 = vld [vmem:[%s5 + $0x1f8] sm:$0xf]
        %v4998 = vld [vmem:[%s5 + $0x1fc] sm:$0xf]
        %v4999 = vld [vmem:[%s5 + $0x200] sm:$0xf]
        %v5000 = vld [vmem:[%s5 + $0x204] sm:$0xf]
        %v5001 = vld [vmem:[%s5 + $0x208] sm:$0xf]
        %v5002 = vld [vmem:[%s5 + $0x20c] sm:$0xf]
        %v5003 = vld [vmem:[%s5 + $0x210] sm:$0xf]
        %v5004 = vld [vmem:[%s5 + $0x214] sm:$0xf]
        %v5005 = vld [vmem:[%s5 + $0x218] sm:$0xf]
        %v5006 = vld [vmem:[%s5 + $0x21c] sm:$0xf]
        %v5007 = vld [vmem:[%s5 + $0x220] sm:$0xf]
        %v5008 = vld [vmem:[%s5 + $0x224] sm:$0xf]
        %v5009 = vld [vmem:[%s5 + $0x228] sm:$0xf]
        %v5010 = vld [vmem:[%s5 + $0x22c] sm:$0xf]
        %v5011 = vld [vmem:[%s5 + $0x230] sm:$0xf]
        %v5012 = vld [vmem:[%s5 + $0x234] sm:$0xf]
        %v5013 = vld [vmem:[%s5 + $0x238] sm:$0xf]
        %v5014 = vld [vmem:[%s5 + $0x23c] sm:$0xf]
        %v5015 = vld [vmem:[%s5 + $0x240] sm:$0xf]
        %v5016 = vld [vmem:[%s5 + $0x244] sm:$0xf]
        %v5017 = vld [vmem:[%s5 + $0x248] sm:$0xf]
        %v5018 = vld [vmem:[%s5 + $0x24c] sm:$0xf]
        %v5019 = vld [vmem:[%s5 + $0x250] sm:$0xf]
        %v5020 = vld [vmem:[%s5 + $0x254] sm:$0xf]
        %v5021 = vld [vmem:[%s5 + $0x258] sm:$0xf]
        %v5022 = vld [vmem:[%s5 + $0x25c] sm:$0xf]
        %v5023 = vld [vmem:[%s5 + $0x260] sm:$0xf]
        %v5024 = vld [vmem:[%s5 + $0x264] sm:$0xf]
        %v5025 = vld [vmem:[%s5 + $0x268] sm:$0xf]
        %v5026 = vld [vmem:[%s5 + $0x26c] sm:$0xf]
        %v5027 = vld [vmem:[%s5 + $0x270] sm:$0xf]
        %v5028 = vld [vmem:[%s5 + $0x274] sm:$0xf]
        %v5029 = vld [vmem:[%s5 + $0x278] sm:$0xf]
        %v5030 = vld [vmem:[%s5 + $0x27c] sm:$0xf]
        %v5031 = vld [vmem:[%s5 + $0x280] sm:$0xf]
        %v5032 = vld [vmem:[%s5 + $0x284] sm:$0xf]
        %v5033 = vld [vmem:[%s5 + $0x288] sm:$0xf]
        %v5034 = vld [vmem:[%s5 + $0x28c] sm:$0xf]
        %v5035 = vld [vmem:[%s5 + $0x290] sm:$0xf]
        %v5036 = vld [vmem:[%s5 + $0x294] sm:$0xf]
        %v5037 = vld [vmem:[%s5 + $0x298] sm:$0xf]
        %v5038 = vld [vmem:[%s5 + $0x29c] sm:$0xf]
        %v5039 = vld [vmem:[%s5 + $0x2a0] sm:$0xf]
        %v5040 = vld [vmem:[%s5 + $0x2a4] sm:$0xf]
        %v5041 = vld [vmem:[%s5 + $0x2a8] sm:$0xf]
        %v5042 = vld [vmem:[%s5 + $0x2ac] sm:$0xf]
        %v5043 = vld [vmem:[%s5 + $0x2b0] sm:$0xf]
        %v5044 = vld [vmem:[%s5 + $0x2b4] sm:$0xf]
        %v5045 = vld [vmem:[%s5 + $0x2b8] sm:$0xf]
        %v5046 = vld [vmem:[%s5 + $0x2bc] sm:$0xf]
        %v5047 = vld [vmem:[%s5 + $0x2c0] sm:$0xf]
        %v5048 = vld [vmem:[%s5 + $0x2c4] sm:$0xf]
        %v5049 = vld [vmem:[%s5 + $0x2c8] sm:$0xf]
        %v5050 = vld [vmem:[%s5 + $0x2cc] sm:$0xf]
        %v5051 = vld [vmem:[%s5 + $0x2d0] sm:$0xf]
        %v5052 = vld [vmem:[%s5 + $0x2d4] sm:$0xf]
        %v5053 = vld [vmem:[%s5 + $0x2d8] sm:$0xf]
        %v5054 = vld [vmem:[%s5 + $0x2dc] sm:$0xf]
        %v5055 = vld [vmem:[%s5 + $0x2e0] sm:$0xf]
        %v5056 = vld [vmem:[%s5 + $0x2e4] sm:$0xf]
        %v5057 = vld [vmem:[%s5 + $0x2e8] sm:$0xf]
        %v5058 = vld [vmem:[%s5 + $0x2ec] sm:$0xf]
        %v5059 = vld [vmem:[%s5 + $0x2f0] sm:$0xf]
        %v5060 = vld [vmem:[%s5 + $0x2f4] sm:$0xf]
        %v5061 = vld [vmem:[%s5 + $0x2f8] sm:$0xf]
        %v5062 = vld [vmem:[%s5 + $0x2fc] sm:$0xf]
        %v5063 = vld [vmem:[%s5 + $0x300] sm:$0xf]
        %v5064 = vld [vmem:[%s5 + $0x304] sm:$0xf]
        %v5065 = vld [vmem:[%s5 + $0x308] sm:$0xf]
        %v5066 = vld [vmem:[%s5 + $0x30c] sm:$0xf]
        %v5067 = vld [vmem:[%s5 + $0x310] sm:$0xf]
        %v5068 = vld [vmem:[%s5 + $0x314] sm:$0xf]
        %v5069 = vld [vmem:[%s5 + $0x318] sm:$0xf]
        %v5070 = vld [vmem:[%s5 + $0x31c] sm:$0xf]
        %v5071 = vld [vmem:[%s5 + $0x320] sm:$0xf]
        %v5072 = vld [vmem:[%s5 + $0x324] sm:$0xf]
        %v5073 = vld [vmem:[%s5 + $0x328] sm:$0xf]
        %v5074 = vld [vmem:[%s5 + $0x32c] sm:$0xf]
        %v5075 = vld [vmem:[%s5 + $0x330] sm:$0xf]
        %v5076 = vld [vmem:[%s5 + $0x334] sm:$0xf]
        %v5077 = vld [vmem:[%s5 + $0x338] sm:$0xf]
        %v5078 = vld [vmem:[%s5 + $0x33c] sm:$0xf]
        %v5079 = vld [vmem:[%s5 + $0x340] sm:$0xf]
        %v5080 = vld [vmem:[%s5 + $0x344] sm:$0xf]
        %v5081 = vld [vmem:[%s5 + $0x348] sm:$0xf]
        %v5082 = vld [vmem:[%s5 + $0x34c] sm:$0xf]
        %v5083 = vld [vmem:[%s5 + $0x350] sm:$0xf]
        %v5084 = vld [vmem:[%s5 + $0x354] sm:$0xf]
        %v5085 = vld [vmem:[%s5 + $0x358] sm:$0xf]
        %v5086 = vld [vmem:[%s5 + $0x35c] sm:$0xf]
        %v5087 = vld [vmem:[%s5 + $0x360] sm:$0xf]
        %v5088 = vld [vmem:[%s5 + $0x364] sm:$0xf]
        %v5089 = vld [vmem:[%s5 + $0x368] sm:$0xf]
        %v5090 = vld [vmem:[%s5 + $0x36c] sm:$0xf]
        %v5091 = vld [vmem:[%s5 + $0x370] sm:$0xf]
        %v5092 = vld [vmem:[%s5 + $0x374] sm:$0xf]
        %v5093 = vld [vmem:[%s5 + $0x378] sm:$0xf]
        %v5094 = vld [vmem:[%s5 + $0x37c] sm:$0xf]
        %v5095 = vld [vmem:[%s5 + $0x380] sm:$0xf]
        %v5096 = vld [vmem:[%s5 + $0x384] sm:$0xf]
        %v5097 = vld [vmem:[%s5 + $0x388] sm:$0xf]
        %v5098 = vld [vmem:[%s5 + $0x38c] sm:$0xf]
        %v5099 = vld [vmem:[%s5 + $0x390] sm:$0xf]
        %v5100 = vld [vmem:[%s5 + $0x394] sm:$0xf]
        %v5101 = vld [vmem:[%s5 + $0x398] sm:$0xf]
        %v5102 = vld [vmem:[%s5 + $0x39c] sm:$0xf]
        %v5103 = vld [vmem:[%s5 + $0x3a0] sm:$0xf]
        %v5104 = vld [vmem:[%s5 + $0x3a4] sm:$0xf]
        %v5105 = vld [vmem:[%s5 + $0x3a8] sm:$0xf]
        %v5106 = vld [vmem:[%s5 + $0x3ac] sm:$0xf]
        %v5107 = vld [vmem:[%s5 + $0x3b0] sm:$0xf]
        %v5108 = vld [vmem:[%s5 + $0x3b4] sm:$0xf]
        %v5109 = vld [vmem:[%s5 + $0x3b8] sm:$0xf]
        %v5110 = vld [vmem:[%s5 + $0x3bc] sm:$0xf]
        %v5111 = vld [vmem:[%s5 + $0x3c0] sm:$0xf]
        %v5112 = vld [vmem:[%s5 + $0x3c4] sm:$0xf]
        %v5113 = vld [vmem:[%s5 + $0x3c8] sm:$0xf]
        %v5114 = vld [vmem:[%s5 + $0x3cc] sm:$0xf]
        %v5115 = vld [vmem:[%s5 + $0x3d0] sm:$0xf]
        %v5116 = vld [vmem:[%s5 + $0x3d4] sm:$0xf]
        %v5117 = vld [vmem:[%s5 + $0x3d8] sm:$0xf]
        %v5118 = vld [vmem:[%s5 + $0x3dc] sm:$0xf]
        %v5119 = vld [vmem:[%s5 + $0x3e0] sm:$0xf]
        %v5120 = vld [vmem:[%s5 + $0x3e4] sm:$0xf]
        %v5121 = vld [vmem:[%s5 + $0x3e8] sm:$0xf]
        %v5122 = vld [vmem:[%s5 + $0x3ec] sm:$0xf]
        %v5123 = vld [vmem:[%s5 + $0x3f0] sm:$0xf]
        %v5124 = vld [vmem:[%s5 + $0x3f4] sm:$0xf]
        %v5125 = vld [vmem:[%s5 + $0x3f8] sm:$0xf]
        %v5126 = vld [vmem:[%s5 + $0x3fc] sm:$0xf]
        %v5127 = vld [vmem:[%s6] sm:$0x1]
        %v5129 = vperm.slane %v5127, 0
        %v5387 = vunpack.c.l.b16 %v4871
        %v5388 = vunpack.c.l.b16 %v4872
        %v5389 = vunpack.c.l.b16 %v4873
        %v5390 = vunpack.c.l.b16 %v4874
        %v5391 = vunpack.c.l.b16 %v4875
        %v5392 = vunpack.c.l.b16 %v4876
        %v5393 = vunpack.c.l.b16 %v4877
        %v5394 = vunpack.c.l.b16 %v4878
        %v5395 = vunpack.c.l.b16 %v4879
        %v5396 = vunpack.c.l.b16 %v4880
        %v5397 = vunpack.c.l.b16 %v4881
        %v5398 = vunpack.c.l.b16 %v4882
        %v5399 = vunpack.c.l.b16 %v4883
        %v5400 = vunpack.c.l.b16 %v4884
        %v5401 = vunpack.c.l.b16 %v4885
        %v5402 = vunpack.c.l.b16 %v4886
        %v5403 = vunpack.c.l.b16 %v4887
        %v5404 = vunpack.c.l.b16 %v4888
        %v5405 = vunpack.c.l.b16 %v4889
        %v5406 = vunpack.c.l.b16 %v4890
        %v5407 = vunpack.c.l.b16 %v4891
        %v5408 = vunpack.c.l.b16 %v4892
        %v5409 = vunpack.c.l.b16 %v4893
        %v5410 = vunpack.c.l.b16 %v4894
        %v5411 = vunpack.c.l.b16 %v4895
        %v5412 = vunpack.c.l.b16 %v4896
        %v5413 = vunpack.c.l.b16 %v4897
        %v5414 = vunpack.c.l.b16 %v4898
        %v5415 = vunpack.c.l.b16 %v4899
        %v5416 = vunpack.c.l.b16 %v4900
        %v5417 = vunpack.c.l.b16 %v4901
        %v5418 = vunpack.c.l.b16 %v4902
        %v5419 = vunpack.c.l.b16 %v4903
        %v5420 = vunpack.c.l.b16 %v4904
        %v5421 = vunpack.c.l.b16 %v4905
        %v5422 = vunpack.c.l.b16 %v4906
        %v5423 = vunpack.c.l.b16 %v4907
        %v5424 = vunpack.c.l.b16 %v4908
        %v5425 = vunpack.c.l.b16 %v4909
        %v5426 = vunpack.c.l.b16 %v4910
        %v5427 = vunpack.c.l.b16 %v4911
        %v5428 = vunpack.c.l.b16 %v4912
        %v5429 = vunpack.c.l.b16 %v4913
        %v5430 = vunpack.c.l.b16 %v4914
        %v5431 = vunpack.c.l.b16 %v4915
        %v5432 = vunpack.c.l.b16 %v4916
        %v5433 = vunpack.c.l.b16 %v4917
        %v5434 = vunpack.c.l.b16 %v4918
        %v5435 = vunpack.c.l.b16 %v4919
        %v5436 = vunpack.c.l.b16 %v4920
        %v5437 = vunpack.c.l.b16 %v4921
        %v5438 = vunpack.c.l.b16 %v4922
        %v5439 = vunpack.c.l.b16 %v4923
        %v5440 = vunpack.c.l.b16 %v4924
        %v5441 = vunpack.c.l.b16 %v4925
        %v5442 = vunpack.c.l.b16 %v4926
        %v5443 = vunpack.c.l.b16 %v4927
        %v5444 = vunpack.c.l.b16 %v4928
        %v5445 = vunpack.c.l.b16 %v4929
        %v5446 = vunpack.c.l.b16 %v4930
        %v5447 = vunpack.c.l.b16 %v4931
        %v5448 = vunpack.c.l.b16 %v4932
        %v5449 = vunpack.c.l.b16 %v4933
        %v5450 = vunpack.c.l.b16 %v4934
        %v5451 = vunpack.c.l.b16 %v4935
        %v5452 = vunpack.c.l.b16 %v4936
        %v5453 = vunpack.c.l.b16 %v4937
        %v5454 = vunpack.c.l.b16 %v4938
        %v5455 = vunpack.c.l.b16 %v4939
        %v5456 = vunpack.c.l.b16 %v4940
        %v5457 = vunpack.c.l.b16 %v4941
        %v5458 = vunpack.c.l.b16 %v4942
        %v5459 = vunpack.c.l.b16 %v4943
        %v5460 = vunpack.c.l.b16 %v4944
        %v5461 = vunpack.c.l.b16 %v4945
        %v5462 = vunpack.c.l.b16 %v4946
        %v5463 = vunpack.c.l.b16 %v4947
        %v5464 = vunpack.c.l.b16 %v4948
        %v5465 = vunpack.c.l.b16 %v4949
        %v5466 = vunpack.c.l.b16 %v4950
        %v5467 = vunpack.c.l.b16 %v4951
        %v5468 = vunpack.c.l.b16 %v4952
        %v5469 = vunpack.c.l.b16 %v4953
        %v5470 = vunpack.c.l.b16 %v4954
        %v5471 = vunpack.c.l.b16 %v4955
        %v5472 = vunpack.c.l.b16 %v4956
        %v5473 = vunpack.c.l.b16 %v4957
        %v5474 = vunpack.c.l.b16 %v4958
        %v5475 = vunpack.c.l.b16 %v4959
        %v5476 = vunpack.c.l.b16 %v4960
        %v5477 = vunpack.c.l.b16 %v4961
        %v5478 = vunpack.c.l.b16 %v4962
        %v5479 = vunpack.c.l.b16 %v4963
        %v5480 = vunpack.c.l.b16 %v4964
        %v5481 = vunpack.c.l.b16 %v4965
        %v5482 = vunpack.c.l.b16 %v4966
        %v5483 = vunpack.c.l.b16 %v4967
        %v5484 = vunpack.c.l.b16 %v4968
        %v5485 = vunpack.c.l.b16 %v4969
        %v5486 = vunpack.c.l.b16 %v4970
        %v5487 = vunpack.c.l.b16 %v4971
        %v5488 = vunpack.c.l.b16 %v4972
        %v5489 = vunpack.c.l.b16 %v4973
        %v5490 = vunpack.c.l.b16 %v4974
        %v5491 = vunpack.c.l.b16 %v4975
        %v5492 = vunpack.c.l.b16 %v4976
        %v5493 = vunpack.c.l.b16 %v4977
        %v5494 = vunpack.c.l.b16 %v4978
        %v5495 = vunpack.c.l.b16 %v4979
        %v5496 = vunpack.c.l.b16 %v4980
        %v5497 = vunpack.c.l.b16 %v4981
        %v5498 = vunpack.c.l.b16 %v4982
        %v5499 = vunpack.c.l.b16 %v4983
        %v5500 = vunpack.c.l.b16 %v4984
        %v5501 = vunpack.c.l.b16 %v4985
        %v5502 = vunpack.c.l.b16 %v4986
        %v5503 = vunpack.c.l.b16 %v4987
        %v5504 = vunpack.c.l.b16 %v4988
        %v5505 = vunpack.c.l.b16 %v4989
        %v5506 = vunpack.c.l.b16 %v4990
        %v5507 = vunpack.c.l.b16 %v4991
        %v5508 = vunpack.c.l.b16 %v4992
        %v5509 = vunpack.c.l.b16 %v4993
        %v5510 = vunpack.c.l.b16 %v4994
        %v5511 = vunpack.c.l.b16 %v4995
        %v5512 = vunpack.c.l.b16 %v4996
        %v5513 = vunpack.c.l.b16 %v4997
        %v5514 = vunpack.c.l.b16 %v4998
        %v5515 = vunpack.c.l.b16 %v4999
        %v5516 = vunpack.c.l.b16 %v5000
        %v5517 = vunpack.c.l.b16 %v5001
        %v5518 = vunpack.c.l.b16 %v5002
        %v5519 = vunpack.c.l.b16 %v5003
        %v5520 = vunpack.c.l.b16 %v5004
        %v5521 = vunpack.c.l.b16 %v5005
        %v5522 = vunpack.c.l.b16 %v5006
        %v5523 = vunpack.c.l.b16 %v5007
        %v5524 = vunpack.c.l.b16 %v5008
        %v5525 = vunpack.c.l.b16 %v5009
        %v5526 = vunpack.c.l.b16 %v5010
        %v5527 = vunpack.c.l.b16 %v5011
        %v5528 = vunpack.c.l.b16 %v5012
        %v5529 = vunpack.c.l.b16 %v5013
        %v5530 = vunpack.c.l.b16 %v5014
        %v5531 = vunpack.c.l.b16 %v5015
        %v5532 = vunpack.c.l.b16 %v5016
        %v5533 = vunpack.c.l.b16 %v5017
        %v5534 = vunpack.c.l.b16 %v5018
        %v5535 = vunpack.c.l.b16 %v5019
        %v5536 = vunpack.c.l.b16 %v5020
        %v5537 = vunpack.c.l.b16 %v5021
        %v5538 = vunpack.c.l.b16 %v5022
        %v5539 = vunpack.c.l.b16 %v5023
        %v5540 = vunpack.c.l.b16 %v5024
        %v5541 = vunpack.c.l.b16 %v5025
        %v5542 = vunpack.c.l.b16 %v5026
        %v5543 = vunpack.c.l.b16 %v5027
        %v5544 = vunpack.c.l.b16 %v5028
        %v5545 = vunpack.c.l.b16 %v5029
        %v5546 = vunpack.c.l.b16 %v5030
        %v5547 = vunpack.c.l.b16 %v5031
        %v5548 = vunpack.c.l.b16 %v5032
        %v5549 = vunpack.c.l.b16 %v5033
        %v5550 = vunpack.c.l.b16 %v5034
        %v5551 = vunpack.c.l.b16 %v5035
        %v5552 = vunpack.c.l.b16 %v5036
        %v5553 = vunpack.c.l.b16 %v5037
        %v5554 = vunpack.c.l.b16 %v5038
        %v5555 = vunpack.c.l.b16 %v5039
        %v5556 = vunpack.c.l.b16 %v5040
        %v5557 = vunpack.c.l.b16 %v5041
        %v5558 = vunpack.c.l.b16 %v5042
        %v5559 = vunpack.c.l.b16 %v5043
        %v5560 = vunpack.c.l.b16 %v5044
        %v5561 = vunpack.c.l.b16 %v5045
        %v5562 = vunpack.c.l.b16 %v5046
        %v5563 = vunpack.c.l.b16 %v5047
        %v5564 = vunpack.c.l.b16 %v5048
        %v5565 = vunpack.c.l.b16 %v5049
        %v5566 = vunpack.c.l.b16 %v5050
        %v5567 = vunpack.c.l.b16 %v5051
        %v5568 = vunpack.c.l.b16 %v5052
        %v5569 = vunpack.c.l.b16 %v5053
        %v5570 = vunpack.c.l.b16 %v5054
        %v5571 = vunpack.c.l.b16 %v5055
        %v5572 = vunpack.c.l.b16 %v5056
        %v5573 = vunpack.c.l.b16 %v5057
        %v5574 = vunpack.c.l.b16 %v5058
        %v5575 = vunpack.c.l.b16 %v5059
        %v5576 = vunpack.c.l.b16 %v5060
        %v5577 = vunpack.c.l.b16 %v5061
        %v5578 = vunpack.c.l.b16 %v5062
        %v5579 = vunpack.c.l.b16 %v5063
        %v5580 = vunpack.c.l.b16 %v5064
        %v5581 = vunpack.c.l.b16 %v5065
        %v5582 = vunpack.c.l.b16 %v5066
        %v5583 = vunpack.c.l.b16 %v5067
        %v5584 = vunpack.c.l.b16 %v5068
        %v5585 = vunpack.c.l.b16 %v5069
        %v5586 = vunpack.c.l.b16 %v5070
        %v5587 = vunpack.c.l.b16 %v5071
        %v5588 = vunpack.c.l.b16 %v5072
        %v5589 = vunpack.c.l.b16 %v5073
        %v5590 = vunpack.c.l.b16 %v5074
        %v5591 = vunpack.c.l.b16 %v5075
        %v5592 = vunpack.c.l.b16 %v5076
        %v5593 = vunpack.c.l.b16 %v5077
        %v5594 = vunpack.c.l.b16 %v5078
        %v5595 = vunpack.c.l.b16 %v5079
        %v5596 = vunpack.c.l.b16 %v5080
        %v5597 = vunpack.c.l.b16 %v5081
        %v5598 = vunpack.c.l.b16 %v5082
        %v5599 = vunpack.c.l.b16 %v5083
        %v5600 = vunpack.c.l.b16 %v5084
        %v5601 = vunpack.c.l.b16 %v5085
        %v5602 = vunpack.c.l.b16 %v5086
        %v5603 = vunpack.c.l.b16 %v5087
        %v5604 = vunpack.c.l.b16 %v5088
        %v5605 = vunpack.c.l.b16 %v5089
        %v5606 = vunpack.c.l.b16 %v5090
        %v5607 = vunpack.c.l.b16 %v5091
        %v5608 = vunpack.c.l.b16 %v5092
        %v5609 = vunpack.c.l.b16 %v5093
        %v5610 = vunpack.c.l.b16 %v5094
        %v5611 = vunpack.c.l.b16 %v5095
        %v5612 = vunpack.c.l.b16 %v5096
        %v5613 = vunpack.c.l.b16 %v5097
        %v5614 = vunpack.c.l.b16 %v5098
        %v5615 = vunpack.c.l.b16 %v5099
        %v5616 = vunpack.c.l.b16 %v5100
        %v5617 = vunpack.c.l.b16 %v5101
        %v5618 = vunpack.c.l.b16 %v5102
        %v5619 = vunpack.c.l.b16 %v5103
        %v5620 = vunpack.c.l.b16 %v5104
        %v5621 = vunpack.c.l.b16 %v5105
        %v5622 = vunpack.c.l.b16 %v5106
        %v5623 = vunpack.c.l.b16 %v5107
        %v5624 = vunpack.c.l.b16 %v5108
        %v5625 = vunpack.c.l.b16 %v5109
        %v5626 = vunpack.c.l.b16 %v5110
        %v5627 = vunpack.c.l.b16 %v5111
        %v5628 = vunpack.c.l.b16 %v5112
        %v5629 = vunpack.c.l.b16 %v5113
        %v5630 = vunpack.c.l.b16 %v5114
        %v5631 = vunpack.c.l.b16 %v5115
        %v5632 = vunpack.c.l.b16 %v5116
        %v5633 = vunpack.c.l.b16 %v5117
        %v5634 = vunpack.c.l.b16 %v5118
        %v5635 = vunpack.c.l.b16 %v5119
        %v5636 = vunpack.c.l.b16 %v5120
        %v5637 = vunpack.c.l.b16 %v5121
        %v5638 = vunpack.c.l.b16 %v5122
        %v5639 = vunpack.c.l.b16 %v5123
        %v5640 = vunpack.c.l.b16 %v5124
        %v5641 = vunpack.c.l.b16 %v5125
        %v5642 = vunpack.c.l.b16 %v5126
        %v5643 = vpack.c.b16 %v5388, %v5387
        %v5644 = vpack.c.b16 %v5390, %v5389
        %v5645 = vpack.c.b16 %v5392, %v5391
        %v5646 = vpack.c.b16 %v5394, %v5393
        %v5647 = vpack.c.b16 %v5396, %v5395
        %v5648 = vpack.c.b16 %v5398, %v5397
        %v5649 = vpack.c.b16 %v5400, %v5399
        %v5650 = vpack.c.b16 %v5402, %v5401
        %v5651 = vpack.c.b16 %v5404, %v5403
        %v5652 = vpack.c.b16 %v5406, %v5405
        %v5653 = vpack.c.b16 %v5408, %v5407
        %v5654 = vpack.c.b16 %v5410, %v5409
        %v5655 = vpack.c.b16 %v5412, %v5411
        %v5656 = vpack.c.b16 %v5414, %v5413
        %v5657 = vpack.c.b16 %v5416, %v5415
        %v5658 = vpack.c.b16 %v5418, %v5417
        %v5659 = vpack.c.b16 %v5420, %v5419
        %v5660 = vpack.c.b16 %v5422, %v5421
        %v5661 = vpack.c.b16 %v5424, %v5423
        %v5662 = vpack.c.b16 %v5426, %v5425
        %v5663 = vpack.c.b16 %v5428, %v5427
        %v5664 = vpack.c.b16 %v5430, %v5429
        %v5665 = vpack.c.b16 %v5432, %v5431
        %v5666 = vpack.c.b16 %v5434, %v5433
        %v5667 = vpack.c.b16 %v5436, %v5435
        %v5668 = vpack.c.b16 %v5438, %v5437
        %v5669 = vpack.c.b16 %v5440, %v5439
        %v5670 = vpack.c.b16 %v5442, %v5441
        %v5671 = vpack.c.b16 %v5444, %v5443
        %v5672 = vpack.c.b16 %v5446, %v5445
        %v5673 = vpack.c.b16 %v5448, %v5447
        %v5674 = vpack.c.b16 %v5450, %v5449
        %v5675 = vpack.c.b16 %v5452, %v5451
        %v5676 = vpack.c.b16 %v5454, %v5453
        %v5677 = vpack.c.b16 %v5456, %v5455
        %v5678 = vpack.c.b16 %v5458, %v5457
        %v5679 = vpack.c.b16 %v5460, %v5459
        %v5680 = vpack.c.b16 %v5462, %v5461
        %v5681 = vpack.c.b16 %v5464, %v5463
        %v5682 = vpack.c.b16 %v5466, %v5465
        %v5683 = vpack.c.b16 %v5468, %v5467
        %v5684 = vpack.c.b16 %v5470, %v5469
        %v5685 = vpack.c.b16 %v5472, %v5471
        %v5686 = vpack.c.b16 %v5474, %v5473
        %v5687 = vpack.c.b16 %v5476, %v5475
        %v5688 = vpack.c.b16 %v5478, %v5477
        %v5689 = vpack.c.b16 %v5480, %v5479
        %v5690 = vpack.c.b16 %v5482, %v5481
        %v5691 = vpack.c.b16 %v5484, %v5483
        %v5692 = vpack.c.b16 %v5486, %v5485
        %v5693 = vpack.c.b16 %v5488, %v5487
        %v5694 = vpack.c.b16 %v5490, %v5489
        %v5695 = vpack.c.b16 %v5492, %v5491
        %v5696 = vpack.c.b16 %v5494, %v5493
        %v5697 = vpack.c.b16 %v5496, %v5495
        %v5698 = vpack.c.b16 %v5498, %v5497
        %v5699 = vpack.c.b16 %v5500, %v5499
        %v5700 = vpack.c.b16 %v5502, %v5501
        %v5701 = vpack.c.b16 %v5504, %v5503
        %v5702 = vpack.c.b16 %v5506, %v5505
        %v5703 = vpack.c.b16 %v5508, %v5507
        %v5704 = vpack.c.b16 %v5510, %v5509
        %v5705 = vpack.c.b16 %v5512, %v5511
        %v5706 = vpack.c.b16 %v5514, %v5513
        %v5707 = vpack.c.b16 %v5516, %v5515
        %v5708 = vpack.c.b16 %v5518, %v5517
        %v5709 = vpack.c.b16 %v5520, %v5519
        %v5710 = vpack.c.b16 %v5522, %v5521
        %v5711 = vpack.c.b16 %v5524, %v5523
        %v5712 = vpack.c.b16 %v5526, %v5525
        %v5713 = vpack.c.b16 %v5528, %v5527
        %v5714 = vpack.c.b16 %v5530, %v5529
        %v5715 = vpack.c.b16 %v5532, %v5531
        %v5716 = vpack.c.b16 %v5534, %v5533
        %v5717 = vpack.c.b16 %v5536, %v5535
        %v5718 = vpack.c.b16 %v5538, %v5537
        %v5719 = vpack.c.b16 %v5540, %v5539
        %v5720 = vpack.c.b16 %v5542, %v5541
        %v5721 = vpack.c.b16 %v5544, %v5543
        %v5722 = vpack.c.b16 %v5546, %v5545
        %v5723 = vpack.c.b16 %v5548, %v5547
        %v5724 = vpack.c.b16 %v5550, %v5549
        %v5725 = vpack.c.b16 %v5552, %v5551
        %v5726 = vpack.c.b16 %v5554, %v5553
        %v5727 = vpack.c.b16 %v5556, %v5555
        %v5728 = vpack.c.b16 %v5558, %v5557
        %v5729 = vpack.c.b16 %v5560, %v5559
        %v5730 = vpack.c.b16 %v5562, %v5561
        %v5731 = vpack.c.b16 %v5564, %v5563
        %v5732 = vpack.c.b16 %v5566, %v5565
        %v5733 = vpack.c.b16 %v5568, %v5567
        %v5734 = vpack.c.b16 %v5570, %v5569
        %v5735 = vpack.c.b16 %v5572, %v5571
        %v5736 = vpack.c.b16 %v5574, %v5573
        %v5737 = vpack.c.b16 %v5576, %v5575
        %v5738 = vpack.c.b16 %v5578, %v5577
        %v5739 = vpack.c.b16 %v5580, %v5579
        %v5740 = vpack.c.b16 %v5582, %v5581
        %v5741 = vpack.c.b16 %v5584, %v5583
        %v5742 = vpack.c.b16 %v5586, %v5585
        %v5743 = vpack.c.b16 %v5588, %v5587
        %v5744 = vpack.c.b16 %v5590, %v5589
        %v5745 = vpack.c.b16 %v5592, %v5591
        %v5746 = vpack.c.b16 %v5594, %v5593
        %v5747 = vpack.c.b16 %v5596, %v5595
        %v5748 = vpack.c.b16 %v5598, %v5597
        %v5749 = vpack.c.b16 %v5600, %v5599
        %v5750 = vpack.c.b16 %v5602, %v5601
        %v5751 = vpack.c.b16 %v5604, %v5603
        %v5752 = vpack.c.b16 %v5606, %v5605
        %v5753 = vpack.c.b16 %v5608, %v5607
        %v5754 = vpack.c.b16 %v5610, %v5609
        %v5755 = vpack.c.b16 %v5612, %v5611
        %v5756 = vpack.c.b16 %v5614, %v5613
        %v5757 = vpack.c.b16 %v5616, %v5615
        %v5758 = vpack.c.b16 %v5618, %v5617
        %v5759 = vpack.c.b16 %v5620, %v5619
        %v5760 = vpack.c.b16 %v5622, %v5621
        %v5761 = vpack.c.b16 %v5624, %v5623
        %v5762 = vpack.c.b16 %v5626, %v5625
        %v5763 = vpack.c.b16 %v5628, %v5627
        %v5764 = vpack.c.b16 %v5630, %v5629
        %v5765 = vpack.c.b16 %v5632, %v5631
        %v5766 = vpack.c.b16 %v5634, %v5633
        %v5767 = vpack.c.b16 %v5636, %v5635
        %v5768 = vpack.c.b16 %v5638, %v5637
        %v5769 = vpack.c.b16 %v5640, %v5639
        %v5770 = vpack.c.b16 %v5642, %v5641
        %5899 = vmatpush.bf16.msra.mxu0 %v5650
        %5900 = vmatpush.bf16.msra.mxu0 %v5649
        %5901 = vmatpush.bf16.msra.mxu0 %v5648
        %5902 = vmatpush.bf16.msra.mxu0 %v5647
        %5903 = vmatpush.bf16.msra.mxu0 %v5646
        %5904 = vmatpush.bf16.msra.mxu0 %v5645
        %5905 = vmatpush.bf16.msra.mxu0 %v5644
        %5906 = vmatpush.bf16.msra.mxu0 %v5643
        %5907 = vmatmul.bf16.gmra.mxu0 %v4855
        %v5908 = vpop.f32.mrf.mxu0
        %v5909 = vadd.f32 %v5129, %v5908
        %v5910 = vpop.f32.mrf.mxu0
        %5911 = vdwg.mxu0
        %5912 = vmatpush.bf16.msra.mxu0 %v5658
        %5913 = vmatpush.bf16.msra.mxu0 %v5657
        %5914 = vmatpush.bf16.msra.mxu0 %v5656
        %5915 = vmatpush.bf16.msra.mxu0 %v5655
        %5916 = vmatpush.bf16.msra.mxu0 %v5654
        %5917 = vmatpush.bf16.msra.mxu0 %v5653
        %5918 = vmatpush.bf16.msra.mxu0 %v5652
        %5919 = vmatpush.bf16.msra.mxu0 %v5651
        %5920 = vmatmul.bf16.gmra.mxu0 %v4856
        %v5921 = vpop.f32.mrf.mxu0
        %v5922 = vadd.f32 %v5909, %v5921
        %v5923 = vpop.f32.mrf.mxu0
        %5924 = vdwg.mxu0
        %5925 = vmatpush.bf16.msra.mxu0 %v5666
        %5926 = vmatpush.bf16.msra.mxu0 %v5665
        %5927 = vmatpush.bf16.msra.mxu0 %v5664
        %5928 = vmatpush.bf16.msra.mxu0 %v5663
        %5929 = vmatpush.bf16.msra.mxu0 %v5662
        %5930 = vmatpush.bf16.msra.mxu0 %v5661
        %5931 = vmatpush.bf16.msra.mxu0 %v5660
        %5932 = vmatpush.bf16.msra.mxu0 %v5659
        %5933 = vmatmul.bf16.gmra.mxu0 %v4857
        %v5934 = vpop.f32.mrf.mxu0
        %v5935 = vadd.f32 %v5922, %v5934
        %v5936 = vpop.f32.mrf.mxu0
        %5937 = vdwg.mxu0
        %5938 = vmatpush.bf16.msra.mxu0 %v5674
        %5939 = vmatpush.bf16.msra.mxu0 %v5673
        %5940 = vmatpush.bf16.msra.mxu0 %v5672
        %5941 = vmatpush.bf16.msra.mxu0 %v5671
        %5942 = vmatpush.bf16.msra.mxu0 %v5670
        %5943 = vmatpush.bf16.msra.mxu0 %v5669
        %5944 = vmatpush.bf16.msra.mxu0 %v5668
        %5945 = vmatpush.bf16.msra.mxu0 %v5667
        %5946 = vmatmul.bf16.gmra.mxu0 %v4858
        %v5947 = vpop.f32.mrf.mxu0
        %v5948 = vadd.f32 %v5935, %v5947
        %v5949 = vpop.f32.mrf.mxu0
        %5950 = vdwg.mxu0
        %5951 = vmatpush.bf16.msra.mxu0 %v5682
        %5952 = vmatpush.bf16.msra.mxu0 %v5681
        %5953 = vmatpush.bf16.msra.mxu0 %v5680
        %5954 = vmatpush.bf16.msra.mxu0 %v5679
        %5955 = vmatpush.bf16.msra.mxu0 %v5678
        %5956 = vmatpush.bf16.msra.mxu0 %v5677
        %5957 = vmatpush.bf16.msra.mxu0 %v5676
        %5958 = vmatpush.bf16.msra.mxu0 %v5675
        %5959 = vmatmul.bf16.gmra.mxu0 %v4859
        %v5960 = vpop.f32.mrf.mxu0
        %v5961 = vadd.f32 %v5948, %v5960
        %v5962 = vpop.f32.mrf.mxu0
        %5963 = vdwg.mxu0
        %5964 = vmatpush.bf16.msra.mxu0 %v5690
        %5965 = vmatpush.bf16.msra.mxu0 %v5689
        %5966 = vmatpush.bf16.msra.mxu0 %v5688
        %5967 = vmatpush.bf16.msra.mxu0 %v5687
        %5968 = vmatpush.bf16.msra.mxu0 %v5686
        %5969 = vmatpush.bf16.msra.mxu0 %v5685
        %5970 = vmatpush.bf16.msra.mxu0 %v5684
        %5971 = vmatpush.bf16.msra.mxu0 %v5683
        %5972 = vmatmul.bf16.gmra.mxu0 %v4860
        %v5973 = vpop.f32.mrf.mxu0
        %v5974 = vadd.f32 %v5961, %v5973
        %v5975 = vpop.f32.mrf.mxu0
        %5976 = vdwg.mxu0
        %5977 = vmatpush.bf16.msra.mxu0 %v5698
        %5978 = vmatpush.bf16.msra.mxu0 %v5697
        %5979 = vmatpush.bf16.msra.mxu0 %v5696
        %5980 = vmatpush.bf16.msra.mxu0 %v5695
        %5981 = vmatpush.bf16.msra.mxu0 %v5694
        %5982 = vmatpush.bf16.msra.mxu0 %v5693
        %5983 = vmatpush.bf16.msra.mxu0 %v5692
        %5984 = vmatpush.bf16.msra.mxu0 %v5691
        %5985 = vmatmul.bf16.gmra.mxu0 %v4861
        %v5986 = vpop.f32.mrf.mxu0
        %v5987 = vadd.f32 %v5974, %v5986
        %v5988 = vpop.f32.mrf.mxu0
        %5989 = vdwg.mxu0
        %5990 = vmatpush.bf16.msra.mxu0 %v5706
        %5991 = vmatpush.bf16.msra.mxu0 %v5705
        %5992 = vmatpush.bf16.msra.mxu0 %v5704
        %5993 = vmatpush.bf16.msra.mxu0 %v5703
        %5994 = vmatpush.bf16.msra.mxu0 %v5702
        %5995 = vmatpush.bf16.msra.mxu0 %v5701
        %5996 = vmatpush.bf16.msra.mxu0 %v5700
        %5997 = vmatpush.bf16.msra.mxu0 %v5699
        %5998 = vmatmul.bf16.gmra.mxu0 %v4862
        %v5999 = vpop.f32.mrf.mxu0
        %v6000 = vadd.f32 %v5987, %v5999
        %v6001 = vpop.f32.mrf.mxu0
        %6002 = vdwg.mxu0
        %6003 = vmatpush.bf16.msra.mxu0 %v5714
        %6004 = vmatpush.bf16.msra.mxu0 %v5713
        %6005 = vmatpush.bf16.msra.mxu0 %v5712
        %6006 = vmatpush.bf16.msra.mxu0 %v5711
        %6007 = vmatpush.bf16.msra.mxu0 %v5710
        %6008 = vmatpush.bf16.msra.mxu0 %v5709
        %6009 = vmatpush.bf16.msra.mxu0 %v5708
        %6010 = vmatpush.bf16.msra.mxu0 %v5707
        %6011 = vmatmul.bf16.gmra.mxu0 %v4863
        %v6012 = vpop.f32.mrf.mxu0
        %v6013 = vadd.f32 %v6000, %v6012
        %v6014 = vpop.f32.mrf.mxu0
        %6015 = vdwg.mxu0
        %6016 = vmatpush.bf16.msra.mxu0 %v5722
        %6017 = vmatpush.bf16.msra.mxu0 %v5721
        %6018 = vmatpush.bf16.msra.mxu0 %v5720
        %6019 = vmatpush.bf16.msra.mxu0 %v5719
        %6020 = vmatpush.bf16.msra.mxu0 %v5718
        %6021 = vmatpush.bf16.msra.mxu0 %v5717
        %6022 = vmatpush.bf16.msra.mxu0 %v5716
        %6023 = vmatpush.bf16.msra.mxu0 %v5715
        %6024 = vmatmul.bf16.gmra.mxu0 %v4864
        %v6025 = vpop.f32.mrf.mxu0
        %v6026 = vadd.f32 %v6013, %v6025
        %v6027 = vpop.f32.mrf.mxu0
        %6028 = vdwg.mxu0
        %6029 = vmatpush.bf16.msra.mxu0 %v5730
        %6030 = vmatpush.bf16.msra.mxu0 %v5729
        %6031 = vmatpush.bf16.msra.mxu0 %v5728
        %6032 = vmatpush.bf16.msra.mxu0 %v5727
        %6033 = vmatpush.bf16.msra.mxu0 %v5726
        %6034 = vmatpush.bf16.msra.mxu0 %v5725
        %6035 = vmatpush.bf16.msra.mxu0 %v5724
        %6036 = vmatpush.bf16.msra.mxu0 %v5723
        %6037 = vmatmul.bf16.gmra.mxu0 %v4865
        %v6038 = vpop.f32.mrf.mxu0
        %v6039 = vadd.f32 %v6026, %v6038
        %v6040 = vpop.f32.mrf.mxu0
        %6041 = vdwg.mxu0
        %6042 = vmatpush.bf16.msra.mxu0 %v5738
        %6043 = vmatpush.bf16.msra.mxu0 %v5737
        %6044 = vmatpush.bf16.msra.mxu0 %v5736
        %6045 = vmatpush.bf16.msra.mxu0 %v5735
        %6046 = vmatpush.bf16.msra.mxu0 %v5734
        %6047 = vmatpush.bf16.msra.mxu0 %v5733
        %6048 = vmatpush.bf16.msra.mxu0 %v5732
        %6049 = vmatpush.bf16.msra.mxu0 %v5731
        %6050 = vmatmul.bf16.gmra.mxu0 %v4866
        %v6051 = vpop.f32.mrf.mxu0
        %v6052 = vadd.f32 %v6039, %v6051
        %v6053 = vpop.f32.mrf.mxu0
        %6054 = vdwg.mxu0
        %6055 = vmatpush.bf16.msra.mxu0 %v5746
        %6056 = vmatpush.bf16.msra.mxu0 %v5745
        %6057 = vmatpush.bf16.msra.mxu0 %v5744
        %6058 = vmatpush.bf16.msra.mxu0 %v5743
        %6059 = vmatpush.bf16.msra.mxu0 %v5742
        %6060 = vmatpush.bf16.msra.mxu0 %v5741
        %6061 = vmatpush.bf16.msra.mxu0 %v5740
        %6062 = vmatpush.bf16.msra.mxu0 %v5739
        %6063 = vmatmul.bf16.gmra.mxu0 %v4867
        %v6064 = vpop.f32.mrf.mxu0
        %v6065 = vadd.f32 %v6052, %v6064
        %v6066 = vpop.f32.mrf.mxu0
        %6067 = vdwg.mxu0
        %6068 = vmatpush.bf16.msra.mxu0 %v5754
        %6069 = vmatpush.bf16.msra.mxu0 %v5753
        %6070 = vmatpush.bf16.msra.mxu0 %v5752
        %6071 = vmatpush.bf16.msra.mxu0 %v5751
        %6072 = vmatpush.bf16.msra.mxu0 %v5750
        %6073 = vmatpush.bf16.msra.mxu0 %v5749
        %6074 = vmatpush.bf16.msra.mxu0 %v5748
        %6075 = vmatpush.bf16.msra.mxu0 %v5747
        %6076 = vmatmul.bf16.gmra.mxu0 %v4868
        %v6077 = vpop.f32.mrf.mxu0
        %v6078 = vadd.f32 %v6065, %v6077
        %v6079 = vpop.f32.mrf.mxu0
        %6080 = vdwg.mxu0
        %6081 = vmatpush.bf16.msra.mxu0 %v5762
        %6082 = vmatpush.bf16.msra.mxu0 %v5761
        %6083 = vmatpush.bf16.msra.mxu0 %v5760
        %6084 = vmatpush.bf16.msra.mxu0 %v5759
        %6085 = vmatpush.bf16.msra.mxu0 %v5758
        %6086 = vmatpush.bf16.msra.mxu0 %v5757
        %6087 = vmatpush.bf16.msra.mxu0 %v5756
        %6088 = vmatpush.bf16.msra.mxu0 %v5755
        %6089 = vmatmul.bf16.gmra.mxu0 %v4869
        %v6090 = vpop.f32.mrf.mxu0
        %v6091 = vadd.f32 %v6078, %v6090
        %v6092 = vpop.f32.mrf.mxu0
        %6093 = vdwg.mxu0
        %6094 = vmatpush.bf16.msra.mxu0 %v5770
        %6095 = vmatpush.bf16.msra.mxu0 %v5769
        %6096 = vmatpush.bf16.msra.mxu0 %v5768
        %6097 = vmatpush.bf16.msra.mxu0 %v5767
        %6098 = vmatpush.bf16.msra.mxu0 %v5766
        %6099 = vmatpush.bf16.msra.mxu0 %v5765
        %6100 = vmatpush.bf16.msra.mxu0 %v5764
        %6101 = vmatpush.bf16.msra.mxu0 %v5763
        %6102 = vmatmul.bf16.gmra.mxu0 %v4870
        %v6103 = vpop.f32.mrf.mxu0
        %v6104 = vadd.f32 %v6091, %v6103
        %v6105 = vpop.f32.mrf.mxu0
        %6106 = vdwg.mxu0
        %6107 = vst [vmem:[%s271] sm:$0xff] %v6104
        %s6108 = sand.u32 %s181, 1
        %s6109 = scalar_lea.sflag [#allocation3], %s6108
        %s6110 = sand.u32 %s181, 1
        %s6111 = smul.addr %s6110, 8
        %s6112 = scalar_lea.vmem [#allocation2], %s6111
        // Predicated region
        $region49: #{_forward_padded.1} parent=47 // pred_check
          %p6113 = pneg %p191
        $region50: #{_forward_padded.1} parent=47 // pred_check_branch
          %6115 = sbr.rel (%p6113) target = $region52
        $region51: #{_forward_padded.1} parent=47 // pred_region
          %6117 = vsyncadd %s6109, 0
          %s6118 = smul.addr %s21, 8
          %s6119 = scalar_lea.hbm %s7, %s6118
          %s6121 = sshll.u32 %s6112, 4
          %s6122 = int_to_ptr.vmem [resolvable:$true] %s6121
          %s6123 = sshll.u32 %s6119, 4
          %s6124 = int_to_ptr.hbm [resolvable:$true] %s6123
          %6126 = dma.vmem_to_hbm [thread:$0]  %s6122, 128, %s6124, %s6109
        $region52: #{_forward_padded.1} parent=47 // pred_fallthru
          _
      $region48: #{_forward_padded.1} parent=5 // pred_fallthru
        _
      %p6127 = scmp.le.s32.totalorder 2, %s16
      // Predicated region
      $region53: #{_forward_padded.1} parent=5 // pred_check
        %p6128 = pneg %p6127
      $region54: #{_forward_padded.1} parent=5 // pred_check_branch
        %6130 = sbr.rel (%p6128) target = $region56
      $region55: #{_forward_padded.1} parent=5 // pred_region
        %s6131 = ssub.s32 %s16, 2
        // Predicated region
        $region57: #{_forward_padded.1} parent=55 // pred_check
          %p6132 = pneg %p197
        $region58: #{_forward_padded.1} parent=55 // pred_check_branch
          %6134 = sbr.rel (%p6132) target = $region60
        $region59: #{_forward_padded.1} parent=55 // pred_region
          %s6135 = sand.u32 %s182, 1
          %s6136 = scalar_lea.sflag [#allocation3], %s6135
          %s6137 = sand.u32 %s182, 1
          %s6138 = smul.addr %s6137, 8
          %s6139 = scalar_lea.vmem [#allocation2], %s6138
          %6141 = dma.done %s6136, 128
        $region60: #{_forward_padded.1} parent=55 // pred_fallthru
          _
      $region56: #{_forward_padded.1} parent=5 // pred_fallthru
        _
    $region6: #{_forward_padded.1} parent=1 // loop_footer
      %s20 = sadd.s32 1, %s16
    $region7: #{_forward_padded.1} parent=1 // loop_footer_branch
      %15 = sbr.rel target = $region3
    $region8: #{_forward_padded.1} parent=1 // loop_exit
      _
    %6142 = vsyncpa [#allocation3], 1
    %s6143 = scalar_lea.sflag [#allocation3], 1
    %6144 = vsyncpa %s6143, 1

</llo_original>
